<compile_context>
chip_gen: v5e
topology: v5e:2x2
jax: 0.10.0
libtpu: 0.0.40
codegen_flags: <defaults>
</compile_context>

<pallas_src>
import jax
import jax.numpy as jnp
from jax.experimental import pallas as pl
from jax.experimental.pallas import tpu as pltpu

HID = 256          # hid_dim hard-coded in the PyTorch module
EMB = 2 * HID      # 512 = embedding dim / conv out channels


def _net_syn_user_fused_kernel(emb_ref, img_ref, hx0_ref, bnp_ref,
                               wconv_ref, cb_ref, bng_ref, bnb_ref,
                               wti_ref, imb_ref,
                               wcomb_ref, whh_ref, head_ref,
                               out_ref, hxn_ref,
                               res_ref):
    H = HID
    D = EMB
    TB = img_ref.shape[0]              # T*B rows, step-major (row = t*B + b)
    B = hx0_ref.shape[0]
    T = TB // B
    LTB = emb_ref.shape[0]             # L*T*B rows, time-major (row = time*TB + t*B + b)
    L = LTB // TB

    # ---- Stage 1: cnn_txt conv as ONE matmul over all (time, step, batch) rows. ----
    # res[:, :512] = emb @ W_tap0 ; res[:, 512:] = emb @ W_tap1
    res_ref[...] = jnp.dot(emb_ref[...], wconv_ref[...],
                           preferred_element_type=jnp.float32)          # (L*T*B, 1024)

    # ---- Stage 2: vectorized max-over-time pooling. ----
    # Time-major rows => conv window tt is two sublane-aligned (TB, 512) row blocks.
    def window(tt):
        a0 = res_ref[pl.ds(tt * TB, TB), pl.ds(0, D)]        # tap0 at time tt
        a1 = res_ref[pl.ds((tt + 1) * TB, TB), pl.ds(D, D)]  # tap1 at time tt+1
        return a0 + a1

    pooled = window(0)
    for tt in range(1, L - 1):                                # static, L-1 small windows
        pooled = jnp.maximum(pooled, window(tt))
    x = pooled + cb_ref[...]          # conv bias after max (bias is a per-channel const)

    # ---- Stage 3: BatchNorm1d, training-mode stats per step (over B only). ----
    # bnp is block-diagonal (TB, TB) with 1/B inside each step's BxB block, so
    # bnp @ v puts each step's batch mean back on its own B rows (no cross-step mixing).
    mean = jnp.dot(bnp_ref[...], x, preferred_element_type=jnp.float32)
    diff = x - mean
    var = jnp.dot(bnp_ref[...], diff * diff,
                  preferred_element_type=jnp.float32)                  # biased variance
    x_bn = diff * jax.lax.rsqrt(var + 1e-5) * bng_ref[...] + bnb_ref[...]

    # ---- Stage 4: fc_txt (no bias) + img_linear (bias) fused into one matmul. ----
    xcat = jnp.concatenate([x_bn, img_ref[...]], axis=-1)              # (TB, 768)
    xsum = jnp.dot(xcat.astype(jnp.bfloat16), wti_ref[...],
                   preferred_element_type=jnp.float32) + imb_ref[...]  # (TB, 256) = x1+x2

    # ---- Stage 5: GRU input projection (fc_joint folded into W_ih), all steps at once. --
    gi_all = jnp.dot(xsum.astype(jnp.bfloat16), wcomb_ref[...],
                     preferred_element_type=jnp.float32)               # (TB, 768) = [r|z|n]

    # ---- Stage 6: recurrence; only hx @ W_hh^T + gate math remain per step. ----
    hx = hx0_ref[...]                                                  # (B, 256) f32
    h_rows = []
    for t in range(T):      # statically unrolled; per-step work is tiny and serial anyway
        gi = gi_all[t * B:(t + 1) * B, :]                              # (B, 768)
        gh = jnp.dot(hx.astype(jnp.bfloat16), whh_ref[...],
                     preferred_element_type=jnp.float32)               # (B, 768) = [r|z|n]
        r = jax.nn.sigmoid(gi[:, 0:H] + gh[:, 0:H])
        z = jax.nn.sigmoid(gi[:, H:2 * H] + gh[:, H:2 * H])
        n = jnp.tanh(gi[:, 2 * H:3 * H] + r * gh[:, 2 * H:3 * H])
        hx = (1.0 - z) * n + z * hx
        h_rows.append(hx)

    # ---- Stage 7: head matmul hoisted out of the recurrence; one dense writeback. ----
    h_all = jnp.concatenate(h_rows, axis=0)                            # (T*B, 256)
    out = jnp.dot(h_all.astype(jnp.bfloat16), head_ref[...],
                  preferred_element_type=jnp.float32)
    out_ref[...] = out.astype(out_ref.dtype)
    hxn_ref[...] = hx.astype(hxn_ref.dtype)


def init_params(num_emb, key):
    """Deterministic synthetic parameters with PyTorch-equivalent shapes."""
    ks = jax.random.split(key, 10)
    s = 0.02
    return dict(
        emb_txt=jax.random.normal(ks[0], (num_emb, EMB), jnp.float32) * s,   # Embedding
        conv_w=jax.random.normal(ks[1], (EMB, 1, 2, EMB), jnp.float32) * s,  # (out,in,kh,kw)
        conv_b=jax.random.normal(ks[2], (EMB,), jnp.float32) * s,
        bn_gamma=jnp.ones((EMB,), jnp.float32),
        bn_beta=jnp.zeros((EMB,), jnp.float32),
        fc_txt_w=jax.random.normal(ks[3], (HID, EMB), jnp.float32) * s,      # (out,in)
        img_w=jax.random.normal(ks[4], (HID, HID), jnp.float32) * s,
        img_b=jax.random.normal(ks[5], (HID,), jnp.float32) * s,
        fc_joint_w=jax.random.normal(ks[6], (HID, HID), jnp.float32) * s,
        w_ih=jax.random.normal(ks[7], (3 * HID, HID), jnp.float32) * s,      # GRU (3H, H)
        w_hh=jax.random.normal(ks[8], (3 * HID, HID), jnp.float32) * s,
        head_w=jax.random.normal(ks[9], (HID, HID), jnp.float32) * s,
    )


def fuse_params(p):
    """Build the fused/transposed bf16 operands consumed by the kernel."""
    bf16 = jnp.bfloat16
    # Conv taps -> one (512, 1024) weight with column blocks [tap0 | tap1], (in, out) layout.
    w0 = jnp.transpose(p["conv_w"][:, 0, 0, :])
    w1 = jnp.transpose(p["conv_w"][:, 0, 1, :])
    w_conv = jnp.concatenate([w0, w1], axis=1)                               # (512, 1024)
    # fc_txt + img_linear stacked: [x_bn | img] @ w_ti == fc_txt(x_bn) + img_linear(img) - b
    w_ti = jnp.concatenate([jnp.transpose(p["fc_txt_w"]),
                            jnp.transpose(p["img_w"])], axis=0)              # (768, 256)
    # fc_joint folded into the GRU input projection (rounding differs slightly from two
    # separate f32 matmuls); gate column order [r | z | n] as in PyTorch GRUCell.
    w_comb = jnp.transpose(p["fc_joint_w"]) @ jnp.transpose(p["w_ih"])       # (256, 768)
    w_hh_t = jnp.transpose(p["w_hh"])                                        # (256, 768)
    return dict(
        emb_txt=p["emb_txt"],
        w_conv=w_conv.astype(bf16),
        conv_b=p["conv_b"].reshape(1, EMB),
        bn_gamma=p["bn_gamma"].reshape(1, EMB),
        bn_beta=p["bn_beta"].reshape(1, EMB),
        w_ti=w_ti.astype(bf16),
        img_b=p["img_b"].reshape(1, HID),
        w_comb=w_comb.astype(bf16),
        w_hh_t=w_hh_t.astype(bf16),
        head_w=jnp.transpose(p["head_w"]).astype(bf16),
    )


@jax.jit
def net_syn_user_forward_steps(params, img_seq, txt_seq, hx0):
    """T recurrent forward steps fused into one pallas_call (single grid step).

    img_seq: (T, B, 256) f32, txt_seq: (T, B, L) int32, hx0: (B, 256) f32.
    Returns (out_seq (T, B, 256), hx_final (B, 256)).
    """
    T, B, L = txt_seq.shape
    assert L >= 2, "cnn_txt has kernel height 2; need sequence length >= 2"
    TB = T * B

    # Embedding lookup (pure gather) stays in XLA glue; rows are laid out TIME-major so the
    # in-kernel conv windows are sublane-aligned (TB, 512) row blocks.
    emb = jnp.take(params["emb_txt"], txt_seq.reshape(-1), axis=0).reshape(T, B, L, EMB)
    emb_tm = jnp.transpose(emb, (2, 0, 1, 3)).reshape(L * TB, EMB).astype(jnp.bfloat16)

    img_flat = img_seq.reshape(TB, HID).astype(jnp.float32)
    hx0 = hx0.astype(jnp.float32)

    # Block-diagonal per-step averaging matrix for BatchNorm (mean/var over B only).
    grp = jnp.arange(TB, dtype=jnp.int32) // B
    bn_pool = (grp[:, None] == grp[None, :]).astype(jnp.float32) / B         # (TB, TB)

    def full_spec(shape):
        return pl.BlockSpec(shape, lambda i: (0, 0))       # all operands are 2-D

    in_arrays = (emb_tm, img_flat, hx0, bn_pool,
                 params["w_conv"], params["conv_b"],
                 params["bn_gamma"], params["bn_beta"],
                 params["w_ti"], params["img_b"],
                 params["w_comb"], params["w_hh_t"], params["head_w"])
    in_specs = [full_spec(a.shape) for a in in_arrays]
    out_specs = (full_spec((TB, HID)), full_spec((B, HID)))
    out_shape = (jax.ShapeDtypeStruct((TB, HID), jnp.float32),
                 jax.ShapeDtypeStruct((B, HID), jnp.float32))

    out_flat, hx_new = pl.pallas_call(
        _net_syn_user_fused_kernel,
        out_shape=out_shape,
        grid_spec=pltpu.PrefetchScalarGridSpec(
            num_scalar_prefetch=0,
            grid=(1,),                                       # whole forward = one grid step
            in_specs=in_specs,
            out_specs=out_specs,
            scratch_shapes=[pltpu.VMEM((L * TB, 2 * EMB), jnp.float32)],   # conv result
        ),
        compiler_params=pltpu.CompilerParams(
            dimension_semantics=("arbitrary",),
            vmem_limit_bytes=32 * 1024 * 1024),              # ~5.5 MiB used; v7x-safe
    )(*in_arrays)
    return out_flat.reshape(T, B, HID), hx_new


def net_syn_user_forward(params, img_input, txt_input, hx):
    """One NetSynUser.forward call: returns (head_output, new_hx)."""
    out_seq, hx_new = net_syn_user_forward_steps(
        params, img_input[None, ...], txt_input[None, ...], hx)
    return out_seq[0], hx_new


if __name__ == "__main__":
    key = jax.random.PRNGKey(0)
    pkey, ikey, tkey = jax.random.split(key, 3)

    num_emb = 50   # vocabulary size
    B, L, T = 2, 8, 4

    params = fuse_params(init_params(num_emb, pkey))
    img_seq = jax.random.normal(ikey, (T, B, HID), jnp.float32)
    txt_seq = jax.random.randint(tkey, (T, B, L), 0, num_emb, jnp.int32)
    hx0 = jnp.zeros((B, HID), jnp.float32)          # init_hid(batch_size)

    # Single step == one NetSynUser.forward call.
    out1, hx1 = net_syn_user_forward(params, img_seq[0], txt_seq[0], hx0)
    # T fused recurrent steps in one pallas_call (weights DMA'd to VMEM once).
    out_seq, hx_T = net_syn_user_forward_steps(params, img_seq, txt_seq, hx0)
    jax.block_until_ready((out1, hx1, out_seq, hx_T))

    assert out1.shape == (B, HID) and hx1.shape == (B, HID)
    assert out_seq.shape == (T, B, HID) and hx_T.shape == (B, HID)
    assert bool(jnp.all(jnp.isfinite(out_seq))) and bool(jnp.all(jnp.isfinite(hx_T)))
    assert bool(jnp.allclose(out1, out_seq[0], atol=1e-3, rtol=1e-3))
    print("KERNEL_OK")
</pallas_src>

<mosaic_0001>
module attributes {stable_mosaic.version = 11 : i64} {
  func.func @_net_syn_user_fused_kernel(%arg0: i32, %arg1: memref<16x512xbf16, #tpu.memory_space<vmem>>, %arg2: memref<2x256xf32, #tpu.memory_space<vmem>>, %arg3: memref<2x256xf32, #tpu.memory_space<vmem>>, %arg4: memref<2x2xf32, #tpu.memory_space<vmem>>, %arg5: memref<512x1024xbf16, #tpu.memory_space<vmem>>, %arg6: memref<1x512xf32, #tpu.memory_space<vmem>>, %arg7: memref<1x512xf32, #tpu.memory_space<vmem>>, %arg8: memref<1x512xf32, #tpu.memory_space<vmem>>, %arg9: memref<768x256xbf16, #tpu.memory_space<vmem>>, %arg10: memref<1x256xf32, #tpu.memory_space<vmem>>, %arg11: memref<256x768xbf16, #tpu.memory_space<vmem>>, %arg12: memref<256x768xbf16, #tpu.memory_space<vmem>>, %arg13: memref<256x256xbf16, #tpu.memory_space<vmem>>, %arg14: memref<2x256xf32, #tpu.memory_space<vmem>>, %arg15: memref<2x256xf32, #tpu.memory_space<vmem>>, %arg16: memref<16x1024xf32, #tpu.memory_space<vmem>>) attributes {dimension_semantics = [#tpu.dimension_semantics<arbitrary>], iteration_bounds = array<i64: 1>, scalar_prefetch = 0 : i64, scratch_operands = 1 : i64, tpu.core_type = #tpu.core_type<tc>, window_params = [{pipeline_mode = #tpu.pipeline_mode<synchronous>, transform_indices = @transform_0, window_bounds = array<i64: 16, 512>}, {pipeline_mode = #tpu.pipeline_mode<synchronous>, transform_indices = @transform_1, window_bounds = array<i64: 2, 256>}, {pipeline_mode = #tpu.pipeline_mode<synchronous>, transform_indices = @transform_2, window_bounds = array<i64: 2, 256>}, {pipeline_mode = #tpu.pipeline_mode<synchronous>, transform_indices = @transform_3, window_bounds = array<i64: 2, 2>}, {pipeline_mode = #tpu.pipeline_mode<synchronous>, transform_indices = @transform_4, window_bounds = array<i64: 512, 1024>}, {pipeline_mode = #tpu.pipeline_mode<synchronous>, transform_indices = @transform_5, window_bounds = array<i64: 1, 512>}, {pipeline_mode = #tpu.pipeline_mode<synchronous>, transform_indices = @transform_6, window_bounds = array<i64: 1, 512>}, {pipeline_mode = #tpu.pipeline_mode<synchronous>, transform_indices = @transform_7, window_bounds = array<i64: 1, 512>}, {pipeline_mode = #tpu.pipeline_mode<synchronous>, transform_indices = @transform_8, window_bounds = array<i64: 768, 256>}, {pipeline_mode = #tpu.pipeline_mode<synchronous>, transform_indices = @transform_9, window_bounds = array<i64: 1, 256>}, {pipeline_mode = #tpu.pipeline_mode<synchronous>, transform_indices = @transform_10, window_bounds = array<i64: 256, 768>}, {pipeline_mode = #tpu.pipeline_mode<synchronous>, transform_indices = @transform_11, window_bounds = array<i64: 256, 768>}, {pipeline_mode = #tpu.pipeline_mode<synchronous>, transform_indices = @transform_12, window_bounds = array<i64: 256, 256>}, {pipeline_mode = #tpu.pipeline_mode<synchronous>, transform_indices = @transform_13, window_bounds = array<i64: 2, 256>}, {pipeline_mode = #tpu.pipeline_mode<synchronous>, transform_indices = @transform_14, window_bounds = array<i64: 2, 256>}]} {
    %c0 = arith.constant 0 : index
    %c0_0 = arith.constant 0 : index
    %0 = vector.load %arg1[%c0, %c0_0] : memref<16x512xbf16, #tpu.memory_space<vmem>>, vector<16x512xbf16>
    %c0_1 = arith.constant 0 : index
    %c0_2 = arith.constant 0 : index
    %1 = vector.load %arg5[%c0_1, %c0_2] : memref<512x1024xbf16, #tpu.memory_space<vmem>>, vector<512x1024xbf16>
    %cst = arith.constant dense<0.000000e+00> : vector<16x1024xf32>
    %2 = tpu.matmul %0, %1, %cst {dimension_numbers = #tpu.dot_dimension_numbers<[1], [0], [0], [1], [0, 0, 1, 1], [], []>} : vector<16x512xbf16>, vector<512x1024xbf16>, vector<16x1024xf32> -> vector<16x1024xf32>
    %c0_3 = arith.constant 0 : index
    %c0_4 = arith.constant 0 : index
    %3 = vector.load %arg16[%c0_3, %c0_4] : memref<16x1024xf32, #tpu.memory_space<vmem>>, vector<16x1024xf32>
    tpu.vector_store %arg16[%c0_3, %c0_4], %2 {strides = array<i32>} : memref<16x1024xf32, #tpu.memory_space<vmem>>, vector<16x1024xf32>,
    %c0_5 = arith.constant 0 : index
    %c0_6 = arith.constant 0 : index
    %4 = vector.load %arg16[%c0_5, %c0_6] : memref<16x1024xf32, #tpu.memory_space<vmem>>, vector<2x512xf32>
    %c2 = arith.constant 2 : index
    %c512 = arith.constant 512 : index
    %5 = vector.load %arg16[%c2, %c512] : memref<16x1024xf32, #tpu.memory_space<vmem>>, vector<2x512xf32>
    %6 = arith.addf %4, %5 : vector<2x512xf32>
    %c2_7 = arith.constant 2 : index
    %c0_8 = arith.constant 0 : index
    %7 = vector.load %arg16[%c2_7, %c0_8] : memref<16x1024xf32, #tpu.memory_space<vmem>>, vector<2x512xf32>
    %c4 = arith.constant 4 : index
    %c512_9 = arith.constant 512 : index
    %8 = vector.load %arg16[%c4, %c512_9] : memref<16x1024xf32, #tpu.memory_space<vmem>>, vector<2x512xf32>
    %9 = arith.addf %7, %8 : vector<2x512xf32>
    %10 = arith.maximumf %6, %9 : vector<2x512xf32>
    %c4_10 = arith.constant 4 : index
    %c0_11 = arith.constant 0 : index
    %11 = vector.load %arg16[%c4_10, %c0_11] : memref<16x1024xf32, #tpu.memory_space<vmem>>, vector<2x512xf32>
    %c6 = arith.constant 6 : index
    %c512_12 = arith.constant 512 : index
    %12 = vector.load %arg16[%c6, %c512_12] : memref<16x1024xf32, #tpu.memory_space<vmem>>, vector<2x512xf32>
    %13 = arith.addf %11, %12 : vector<2x512xf32>
    %14 = arith.maximumf %10, %13 : vector<2x512xf32>
    %c6_13 = arith.constant 6 : index
    %c0_14 = arith.constant 0 : index
    %15 = vector.load %arg16[%c6_13, %c0_14] : memref<16x1024xf32, #tpu.memory_space<vmem>>, vector<2x512xf32>
    %c8 = arith.constant 8 : index
    %c512_15 = arith.constant 512 : index
    %16 = vector.load %arg16[%c8, %c512_15] : memref<16x1024xf32, #tpu.memory_space<vmem>>, vector<2x512xf32>
    %17 = arith.addf %15, %16 : vector<2x512xf32>
    %18 = arith.maximumf %14, %17 : vector<2x512xf32>
    %c8_16 = arith.constant 8 : index
    %c0_17 = arith.constant 0 : index
    %19 = vector.load %arg16[%c8_16, %c0_17] : memref<16x1024xf32, #tpu.memory_space<vmem>>, vector<2x512xf32>
    %c10 = arith.constant 10 : index
    %c512_18 = arith.constant 512 : index
    %20 = vector.load %arg16[%c10, %c512_18] : memref<16x1024xf32, #tpu.memory_space<vmem>>, vector<2x512xf32>
    %21 = arith.addf %19, %20 : vector<2x512xf32>
    %22 = arith.maximumf %18, %21 : vector<2x512xf32>
    %c10_19 = arith.constant 10 : index
    %c0_20 = arith.constant 0 : index
    %23 = vector.load %arg16[%c10_19, %c0_20] : memref<16x1024xf32, #tpu.memory_space<vmem>>, vector<2x512xf32>
    %c12 = arith.constant 12 : index
    %c512_21 = arith.constant 512 : index
    %24 = vector.load %arg16[%c12, %c512_21] : memref<16x1024xf32, #tpu.memory_space<vmem>>, vector<2x512xf32>
    %25 = arith.addf %23, %24 : vector<2x512xf32>
    %26 = arith.maximumf %22, %25 : vector<2x512xf32>
    %c12_22 = arith.constant 12 : index
    %c0_23 = arith.constant 0 : index
    %27 = vector.load %arg16[%c12_22, %c0_23] : memref<16x1024xf32, #tpu.memory_space<vmem>>, vector<2x512xf32>
    %c14 = arith.constant 14 : index
    %c512_24 = arith.constant 512 : index
    %28 = vector.load %arg16[%c14, %c512_24] : memref<16x1024xf32, #tpu.memory_space<vmem>>, vector<2x512xf32>
    %29 = arith.addf %27, %28 : vector<2x512xf32>
    %30 = arith.maximumf %26, %29 : vector<2x512xf32>
    %c0_25 = arith.constant 0 : index
    %c0_26 = arith.constant 0 : index
    %31 = vector.load %arg6[%c0_25, %c0_26] : memref<1x512xf32, #tpu.memory_space<vmem>>, vector<1x512xf32>
    %32 = vector.broadcast %31 : vector<1x512xf32> to vector<2x512xf32>
    %33 = arith.addf %30, %32 : vector<2x512xf32>
    %c0_27 = arith.constant 0 : index
    %c0_28 = arith.constant 0 : index
    %34 = vector.load %arg4[%c0_27, %c0_28] : memref<2x2xf32, #tpu.memory_space<vmem>>, vector<2x2xf32>
    %cst_29 = arith.constant dense<0.000000e+00> : vector<2x512xf32>
    %35 = tpu.matmul %34, %33, %cst_29 {dimension_numbers = #tpu.dot_dimension_numbers<[1], [0], [0], [1], [0, 0, 1, 1], [], []>} : vector<2x2xf32>, vector<2x512xf32>, vector<2x512xf32> -> vector<2x512xf32>
    %36 = arith.subf %33, %35 : vector<2x512xf32>
    %c0_30 = arith.constant 0 : index
    %c0_31 = arith.constant 0 : index
    %37 = vector.load %arg4[%c0_30, %c0_31] : memref<2x2xf32, #tpu.memory_space<vmem>>, vector<2x2xf32>
    %38 = arith.mulf %36, %36 : vector<2x512xf32>
    %cst_32 = arith.constant dense<0.000000e+00> : vector<2x512xf32>
    %39 = tpu.matmul %37, %38, %cst_32 {dimension_numbers = #tpu.dot_dimension_numbers<[1], [0], [0], [1], [0, 0, 1, 1], [], []>} : vector<2x2xf32>, vector<2x512xf32>, vector<2x512xf32> -> vector<2x512xf32>
    %cst_33 = arith.constant 9.99999974E-6 : f32
    %40 = vector.broadcast %cst_33 : f32 to vector<2x512xf32>
    %41 = arith.addf %39, %40 : vector<2x512xf32>
    %42 = math.rsqrt %41 : vector<2x512xf32>
    %43 = arith.mulf %36, %42 : vector<2x512xf32>
    %c0_34 = arith.constant 0 : index
    %c0_35 = arith.constant 0 : index
    %44 = vector.load %arg7[%c0_34, %c0_35] : memref<1x512xf32, #tpu.memory_space<vmem>>, vector<1x512xf32>
    %45 = vector.broadcast %44 : vector<1x512xf32> to vector<2x512xf32>
    %46 = arith.mulf %43, %45 : vector<2x512xf32>
    %c0_36 = arith.constant 0 : index
    %c0_37 = arith.constant 0 : index
    %47 = vector.load %arg8[%c0_36, %c0_37] : memref<1x512xf32, #tpu.memory_space<vmem>>, vector<1x512xf32>
    %48 = vector.broadcast %47 : vector<1x512xf32> to vector<2x512xf32>
    %49 = arith.addf %46, %48 : vector<2x512xf32>
    %c0_38 = arith.constant 0 : index
    %c0_39 = arith.constant 0 : index
    %50 = vector.load %arg2[%c0_38, %c0_39] : memref<2x256xf32, #tpu.memory_space<vmem>>, vector<2x256xf32>
    %51 = tpu.concatenate %49, %50 in 1 : vector<2x512xf32>, vector<2x256xf32> -> vector<2x768xf32>
    %52 = arith.truncf %51 : vector<2x768xf32> to vector<2x768xbf16>
    %c0_40 = arith.constant 0 : index
    %c0_41 = arith.constant 0 : index
    %53 = vector.load %arg9[%c0_40, %c0_41] : memref<768x256xbf16, #tpu.memory_space<vmem>>, vector<768x256xbf16>
    %cst_42 = arith.constant dense<0.000000e+00> : vector<2x256xf32>
    %54 = tpu.matmul %52, %53, %cst_42 {dimension_numbers = #tpu.dot_dimension_numbers<[1], [0], [0], [1], [0, 0, 1, 1], [], []>} : vector<2x768xbf16>, vector<768x256xbf16>, vector<2x256xf32> -> vector<2x256xf32>
    %c0_43 = arith.constant 0 : index
    %c0_44 = arith.constant 0 : index
    %55 = vector.load %arg10[%c0_43, %c0_44] : memref<1x256xf32, #tpu.memory_space<vmem>>, vector<1x256xf32>
    %56 = vector.broadcast %55 : vector<1x256xf32> to vector<2x256xf32>
    %57 = arith.addf %54, %56 : vector<2x256xf32>
    %58 = arith.truncf %57 : vector<2x256xf32> to vector<2x256xbf16>
    %c0_45 = arith.constant 0 : index
    %c0_46 = arith.constant 0 : index
    %59 = vector.load %arg11[%c0_45, %c0_46] : memref<256x768xbf16, #tpu.memory_space<vmem>>, vector<256x768xbf16>
    %cst_47 = arith.constant dense<0.000000e+00> : vector<2x768xf32>
    %60 = tpu.matmul %58, %59, %cst_47 {dimension_numbers = #tpu.dot_dimension_numbers<[1], [0], [0], [1], [0, 0, 1, 1], [], []>} : vector<2x256xbf16>, vector<256x768xbf16>, vector<2x768xf32> -> vector<2x768xf32>
    %c0_48 = arith.constant 0 : index
    %c0_49 = arith.constant 0 : index
    %61 = vector.load %arg3[%c0_48, %c0_49] : memref<2x256xf32, #tpu.memory_space<vmem>>, vector<2x256xf32>
    %62 = arith.truncf %61 : vector<2x256xf32> to vector<2x256xbf16>
    %c0_50 = arith.constant 0 : index
    %c0_51 = arith.constant 0 : index
    %63 = vector.load %arg12[%c0_50, %c0_51] : memref<256x768xbf16, #tpu.memory_space<vmem>>, vector<256x768xbf16>
    %cst_52 = arith.constant dense<0.000000e+00> : vector<2x768xf32>
    %64 = tpu.matmul %62, %63, %cst_52 {dimension_numbers = #tpu.dot_dimension_numbers<[1], [0], [0], [1], [0, 0, 1, 1], [], []>} : vector<2x256xbf16>, vector<256x768xbf16>, vector<2x768xf32> -> vector<2x768xf32>
    %65 = vector.extract_strided_slice %60 {offsets = [0, 0], sizes = [2, 256], strides = [1, 1]} : vector<2x768xf32> to vector<2x256xf32>
    %66 = vector.extract_strided_slice %64 {offsets = [0, 0], sizes = [2, 256], strides = [1, 1]} : vector<2x768xf32> to vector<2x256xf32>
    %67 = arith.addf %65, %66 : vector<2x256xf32>
    %68 = arith.negf %67 : vector<2x256xf32>
    %69 = math.exp %68 : vector<2x256xf32>
    %cst_53 = arith.constant 1.000000e+00 : f32
    %70 = vector.broadcast %cst_53 : f32 to vector<2x256xf32>
    %71 = arith.addf %70, %69 : vector<2x256xf32>
    %72 = arith.divf %70, %71 : vector<2x256xf32>
    %73 = vector.extract_strided_slice %60 {offsets = [0, 256], sizes = [2, 256], strides = [1, 1]} : vector<2x768xf32> to vector<2x256xf32>
    %74 = vector.extract_strided_slice %64 {offsets = [0, 256], sizes = [2, 256], strides = [1, 1]} : vector<2x768xf32> to vector<2x256xf32>
    %75 = arith.addf %73, %74 : vector<2x256xf32>
    %76 = arith.negf %75 : vector<2x256xf32>
    %77 = math.exp %76 : vector<2x256xf32>
    %cst_54 = arith.constant 1.000000e+00 : f32
    %78 = vector.broadcast %cst_54 : f32 to vector<2x256xf32>
    %79 = arith.addf %78, %77 : vector<2x256xf32>
    %80 = arith.divf %78, %79 : vector<2x256xf32>
    %81 = vector.extract_strided_slice %60 {offsets = [0, 512], sizes = [2, 256], strides = [1, 1]} : vector<2x768xf32> to vector<2x256xf32>
    %82 = vector.extract_strided_slice %64 {offsets = [0, 512], sizes = [2, 256], strides = [1, 1]} : vector<2x768xf32> to vector<2x256xf32>
    %83 = arith.mulf %72, %82 : vector<2x256xf32>
    %84 = arith.addf %81, %83 : vector<2x256xf32>
    %85 = math.tanh %84 : vector<2x256xf32>
    %cst_55 = arith.constant 1.000000e+00 : f32
    %86 = vector.broadcast %cst_55 : f32 to vector<2x256xf32>
    %87 = arith.subf %86, %80 : vector<2x256xf32>
    %88 = arith.mulf %87, %85 : vector<2x256xf32>
    %89 = arith.mulf %80, %61 : vector<2x256xf32>
    %90 = arith.addf %88, %89 : vector<2x256xf32>
    %91 = arith.truncf %90 : vector<2x256xf32> to vector<2x256xbf16>
    %c0_56 = arith.constant 0 : index
    %c0_57 = arith.constant 0 : index
    %92 = vector.load %arg13[%c0_56, %c0_57] : memref<256x256xbf16, #tpu.memory_space<vmem>>, vector<256x256xbf16>
    %cst_58 = arith.constant dense<0.000000e+00> : vector<2x256xf32>
    %93 = tpu.matmul %91, %92, %cst_58 {dimension_numbers = #tpu.dot_dimension_numbers<[1], [0], [0], [1], [0, 0, 1, 1], [], []>} : vector<2x256xbf16>, vector<256x256xbf16>, vector<2x256xf32> -> vector<2x256xf32>
    %c0_59 = arith.constant 0 : index
    %c0_60 = arith.constant 0 : index
    %94 = vector.load %arg14[%c0_59, %c0_60] : memref<2x256xf32, #tpu.memory_space<vmem>>, vector<2x256xf32>
    tpu.vector_store %arg14[%c0_59, %c0_60], %93 {strides = array<i32>} : memref<2x256xf32, #tpu.memory_space<vmem>>, vector<2x256xf32>,
    %c0_61 = arith.constant 0 : index
    %c0_62 = arith.constant 0 : index
    %95 = vector.load %arg15[%c0_61, %c0_62] : memref<2x256xf32, #tpu.memory_space<vmem>>, vector<2x256xf32>
    tpu.vector_store %arg15[%c0_61, %c0_62], %90 {strides = array<i32>} : memref<2x256xf32, #tpu.memory_space<vmem>>, vector<2x256xf32>,
    return
  }
  func.func @transform_0(%arg0: i32) -> (i32, i32) {
    %c0_i32 = arith.constant 0 : i32
    %c0_i32_0 = arith.constant 0 : i32
    %c0_i32_1 = arith.constant 0 : i32
    return %c0_i32, %c0_i32_0 : i32, i32
  }
  func.func @transform_1(%arg0: i32) -> (i32, i32) {
    %c0_i32 = arith.constant 0 : i32
    %c0_i32_0 = arith.constant 0 : i32
    %c0_i32_1 = arith.constant 0 : i32
    return %c0_i32, %c0_i32_0 : i32, i32
  }
  func.func @transform_2(%arg0: i32) -> (i32, i32) {
    %c0_i32 = arith.constant 0 : i32
    %c0_i32_0 = arith.constant 0 : i32
    %c0_i32_1 = arith.constant 0 : i32
    return %c0_i32, %c0_i32_0 : i32, i32
  }
  func.func @transform_3(%arg0: i32) -> (i32, i32) {
    %c0_i32 = arith.constant 0 : i32
    %c0_i32_0 = arith.constant 0 : i32
    %c0_i32_1 = arith.constant 0 : i32
    return %c0_i32, %c0_i32_0 : i32, i32
  }
  func.func @transform_4(%arg0: i32) -> (i32, i32) {
    %c0_i32 = arith.constant 0 : i32
    %c0_i32_0 = arith.constant 0 : i32
    %c0_i32_1 = arith.constant 0 : i32
    return %c0_i32, %c0_i32_0 : i32, i32
  }
  func.func @transform_5(%arg0: i32) -> (i32, i32) {
    %c0_i32 = arith.constant 0 : i32
    %c0_i32_0 = arith.constant 0 : i32
    %c0_i32_1 = arith.constant 0 : i32
    return %c0_i32, %c0_i32_0 : i32, i32
  }
  func.func @transform_6(%arg0: i32) -> (i32, i32) {
    %c0_i32 = arith.constant 0 : i32
    %c0_i32_0 = arith.constant 0 : i32
    %c0_i32_1 = arith.constant 0 : i32
    return %c0_i32, %c0_i32_0 : i32, i32
  }
  func.func @transform_7(%arg0: i32) -> (i32, i32) {
    %c0_i32 = arith.constant 0 : i32
    %c0_i32_0 = arith.constant 0 : i32
    %c0_i32_1 = arith.constant 0 : i32
    return %c0_i32, %c0_i32_0 : i32, i32
  }
  func.func @transform_8(%arg0: i32) -> (i32, i32) {
    %c0_i32 = arith.constant 0 : i32
    %c0_i32_0 = arith.constant 0 : i32
    %c0_i32_1 = arith.constant 0 : i32
    return %c0_i32, %c0_i32_0 : i32, i32
  }
  func.func @transform_9(%arg0: i32) -> (i32, i32) {
    %c0_i32 = arith.constant 0 : i32
    %c0_i32_0 = arith.constant 0 : i32
    %c0_i32_1 = arith.constant 0 : i32
    return %c0_i32, %c0_i32_0 : i32, i32
  }
  func.func @transform_10(%arg0: i32) -> (i32, i32) {
    %c0_i32 = arith.constant 0 : i32
    %c0_i32_0 = arith.constant 0 : i32
    %c0_i32_1 = arith.constant 0 : i32
    return %c0_i32, %c0_i32_0 : i32, i32
  }
  func.func @transform_11(%arg0: i32) -> (i32, i32) {
    %c0_i32 = arith.constant 0 : i32
    %c0_i32_0 = arith.constant 0 : i32
    %c0_i32_1 = arith.constant 0 : i32
    return %c0_i32, %c0_i32_0 : i32, i32
  }
  func.func @transform_12(%arg0: i32) -> (i32, i32) {
    %c0_i32 = arith.constant 0 : i32
    %c0_i32_0 = arith.constant 0 : i32
    %c0_i32_1 = arith.constant 0 : i32
    return %c0_i32, %c0_i32_0 : i32, i32
  }
  func.func @transform_13(%arg0: i32) -> (i32, i32) {
    %c0_i32 = arith.constant 0 : i32
    %c0_i32_0 = arith.constant 0 : i32
    %c0_i32_1 = arith.constant 0 : i32
    return %c0_i32, %c0_i32_0 : i32, i32
  }
  func.func @transform_14(%arg0: i32) -> (i32, i32) {
    %c0_i32 = arith.constant 0 : i32
    %c0_i32_0 = arith.constant 0 : i32
    %c0_i32_1 = arith.constant 0 : i32
    return %c0_i32, %c0_i32_0 : i32, i32
  }
}

</mosaic_0001>

<llo_original>
// kernel: net_syn_user_forward_steps.1
$region0: #{net_syn_user_forward_steps.1}
  #allocation0 [shape = 'u32[]', space=smem, size = 0x4, offset = 0x4, fixed_abs, tag = 'smem constant byte address 0x4 - core index']
  #allocation1 [shape = 'u32[72,128]{1,0:T(1,128)}', space=vmem, size = 0x9000, scoped, tag = 'internal scratch']
  #allocation2 [shape = 'f32[16,1024]{1,0:T(8,128)}', space=vmem, size = 0x10000, scoped, tag = 'scratch operand']
  %s0 = inlined_call_operand.vmem [shape: bf16[16,512], index: 0, kind: input, shape index: {}]
  %s1 = inlined_call_operand.vmem [shape: f32[2,256], index: 1, kind: input, shape index: {}]
  %s2 = inlined_call_operand.vmem [shape: f32[2,256], index: 2, kind: input, shape index: {}]
  %s3 = inlined_call_operand.vmem [shape: f32[2,2], index: 3, kind: input, shape index: {}]
  %s4 = inlined_call_operand.hbm [shape: bf16[512,1024], index: 4, kind: input, shape index: {}]
  %s5 = inlined_call_operand.vmem [shape: f32[1,512], index: 5, kind: input, shape index: {}]
  %s6 = inlined_call_operand.vmem [shape: f32[1,512], index: 6, kind: input, shape index: {}]
  %s7 = inlined_call_operand.vmem [shape: f32[1,512], index: 7, kind: input, shape index: {}]
  %s8 = inlined_call_operand.hbm [shape: bf16[768,256], index: 8, kind: input, shape index: {}]
  %s9 = inlined_call_operand.vmem [shape: f32[1,256], index: 9, kind: input, shape index: {}]
  %s10 = inlined_call_operand.hbm [shape: bf16[256,768], index: 10, kind: input, shape index: {}]
  %s11 = inlined_call_operand.hbm [shape: bf16[256,768], index: 11, kind: input, shape index: {}]
  %s12 = inlined_call_operand.vmem [shape: bf16[256,256], index: 12, kind: input, shape index: {}]
  %s13 = inlined_call_operand.hbm [shape: f32[2,256], index: 13, kind: output, shape index: {0}]
  %s14 = inlined_call_operand.hbm [shape: f32[2,256], index: 14, kind: output, shape index: {1}]
  %15 = xla_tuple %s13, %s14
  %s16 = sld [smem:[#allocation0]]
  $region86: #{net_syn_user_forward_steps.1} parent=0
    _
  %s18 = ssub.s32 1, %s16
  %s19 = scalar_select 0, %s18, %s16
  $region1: #{net_syn_user_forward_steps.1} parent=0
    #allocation3 [shape = 'u8[1048576]{0}', space=vmem, size = 0x100000, scoped, tag = 'input window, operand 4, single buffered']
    #allocation4 [shape = 's32[1]{0}', space=sflag, size = 0x4, scoped, tag = 'scoped memory for net_syn_user_forward_steps.1']
    #allocation5 [shape = 's32[1]{0}', space=sflag, size = 0x4, scoped, tag = 'scoped memory for net_syn_user_forward_steps.1']
    #allocation6 [shape = 'u8[393216]{0}', space=vmem, size = 0x60000, scoped, tag = 'input window, operand 8, single buffered']
    #allocation7 [shape = 's32[1]{0}', space=sflag, size = 0x4, scoped, tag = 'scoped memory for net_syn_user_forward_steps.1']
    #allocation8 [shape = 'u8[393216]{0}', space=vmem, size = 0x60000, scoped, tag = 'input window, operand 10, single buffered']
    #allocation9 [shape = 'u8[393216]{0}', space=vmem, size = 0x60000, scoped, tag = 'input window, operand 11, single buffered']
    #allocation10 [shape = 's32[1]{0}', space=sflag, size = 0x4, scoped, tag = 'scoped memory for net_syn_user_forward_steps.1']
    #allocation11 [shape = 'u8[2048]{0}', space=vmem, size = 0x800, scoped, tag = 'output window, operand 0, single buffered']
    #allocation12 [shape = 'u8[2048]{0}', space=vmem, size = 0x800, scoped, tag = 'output window, operand 1, single buffered']
    #allocation13 [shape = 's32[1]{0}', space=sflag, size = 0x4, scoped, tag = 'scoped memory for net_syn_user_forward_steps.1']
    %20 = vsyncpa [#allocation4], 0
    %21 = vsyncpa [#allocation7], 0
    %22 = vsyncpa [#allocation10], 0
    %23 = vsyncpa [#allocation5], 0
    %24 = vsyncpa [#allocation13], 0
    // Predicated region
    $region2: #{net_syn_user_forward_steps.1} parent=1 // pred_check
      _
    $region3: #{net_syn_user_forward_steps.1} parent=1 // pred_check_branch
      %26 = sbr.rel (0) target = $region5
    $region4: #{net_syn_user_forward_steps.1} parent=1 // pred_region
      _
    $region5: #{net_syn_user_forward_steps.1} parent=1 // pred_fallthru
      _
    // Predicated region
    $region6: #{net_syn_user_forward_steps.1} parent=1 // pred_check
      _
    $region7: #{net_syn_user_forward_steps.1} parent=1 // pred_check_branch
      %28 = sbr.rel (0) target = $region9
    $region8: #{net_syn_user_forward_steps.1} parent=1 // pred_region
      _
    $region9: #{net_syn_user_forward_steps.1} parent=1 // pred_fallthru
      _
    // Predicated region
    $region10: #{net_syn_user_forward_steps.1} parent=1 // pred_check
      _
    $region11: #{net_syn_user_forward_steps.1} parent=1 // pred_check_branch
      %30 = sbr.rel (0) target = $region13
    $region12: #{net_syn_user_forward_steps.1} parent=1 // pred_region
      _
    $region13: #{net_syn_user_forward_steps.1} parent=1 // pred_fallthru
      _
    // Predicated region
    $region14: #{net_syn_user_forward_steps.1} parent=1 // pred_check
      _
    $region15: #{net_syn_user_forward_steps.1} parent=1 // pred_check_branch
      %32 = sbr.rel (0) target = $region17
    $region16: #{net_syn_user_forward_steps.1} parent=1 // pred_region
      _
    $region17: #{net_syn_user_forward_steps.1} parent=1 // pred_fallthru
      _
    // Predicated region
    $region18: #{net_syn_user_forward_steps.1} parent=1 // pred_check
      _
    $region19: #{net_syn_user_forward_steps.1} parent=1 // pred_check_branch
      %34 = sbr.rel (0) target = $region21
    $region20: #{net_syn_user_forward_steps.1} parent=1 // pred_region
      %36 = vsyncadd [#allocation4], 0
      %s37 = sshll.u32 %s4, 4
      %s38 = int_to_ptr.hbm [resolvable:$true] %s37
      %s39 = sshll.u32 [#allocation3], 4
      %s40 = int_to_ptr.vmem [resolvable:$true] %s39
      %45 = dma.hbm_to_vmem [thread:$0]  %s38, 32768, %s40, [#allocation4], 512, 512, 32
    $region21: #{net_syn_user_forward_steps.1} parent=1 // pred_fallthru
      _
    // Predicated region
    $region22: #{net_syn_user_forward_steps.1} parent=1 // pred_check
      _
    $region23: #{net_syn_user_forward_steps.1} parent=1 // pred_check_branch
      %47 = sbr.rel (0) target = $region25
    $region24: #{net_syn_user_forward_steps.1} parent=1 // pred_region
      _
    $region25: #{net_syn_user_forward_steps.1} parent=1 // pred_fallthru
      _
    // Predicated region
    $region26: #{net_syn_user_forward_steps.1} parent=1 // pred_check
      _
    $region27: #{net_syn_user_forward_steps.1} parent=1 // pred_check_branch
      %49 = sbr.rel (0) target = $region29
    $region28: #{net_syn_user_forward_steps.1} parent=1 // pred_region
      _
    $region29: #{net_syn_user_forward_steps.1} parent=1 // pred_fallthru
      _
    // Predicated region
    $region30: #{net_syn_user_forward_steps.1} parent=1 // pred_check
      _
    $region31: #{net_syn_user_forward_steps.1} parent=1 // pred_check_branch
      %51 = sbr.rel (0) target = $region33
    $region32: #{net_syn_user_forward_steps.1} parent=1 // pred_region
      _
    $region33: #{net_syn_user_forward_steps.1} parent=1 // pred_fallthru
      _
    // Predicated region
    $region34: #{net_syn_user_forward_steps.1} parent=1 // pred_check
      _
    $region35: #{net_syn_user_forward_steps.1} parent=1 // pred_check_branch
      %53 = sbr.rel (0) target = $region37
    $region36: #{net_syn_user_forward_steps.1} parent=1 // pred_region
      %55 = vsyncadd [#allocation7], 0
      %s56 = sshll.u32 %s8, 4
      %s57 = int_to_ptr.hbm [resolvable:$true] %s56
      %s58 = sshll.u32 [#allocation6], 4
      %s59 = int_to_ptr.vmem [resolvable:$true] %s58
      %64 = dma.hbm_to_vmem [thread:$0]  %s57, 12288, %s59, [#allocation7], 128, 128, 8
    $region37: #{net_syn_user_forward_steps.1} parent=1 // pred_fallthru
      _
    // Predicated region
    $region38: #{net_syn_user_forward_steps.1} parent=1 // pred_check
      _
    $region39: #{net_syn_user_forward_steps.1} parent=1 // pred_check_branch
      %66 = sbr.rel (0) target = $region41
    $region40: #{net_syn_user_forward_steps.1} parent=1 // pred_region
      _
    $region41: #{net_syn_user_forward_steps.1} parent=1 // pred_fallthru
      _
    // Predicated region
    $region42: #{net_syn_user_forward_steps.1} parent=1 // pred_check
      _
    $region43: #{net_syn_user_forward_steps.1} parent=1 // pred_check_branch
      %68 = sbr.rel (0) target = $region45
    $region44: #{net_syn_user_forward_steps.1} parent=1 // pred_region
      %70 = vsyncadd [#allocation7], 0
      %s71 = sshll.u32 %s10, 4
      %s72 = int_to_ptr.hbm [resolvable:$true] %s71
      %s73 = sshll.u32 [#allocation8], 4
      %s74 = int_to_ptr.vmem [resolvable:$true] %s73
      %79 = dma.hbm_to_vmem [thread:$0]  %s72, 12288, %s74, [#allocation7], 384, 384, 24
    $region45: #{net_syn_user_forward_steps.1} parent=1 // pred_fallthru
      _
    // Predicated region
    $region46: #{net_syn_user_forward_steps.1} parent=1 // pred_check
      _
    $region47: #{net_syn_user_forward_steps.1} parent=1 // pred_check_branch
      %81 = sbr.rel (0) target = $region49
    $region48: #{net_syn_user_forward_steps.1} parent=1 // pred_region
      %83 = vsyncadd [#allocation10], 0
      %s84 = sshll.u32 %s11, 4
      %s85 = int_to_ptr.hbm [resolvable:$true] %s84
      %s86 = sshll.u32 [#allocation9], 4
      %s87 = int_to_ptr.vmem [resolvable:$true] %s86
      %92 = dma.hbm_to_vmem [thread:$0]  %s85, 12288, %s87, [#allocation10], 384, 384, 24
    $region49: #{net_syn_user_forward_steps.1} parent=1 // pred_fallthru
      _
    // Predicated region
    $region50: #{net_syn_user_forward_steps.1} parent=1 // pred_check
      _
    $region51: #{net_syn_user_forward_steps.1} parent=1 // pred_check_branch
      %94 = sbr.rel (0) target = $region53
    $region52: #{net_syn_user_forward_steps.1} parent=1 // pred_region
      _
    $region53: #{net_syn_user_forward_steps.1} parent=1 // pred_fallthru
      _
    // Predicated region
    $region54: #{net_syn_user_forward_steps.1} parent=1 // pred_check
      _
    $region55: #{net_syn_user_forward_steps.1} parent=1 // pred_check_branch
      %96 = sbr.rel (0) target = $region57
    $region56: #{net_syn_user_forward_steps.1} parent=1 // pred_region
      %98 = dma.done [#allocation4], 32768
    $region57: #{net_syn_user_forward_steps.1} parent=1 // pred_fallthru
      _
    // Predicated region
    $region58: #{net_syn_user_forward_steps.1} parent=1 // pred_check
      _
    $region59: #{net_syn_user_forward_steps.1} parent=1 // pred_check_branch
      %100 = sbr.rel (0) target = $region61
    $region60: #{net_syn_user_forward_steps.1} parent=1 // pred_region
      %102 = dma.done [#allocation7], 12288
    $region61: #{net_syn_user_forward_steps.1} parent=1 // pred_fallthru
      _
    // Predicated region
    $region62: #{net_syn_user_forward_steps.1} parent=1 // pred_check
      _
    $region63: #{net_syn_user_forward_steps.1} parent=1 // pred_check_branch
      %104 = sbr.rel (0) target = $region65
    $region64: #{net_syn_user_forward_steps.1} parent=1 // pred_region
      %106 = dma.done [#allocation7], 12288
    $region65: #{net_syn_user_forward_steps.1} parent=1 // pred_fallthru
      _
    // Predicated region
    $region66: #{net_syn_user_forward_steps.1} parent=1 // pred_check
      _
    $region67: #{net_syn_user_forward_steps.1} parent=1 // pred_check_branch
      %108 = sbr.rel (0) target = $region69
    $region68: #{net_syn_user_forward_steps.1} parent=1 // pred_region
      %110 = dma.done [#allocation10], 12288
    $region69: #{net_syn_user_forward_steps.1} parent=1 // pred_fallthru
      _
    %v111 = vld [vmem:[%s0] sm:$0xff]
    %v112 = vld [vmem:[%s0 + $0x8] sm:$0xff]
    %v113 = vld [vmem:[%s0 + $0x10] sm:$0xff]
    %v114 = vld [vmem:[%s0 + $0x18] sm:$0xff]
    %v115 = vld [vmem:[#allocation3] sm:$0xff]
    %v116 = vld [vmem:[#allocation3 + $0x8] sm:$0xff]
    %v117 = vld [vmem:[#allocation3 + $0x10] sm:$0xff]
    %v118 = vld [vmem:[#allocation3 + $0x18] sm:$0xff]
    %v119 = vld [vmem:[#allocation3 + $0x20] sm:$0xff]
    %v120 = vld [vmem:[#allocation3 + $0x28] sm:$0xff]
    %v121 = vld [vmem:[#allocation3 + $0x30] sm:$0xff]
    %v122 = vld [vmem:[#allocation3 + $0x38] sm:$0xff]
    %v123 = vld [vmem:[#allocation3 + $0x40] sm:$0xff]
    %v124 = vld [vmem:[#allocation3 + $0x48] sm:$0xff]
    %v125 = vld [vmem:[#allocation3 + $0x50] sm:$0xff]
    %v126 = vld [vmem:[#allocation3 + $0x58] sm:$0xff]
    %v127 = vld [vmem:[#allocation3 + $0x60] sm:$0xff]
    %v128 = vld [vmem:[#allocation3 + $0x68] sm:$0xff]
    %v129 = vld [vmem:[#allocation3 + $0x70] sm:$0xff]
    %v130 = vld [vmem:[#allocation3 + $0x78] sm:$0xff]
    %v131 = vld [vmem:[#allocation3 + $0x80] sm:$0xff]
    %v132 = vld [vmem:[#allocation3 + $0x88] sm:$0xff]
    %v133 = vld [vmem:[#allocation3 + $0x90] sm:$0xff]
    %v134 = vld [vmem:[#allocation3 + $0x98] sm:$0xff]
    %v135 = vld [vmem:[#allocation3 + $0xa0] sm:$0xff]
    %v136 = vld [vmem:[#allocation3 + $0xa8] sm:$0xff]
    %v137 = vld [vmem:[#allocation3 + $0xb0] sm:$0xff]
    %v138 = vld [vmem:[#allocation3 + $0xb8] sm:$0xff]
    %v139 = vld [vmem:[#allocation3 + $0xc0] sm:$0xff]
    %v140 = vld [vmem:[#allocation3 + $0xc8] sm:$0xff]
    %v141 = vld [vmem:[#allocation3 + $0xd0] sm:$0xff]
    %v142 = vld [vmem:[#allocation3 + $0xd8] sm:$0xff]
    %v143 = vld [vmem:[#allocation3 + $0xe0] sm:$0xff]
    %v144 = vld [vmem:[#allocation3 + $0xe8] sm:$0xff]
    %v145 = vld [vmem:[#allocation3 + $0xf0] sm:$0xff]
    %v146 = vld [vmem:[#allocation3 + $0xf8] sm:$0xff]
    %v147 = vld [vmem:[#allocation3 + $0x100] sm:$0xff]
    %v148 = vld [vmem:[#allocation3 + $0x108] sm:$0xff]
    %v149 = vld [vmem:[#allocation3 + $0x110] sm:$0xff]
    %v150 = vld [vmem:[#allocation3 + $0x118] sm:$0xff]
    %v151 = vld [vmem:[#allocation3 + $0x120] sm:$0xff]
    %v152 = vld [vmem:[#allocation3 + $0x128] sm:$0xff]
    %v153 = vld [vmem:[#allocation3 + $0x130] sm:$0xff]
    %v154 = vld [vmem:[#allocation3 + $0x138] sm:$0xff]
    %v155 = vld [vmem:[#allocation3 + $0x140] sm:$0xff]
    %v156 = vld [vmem:[#allocation3 + $0x148] sm:$0xff]
    %v157 = vld [vmem:[#allocation3 + $0x150] sm:$0xff]
    %v158 = vld [vmem:[#allocation3 + $0x158] sm:$0xff]
    %v159 = vld [vmem:[#allocation3 + $0x160] sm:$0xff]
    %v160 = vld [vmem:[#allocation3 + $0x168] sm:$0xff]
    %v161 = vld [vmem:[#allocation3 + $0x170] sm:$0xff]
    %v162 = vld [vmem:[#allocation3 + $0x178] sm:$0xff]
    %v163 = vld [vmem:[#allocation3 + $0x180] sm:$0xff]
    %v164 = vld [vmem:[#allocation3 + $0x188] sm:$0xff]
    %v165 = vld [vmem:[#allocation3 + $0x190] sm:$0xff]
    %v166 = vld [vmem:[#allocation3 + $0x198] sm:$0xff]
    %v167 = vld [vmem:[#allocation3 + $0x1a0] sm:$0xff]
    %v168 = vld [vmem:[#allocation3 + $0x1a8] sm:$0xff]
    %v169 = vld [vmem:[#allocation3 + $0x1b0] sm:$0xff]
    %v170 = vld [vmem:[#allocation3 + $0x1b8] sm:$0xff]
    %v171 = vld [vmem:[#allocation3 + $0x1c0] sm:$0xff]
    %v172 = vld [vmem:[#allocation3 + $0x1c8] sm:$0xff]
    %v173 = vld [vmem:[#allocation3 + $0x1d0] sm:$0xff]
    %v174 = vld [vmem:[#allocation3 + $0x1d8] sm:$0xff]
    %v175 = vld [vmem:[#allocation3 + $0x1e0] sm:$0xff]
    %v176 = vld [vmem:[#allocation3 + $0x1e8] sm:$0xff]
    %v177 = vld [vmem:[#allocation3 + $0x1f0] sm:$0xff]
    %v178 = vld [vmem:[#allocation3 + $0x1f8] sm:$0xff]
    %v179 = vld [vmem:[#allocation3 + $0x200] sm:$0xff]
    %v180 = vld [vmem:[#allocation3 + $0x208] sm:$0xff]
    %v181 = vld [vmem:[#allocation3 + $0x210] sm:$0xff]
    %v182 = vld [vmem:[#allocation3 + $0x218] sm:$0xff]
    %v183 = vld [vmem:[#allocation3 + $0x220] sm:$0xff]
    %v184 = vld [vmem:[#allocation3 + $0x228] sm:$0xff]
    %v185 = vld [vmem:[#allocation3 + $0x230] sm:$0xff]
    %v186 = vld [vmem:[#allocation3 + $0x238] sm:$0xff]
    %v187 = vld [vmem:[#allocation3 + $0x240] sm:$0xff]
    %v188 = vld [vmem:[#allocation3 + $0x248] sm:$0xff]
    %v189 = vld [vmem:[#allocation3 + $0x250] sm:$0xff]
    %v190 = vld [vmem:[#allocation3 + $0x258] sm:$0xff]
    %v191 = vld [vmem:[#allocation3 + $0x260] sm:$0xff]
    %v192 = vld [vmem:[#allocation3 + $0x268] sm:$0xff]
    %v193 = vld [vmem:[#allocation3 + $0x270] sm:$0xff]
    %v194 = vld [vmem:[#allocation3 + $0x278] sm:$0xff]
    %v195 = vld [vmem:[#allocation3 + $0x280] sm:$0xff]
    %v196 = vld [vmem:[#allocation3 + $0x288] sm:$0xff]
    %v197 = vld [vmem:[#allocation3 + $0x290] sm:$0xff]
    %v198 = vld [vmem:[#allocation3 + $0x298] sm:$0xff]
    %v199 = vld [vmem:[#allocation3 + $0x2a0] sm:$0xff]
    %v200 = vld [vmem:[#allocation3 + $0x2a8] sm:$0xff]
    %v201 = vld [vmem:[#allocation3 + $0x2b0] sm:$0xff]
    %v202 = vld [vmem:[#allocation3 + $0x2b8] sm:$0xff]
    %v203 = vld [vmem:[#allocation3 + $0x2c0] sm:$0xff]
    %v204 = vld [vmem:[#allocation3 + $0x2c8] sm:$0xff]
    %v205 = vld [vmem:[#allocation3 + $0x2d0] sm:$0xff]
    %v206 = vld [vmem:[#allocation3 + $0x2d8] sm:$0xff]
    %v207 = vld [vmem:[#allocation3 + $0x2e0] sm:$0xff]
    %v208 = vld [vmem:[#allocation3 + $0x2e8] sm:$0xff]
    %v209 = vld [vmem:[#allocation3 + $0x2f0] sm:$0xff]
    %v210 = vld [vmem:[#allocation3 + $0x2f8] sm:$0xff]
    %v211 = vld [vmem:[#allocation3 + $0x300] sm:$0xff]
    %v212 = vld [vmem:[#allocation3 + $0x308] sm:$0xff]
    %v213 = vld [vmem:[#allocation3 + $0x310] sm:$0xff]
    %v214 = vld [vmem:[#allocation3 + $0x318] sm:$0xff]
    %v215 = vld [vmem:[#allocation3 + $0x320] sm:$0xff]
    %v216 = vld [vmem:[#allocation3 + $0x328] sm:$0xff]
    %v217 = vld [vmem:[#allocation3 + $0x330] sm:$0xff]
    %v218 = vld [vmem:[#allocation3 + $0x338] sm:$0xff]
    %v219 = vld [vmem:[#allocation3 + $0x340] sm:$0xff]
    %v220 = vld [vmem:[#allocation3 + $0x348] sm:$0xff]
    %v221 = vld [vmem:[#allocation3 + $0x350] sm:$0xff]
    %v222 = vld [vmem:[#allocation3 + $0x358] sm:$0xff]
    %v223 = vld [vmem:[#allocation3 + $0x360] sm:$0xff]
    %v224 = vld [vmem:[#allocation3 + $0x368] sm:$0xff]
    %v225 = vld [vmem:[#allocation3 + $0x370] sm:$0xff]
    %v226 = vld [vmem:[#allocation3 + $0x378] sm:$0xff]
    %v227 = vld [vmem:[#allocation3 + $0x380] sm:$0xff]
    %v228 = vld [vmem:[#allocation3 + $0x388] sm:$0xff]
    %v229 = vld [vmem:[#allocation3 + $0x390] sm:$0xff]
    %v230 = vld [vmem:[#allocation3 + $0x398] sm:$0xff]
    %v231 = vld [vmem:[#allocation3 + $0x3a0] sm:$0xff]
    %v232 = vld [vmem:[#allocation3 + $0x3a8] sm:$0xff]
    %v233 = vld [vmem:[#allocation3 + $0x3b0] sm:$0xff]
    %v234 = vld [vmem:[#allocation3 + $0x3b8] sm:$0xff]
    %v235 = vld [vmem:[#allocation3 + $0x3c0] sm:$0xff]
    %v236 = vld [vmem:[#allocation3 + $0x3c8] sm:$0xff]
    %v237 = vld [vmem:[#allocation3 + $0x3d0] sm:$0xff]
    %v238 = vld [vmem:[#allocation3 + $0x3d8] sm:$0xff]
    %v239 = vld [vmem:[#allocation3 + $0x3e0] sm:$0xff]
    %v240 = vld [vmem:[#allocation3 + $0x3e8] sm:$0xff]
    %v241 = vld [vmem:[#allocation3 + $0x3f0] sm:$0xff]
    %v242 = vld [vmem:[#allocation3 + $0x3f8] sm:$0xff]
    %v243 = vld [vmem:[#allocation3 + $0x400] sm:$0xff]
    %v244 = vld [vmem:[#allocation3 + $0x408] sm:$0xff]
    %v245 = vld [vmem:[#allocation3 + $0x410] sm:$0xff]
    %v246 = vld [vmem:[#allocation3 + $0x418] sm:$0xff]
    %v247 = vld [vmem:[#allocation3 + $0x420] sm:$0xff]
    %v248 = vld [vmem:[#allocation3 + $0x428] sm:$0xff]
    %v249 = vld [vmem:[#allocation3 + $0x430] sm:$0xff]
    %v250 = vld [vmem:[#allocation3 + $0x438] sm:$0xff]
    %v251 = vld [vmem:[#allocation3 + $0x440] sm:$0xff]
    %v252 = vld [vmem:[#allocation3 + $0x448] sm:$0xff]
    %v253 = vld [vmem:[#allocation3 + $0x450] sm:$0xff]
    %v254 = vld [vmem:[#allocation3 + $0x458] sm:$0xff]
    %v255 = vld [vmem:[#allocation3 + $0x460] sm:$0xff]
    %v256 = vld [vmem:[#allocation3 + $0x468] sm:$0xff]
    %v257 = vld [vmem:[#allocation3 + $0x470] sm:$0xff]
    %v258 = vld [vmem:[#allocation3 + $0x478] sm:$0xff]
    %v259 = vld [vmem:[#allocation3 + $0x480] sm:$0xff]
    %v260 = vld [vmem:[#allocation3 + $0x488] sm:$0xff]
    %v261 = vld [vmem:[#allocation3 + $0x490] sm:$0xff]
    %v262 = vld [vmem:[#allocation3 + $0x498] sm:$0xff]
    %v263 = vld [vmem:[#allocation3 + $0x4a0] sm:$0xff]
    %v264 = vld [vmem:[#allocation3 + $0x4a8] sm:$0xff]
    %v265 = vld [vmem:[#allocation3 + $0x4b0] sm:$0xff]
    %v266 = vld [vmem:[#allocation3 + $0x4b8] sm:$0xff]
    %v267 = vld [vmem:[#allocation3 + $0x4c0] sm:$0xff]
    %v268 = vld [vmem:[#allocation3 + $0x4c8] sm:$0xff]
    %v269 = vld [vmem:[#allocation3 + $0x4d0] sm:$0xff]
    %v270 = vld [vmem:[#allocation3 + $0x4d8] sm:$0xff]
    %v271 = vld [vmem:[#allocation3 + $0x4e0] sm:$0xff]
    %v272 = vld [vmem:[#allocation3 + $0x4e8] sm:$0xff]
    %v273 = vld [vmem:[#allocation3 + $0x4f0] sm:$0xff]
    %v274 = vld [vmem:[#allocation3 + $0x4f8] sm:$0xff]
    %v275 = vld [vmem:[#allocation3 + $0x500] sm:$0xff]
    %v276 = vld [vmem:[#allocation3 + $0x508] sm:$0xff]
    %v277 = vld [vmem:[#allocation3 + $0x510] sm:$0xff]
    %v278 = vld [vmem:[#allocation3 + $0x518] sm:$0xff]
    %v279 = vld [vmem:[#allocation3 + $0x520] sm:$0xff]
    %v280 = vld [vmem:[#allocation3 + $0x528] sm:$0xff]
    %v281 = vld [vmem:[#allocation3 + $0x530] sm:$0xff]
    %v282 = vld [vmem:[#allocation3 + $0x538] sm:$0xff]
    %v283 = vld [vmem:[#allocation3 + $0x540] sm:$0xff]
    %v284 = vld [vmem:[#allocation3 + $0x548] sm:$0xff]
    %v285 = vld [vmem:[#allocation3 + $0x550] sm:$0xff]
    %v286 = vld [vmem:[#allocation3 + $0x558] sm:$0xff]
    %v287 = vld [vmem:[#allocation3 + $0x560] sm:$0xff]
    %v288 = vld [vmem:[#allocation3 + $0x568] sm:$0xff]
    %v289 = vld [vmem:[#allocation3 + $0x570] sm:$0xff]
    %v290 = vld [vmem:[#allocation3 + $0x578] sm:$0xff]
    %v291 = vld [vmem:[#allocation3 + $0x580] sm:$0xff]
    %v292 = vld [vmem:[#allocation3 + $0x588] sm:$0xff]
    %v293 = vld [vmem:[#allocation3 + $0x590] sm:$0xff]
    %v294 = vld [vmem:[#allocation3 + $0x598] sm:$0xff]
    %v295 = vld [vmem:[#allocation3 + $0x5a0] sm:$0xff]
    %v296 = vld [vmem:[#allocation3 + $0x5a8] sm:$0xff]
    %v297 = vld [vmem:[#allocation3 + $0x5b0] sm:$0xff]
    %v298 = vld [vmem:[#allocation3 + $0x5b8] sm:$0xff]
    %v299 = vld [vmem:[#allocation3 + $0x5c0] sm:$0xff]
    %v300 = vld [vmem:[#allocation3 + $0x5c8] sm:$0xff]
    %v301 = vld [vmem:[#allocation3 + $0x5d0] sm:$0xff]
    %v302 = vld [vmem:[#allocation3 + $0x5d8] sm:$0xff]
    %v303 = vld [vmem:[#allocation3 + $0x5e0] sm:$0xff]
    %v304 = vld [vmem:[#allocation3 + $0x5e8] sm:$0xff]
    %v305 = vld [vmem:[#allocation3 + $0x5f0] sm:$0xff]
    %v306 = vld [vmem:[#allocation3 + $0x5f8] sm:$0xff]
    %v307 = vld [vmem:[#allocation3 + $0x600] sm:$0xff]
    %v308 = vld [vmem:[#allocation3 + $0x608] sm:$0xff]
    %v309 = vld [vmem:[#allocation3 + $0x610] sm:$0xff]
    %v310 = vld [vmem:[#allocation3 + $0x618] sm:$0xff]
    %v311 = vld [vmem:[#allocation3 + $0x620] sm:$0xff]
    %v312 = vld [vmem:[#allocation3 + $0x628] sm:$0xff]
    %v313 = vld [vmem:[#allocation3 + $0x630] sm:$0xff]
    %v314 = vld [vmem:[#allocation3 + $0x638] sm:$0xff]
    %v315 = vld [vmem:[#allocation3 + $0x640] sm:$0xff]
    %v316 = vld [vmem:[#allocation3 + $0x648] sm:$0xff]
    %v317 = vld [vmem:[#allocation3 + $0x650] sm:$0xff]
    %v318 = vld [vmem:[#allocation3 + $0x658] sm:$0xff]
    %v319 = vld [vmem:[#allocation3 + $0x660] sm:$0xff]
    %v320 = vld [vmem:[#allocation3 + $0x668] sm:$0xff]
    %v321 = vld [vmem:[#allocation3 + $0x670] sm:$0xff]
    %v322 = vld [vmem:[#allocation3 + $0x678] sm:$0xff]
    %v323 = vld [vmem:[#allocation3 + $0x680] sm:$0xff]
    %v324 = vld [vmem:[#allocation3 + $0x688] sm:$0xff]
    %v325 = vld [vmem:[#allocation3 + $0x690] sm:$0xff]
    %v326 = vld [vmem:[#allocation3 + $0x698] sm:$0xff]
    %v327 = vld [vmem:[#allocation3 + $0x6a0] sm:$0xff]
    %v328 = vld [vmem:[#allocation3 + $0x6a8] sm:$0xff]
    %v329 = vld [vmem:[#allocation3 + $0x6b0] sm:$0xff]
    %v330 = vld [vmem:[#allocation3 + $0x6b8] sm:$0xff]
    %v331 = vld [vmem:[#allocation3 + $0x6c0] sm:$0xff]
    %v332 = vld [vmem:[#allocation3 + $0x6c8] sm:$0xff]
    %v333 = vld [vmem:[#allocation3 + $0x6d0] sm:$0xff]
    %v334 = vld [vmem:[#allocation3 + $0x6d8] sm:$0xff]
    %v335 = vld [vmem:[#allocation3 + $0x6e0] sm:$0xff]
    %v336 = vld [vmem:[#allocation3 + $0x6e8] sm:$0xff]
    %v337 = vld [vmem:[#allocation3 + $0x6f0] sm:$0xff]
    %v338 = vld [vmem:[#allocation3 + $0x6f8] sm:$0xff]
    %v339 = vld [vmem:[#allocation3 + $0x700] sm:$0xff]
    %v340 = vld [vmem:[#allocation3 + $0x708] sm:$0xff]
    %v341 = vld [vmem:[#allocation3 + $0x710] sm:$0xff]
    %v342 = vld [vmem:[#allocation3 + $0x718] sm:$0xff]
    %v343 = vld [vmem:[#allocation3 + $0x720] sm:$0xff]
    %v344 = vld [vmem:[#allocation3 + $0x728] sm:$0xff]
    %v345 = vld [vmem:[#allocation3 + $0x730] sm:$0xff]
    %v346 = vld [vmem:[#allocation3 + $0x738] sm:$0xff]
    %v347 = vld [vmem:[#allocation3 + $0x740] sm:$0xff]
    %v348 = vld [vmem:[#allocation3 + $0x748] sm:$0xff]
    %v349 = vld [vmem:[#allocation3 + $0x750] sm:$0xff]
    %v350 = vld [vmem:[#allocation3 + $0x758] sm:$0xff]
    %v351 = vld [vmem:[#allocation3 + $0x760] sm:$0xff]
    %v352 = vld [vmem:[#allocation3 + $0x768] sm:$0xff]
    %v353 = vld [vmem:[#allocation3 + $0x770] sm:$0xff]
    %v354 = vld [vmem:[#allocation3 + $0x778] sm:$0xff]
    %v355 = vld [vmem:[#allocation3 + $0x780] sm:$0xff]
    %v356 = vld [vmem:[#allocation3 + $0x788] sm:$0xff]
    %v357 = vld [vmem:[#allocation3 + $0x790] sm:$0xff]
    %v358 = vld [vmem:[#allocation3 + $0x798] sm:$0xff]
    %v359 = vld [vmem:[#allocation3 + $0x7a0] sm:$0xff]
    %v360 = vld [vmem:[#allocation3 + $0x7a8] sm:$0xff]
    %v361 = vld [vmem:[#allocation3 + $0x7b0] sm:$0xff]
    %v362 = vld [vmem:[#allocation3 + $0x7b8] sm:$0xff]
    %v363 = vld [vmem:[#allocation3 + $0x7c0] sm:$0xff]
    %v364 = vld [vmem:[#allocation3 + $0x7c8] sm:$0xff]
    %v365 = vld [vmem:[#allocation3 + $0x7d0] sm:$0xff]
    %v366 = vld [vmem:[#allocation3 + $0x7d8] sm:$0xff]
    %v367 = vld [vmem:[#allocation3 + $0x7e0] sm:$0xff]
    %v368 = vld [vmem:[#allocation3 + $0x7e8] sm:$0xff]
    %v369 = vld [vmem:[#allocation3 + $0x7f0] sm:$0xff]
    %v370 = vld [vmem:[#allocation3 + $0x7f8] sm:$0xff]
    %v375 = vunpack.c.l.b16 %v111
    %v376 = vunpack.c.h.b16 %v111
    %v377 = vunpack.c.l.b16 %v112
    %v378 = vunpack.c.h.b16 %v112
    %v379 = vunpack.c.l.b16 %v113
    %v380 = vunpack.c.h.b16 %v113
    %v381 = vunpack.c.l.b16 %v114
    %v382 = vunpack.c.h.b16 %v114
    %v383 = vpack.c.b16 %v379, %v375
    %v384 = vpack.c.b16 %v380, %v376
    %v385 = vpack.c.b16 %v381, %v377
    %v386 = vpack.c.b16 %v382, %v378
    %v647 = vunpack.c.l.b16 %v115
    %v648 = vunpack.c.h.b16 %v115
    %v649 = vunpack.c.l.b16 %v116
    %v650 = vunpack.c.h.b16 %v116
    %v651 = vunpack.c.l.b16 %v117
    %v652 = vunpack.c.h.b16 %v117
    %v653 = vunpack.c.l.b16 %v118
    %v654 = vunpack.c.h.b16 %v118
    %v655 = vunpack.c.l.b16 %v119
    %v656 = vunpack.c.h.b16 %v119
    %v657 = vunpack.c.l.b16 %v120
    %v658 = vunpack.c.h.b16 %v120
    %v659 = vunpack.c.l.b16 %v121
    %v660 = vunpack.c.h.b16 %v121
    %v661 = vunpack.c.l.b16 %v122
    %v662 = vunpack.c.h.b16 %v122
    %v663 = vunpack.c.l.b16 %v123
    %v664 = vunpack.c.h.b16 %v123
    %v665 = vunpack.c.l.b16 %v124
    %v666 = vunpack.c.h.b16 %v124
    %v667 = vunpack.c.l.b16 %v125
    %v668 = vunpack.c.h.b16 %v125
    %v669 = vunpack.c.l.b16 %v126
    %v670 = vunpack.c.h.b16 %v126
    %v671 = vunpack.c.l.b16 %v127
    %v672 = vunpack.c.h.b16 %v127
    %v673 = vunpack.c.l.b16 %v128
    %v674 = vunpack.c.h.b16 %v128
    %v675 = vunpack.c.l.b16 %v129
    %v676 = vunpack.c.h.b16 %v129
    %v677 = vunpack.c.l.b16 %v130
    %v678 = vunpack.c.h.b16 %v130
    %v679 = vunpack.c.l.b16 %v131
    %v680 = vunpack.c.h.b16 %v131
    %v681 = vunpack.c.l.b16 %v132
    %v682 = vunpack.c.h.b16 %v132
    %v683 = vunpack.c.l.b16 %v133
    %v684 = vunpack.c.h.b16 %v133
    %v685 = vunpack.c.l.b16 %v134
    %v686 = vunpack.c.h.b16 %v134
    %v687 = vunpack.c.l.b16 %v135
    %v688 = vunpack.c.h.b16 %v135
    %v689 = vunpack.c.l.b16 %v136
    %v690 = vunpack.c.h.b16 %v136
    %v691 = vunpack.c.l.b16 %v137
    %v692 = vunpack.c.h.b16 %v137
    %v693 = vunpack.c.l.b16 %v138
    %v694 = vunpack.c.h.b16 %v138
    %v695 = vunpack.c.l.b16 %v139
    %v696 = vunpack.c.h.b16 %v139
    %v697 = vunpack.c.l.b16 %v140
    %v698 = vunpack.c.h.b16 %v140
    %v699 = vunpack.c.l.b16 %v141
    %v700 = vunpack.c.h.b16 %v141
    %v701 = vunpack.c.l.b16 %v142
    %v702 = vunpack.c.h.b16 %v142
    %v703 = vunpack.c.l.b16 %v143
    %v704 = vunpack.c.h.b16 %v143
    %v705 = vunpack.c.l.b16 %v144
    %v706 = vunpack.c.h.b16 %v144
    %v707 = vunpack.c.l.b16 %v145
    %v708 = vunpack.c.h.b16 %v145
    %v709 = vunpack.c.l.b16 %v146
    %v710 = vunpack.c.h.b16 %v146
    %v711 = vunpack.c.l.b16 %v147
    %v712 = vunpack.c.h.b16 %v147
    %v713 = vunpack.c.l.b16 %v148
    %v714 = vunpack.c.h.b16 %v148
    %v715 = vunpack.c.l.b16 %v149
    %v716 = vunpack.c.h.b16 %v149
    %v717 = vunpack.c.l.b16 %v150
    %v718 = vunpack.c.h.b16 %v150
    %v719 = vunpack.c.l.b16 %v151
    %v720 = vunpack.c.h.b16 %v151
    %v721 = vunpack.c.l.b16 %v152
    %v722 = vunpack.c.h.b16 %v152
    %v723 = vunpack.c.l.b16 %v153
    %v724 = vunpack.c.h.b16 %v153
    %v725 = vunpack.c.l.b16 %v154
    %v726 = vunpack.c.h.b16 %v154
    %v727 = vunpack.c.l.b16 %v155
    %v728 = vunpack.c.h.b16 %v155
    %v729 = vunpack.c.l.b16 %v156
    %v730 = vunpack.c.h.b16 %v156
    %v731 = vunpack.c.l.b16 %v157
    %v732 = vunpack.c.h.b16 %v157
    %v733 = vunpack.c.l.b16 %v158
    %v734 = vunpack.c.h.b16 %v158
    %v735 = vunpack.c.l.b16 %v159
    %v736 = vunpack.c.h.b16 %v159
    %v737 = vunpack.c.l.b16 %v160
    %v738 = vunpack.c.h.b16 %v160
    %v739 = vunpack.c.l.b16 %v161
    %v740 = vunpack.c.h.b16 %v161
    %v741 = vunpack.c.l.b16 %v162
    %v742 = vunpack.c.h.b16 %v162
    %v743 = vunpack.c.l.b16 %v163
    %v744 = vunpack.c.h.b16 %v163
    %v745 = vunpack.c.l.b16 %v164
    %v746 = vunpack.c.h.b16 %v164
    %v747 = vunpack.c.l.b16 %v165
    %v748 = vunpack.c.h.b16 %v165
    %v749 = vunpack.c.l.b16 %v166
    %v750 = vunpack.c.h.b16 %v166
    %v751 = vunpack.c.l.b16 %v167
    %v752 = vunpack.c.h.b16 %v167
    %v753 = vunpack.c.l.b16 %v168
    %v754 = vunpack.c.h.b16 %v168
    %v755 = vunpack.c.l.b16 %v169
    %v756 = vunpack.c.h.b16 %v169
    %v757 = vunpack.c.l.b16 %v170
    %v758 = vunpack.c.h.b16 %v170
    %v759 = vunpack.c.l.b16 %v171
    %v760 = vunpack.c.h.b16 %v171
    %v761 = vunpack.c.l.b16 %v172
    %v762 = vunpack.c.h.b16 %v172
    %v763 = vunpack.c.l.b16 %v173
    %v764 = vunpack.c.h.b16 %v173
    %v765 = vunpack.c.l.b16 %v174
    %v766 = vunpack.c.h.b16 %v174
    %v767 = vunpack.c.l.b16 %v175
    %v768 = vunpack.c.h.b16 %v175
    %v769 = vunpack.c.l.b16 %v176
    %v770 = vunpack.c.h.b16 %v176
    %v771 = vunpack.c.l.b16 %v177
    %v772 = vunpack.c.h.b16 %v177
    %v773 = vunpack.c.l.b16 %v178
    %v774 = vunpack.c.h.b16 %v178
    %v775 = vunpack.c.l.b16 %v179
    %v776 = vunpack.c.h.b16 %v179
    %v777 = vunpack.c.l.b16 %v180
    %v778 = vunpack.c.h.b16 %v180
    %v779 = vunpack.c.l.b16 %v181
    %v780 = vunpack.c.h.b16 %v181
    %v781 = vunpack.c.l.b16 %v182
    %v782 = vunpack.c.h.b16 %v182
    %v783 = vunpack.c.l.b16 %v183
    %v784 = vunpack.c.h.b16 %v183
    %v785 = vunpack.c.l.b16 %v184
    %v786 = vunpack.c.h.b16 %v184
    %v787 = vunpack.c.l.b16 %v185
    %v788 = vunpack.c.h.b16 %v185
    %v789 = vunpack.c.l.b16 %v186
    %v790 = vunpack.c.h.b16 %v186
    %v791 = vunpack.c.l.b16 %v187
    %v792 = vunpack.c.h.b16 %v187
    %v793 = vunpack.c.l.b16 %v188
    %v794 = vunpack.c.h.b16 %v188
    %v795 = vunpack.c.l.b16 %v189
    %v796 = vunpack.c.h.b16 %v189
    %v797 = vunpack.c.l.b16 %v190
    %v798 = vunpack.c.h.b16 %v190
    %v799 = vunpack.c.l.b16 %v191
    %v800 = vunpack.c.h.b16 %v191
    %v801 = vunpack.c.l.b16 %v192
    %v802 = vunpack.c.h.b16 %v192
    %v803 = vunpack.c.l.b16 %v193
    %v804 = vunpack.c.h.b16 %v193
    %v805 = vunpack.c.l.b16 %v194
    %v806 = vunpack.c.h.b16 %v194
    %v807 = vunpack.c.l.b16 %v195
    %v808 = vunpack.c.h.b16 %v195
    %v809 = vunpack.c.l.b16 %v196
    %v810 = vunpack.c.h.b16 %v196
    %v811 = vunpack.c.l.b16 %v197
    %v812 = vunpack.c.h.b16 %v197
    %v813 = vunpack.c.l.b16 %v198
    %v814 = vunpack.c.h.b16 %v198
    %v815 = vunpack.c.l.b16 %v199
    %v816 = vunpack.c.h.b16 %v199
    %v817 = vunpack.c.l.b16 %v200
    %v818 = vunpack.c.h.b16 %v200
    %v819 = vunpack.c.l.b16 %v201
    %v820 = vunpack.c.h.b16 %v201
    %v821 = vunpack.c.l.b16 %v202
    %v822 = vunpack.c.h.b16 %v202
    %v823 = vunpack.c.l.b16 %v203
    %v824 = vunpack.c.h.b16 %v203
    %v825 = vunpack.c.l.b16 %v204
    %v826 = vunpack.c.h.b16 %v204
    %v827 = vunpack.c.l.b16 %v205
    %v828 = vunpack.c.h.b16 %v205
    %v829 = vunpack.c.l.b16 %v206
    %v830 = vunpack.c.h.b16 %v206
    %v831 = vunpack.c.l.b16 %v207
    %v832 = vunpack.c.h.b16 %v207
    %v833 = vunpack.c.l.b16 %v208
    %v834 = vunpack.c.h.b16 %v208
    %v835 = vunpack.c.l.b16 %v209
    %v836 = vunpack.c.h.b16 %v209
    %v837 = vunpack.c.l.b16 %v210
    %v838 = vunpack.c.h.b16 %v210
    %v839 = vunpack.c.l.b16 %v211
    %v840 = vunpack.c.h.b16 %v211
    %v841 = vunpack.c.l.b16 %v212
    %v842 = vunpack.c.h.b16 %v212
    %v843 = vunpack.c.l.b16 %v213
    %v844 = vunpack.c.h.b16 %v213
    %v845 = vunpack.c.l.b16 %v214
    %v846 = vunpack.c.h.b16 %v214
    %v847 = vunpack.c.l.b16 %v215
    %v848 = vunpack.c.h.b16 %v215
    %v849 = vunpack.c.l.b16 %v216
    %v850 = vunpack.c.h.b16 %v216
    %v851 = vunpack.c.l.b16 %v217
    %v852 = vunpack.c.h.b16 %v217
    %v853 = vunpack.c.l.b16 %v218
    %v854 = vunpack.c.h.b16 %v218
    %v855 = vunpack.c.l.b16 %v219
    %v856 = vunpack.c.h.b16 %v219
    %v857 = vunpack.c.l.b16 %v220
    %v858 = vunpack.c.h.b16 %v220
    %v859 = vunpack.c.l.b16 %v221
    %v860 = vunpack.c.h.b16 %v221
    %v861 = vunpack.c.l.b16 %v222
    %v862 = vunpack.c.h.b16 %v222
    %v863 = vunpack.c.l.b16 %v223
    %v864 = vunpack.c.h.b16 %v223
    %v865 = vunpack.c.l.b16 %v224
    %v866 = vunpack.c.h.b16 %v224
    %v867 = vunpack.c.l.b16 %v225
    %v868 = vunpack.c.h.b16 %v225
    %v869 = vunpack.c.l.b16 %v226
    %v870 = vunpack.c.h.b16 %v226
    %v871 = vunpack.c.l.b16 %v227
    %v872 = vunpack.c.h.b16 %v227
    %v873 = vunpack.c.l.b16 %v228
    %v874 = vunpack.c.h.b16 %v228
    %v875 = vunpack.c.l.b16 %v229
    %v876 = vunpack.c.h.b16 %v229
    %v877 = vunpack.c.l.b16 %v230
    %v878 = vunpack.c.h.b16 %v230
    %v879 = vunpack.c.l.b16 %v231
    %v880 = vunpack.c.h.b16 %v231
    %v881 = vunpack.c.l.b16 %v232
    %v882 = vunpack.c.h.b16 %v232
    %v883 = vunpack.c.l.b16 %v233
    %v884 = vunpack.c.h.b16 %v233
    %v885 = vunpack.c.l.b16 %v234
    %v886 = vunpack.c.h.b16 %v234
    %v887 = vunpack.c.l.b16 %v235
    %v888 = vunpack.c.h.b16 %v235
    %v889 = vunpack.c.l.b16 %v236
    %v890 = vunpack.c.h.b16 %v236
    %v891 = vunpack.c.l.b16 %v237
    %v892 = vunpack.c.h.b16 %v237
    %v893 = vunpack.c.l.b16 %v238
    %v894 = vunpack.c.h.b16 %v238
    %v895 = vunpack.c.l.b16 %v239
    %v896 = vunpack.c.h.b16 %v239
    %v897 = vunpack.c.l.b16 %v240
    %v898 = vunpack.c.h.b16 %v240
    %v899 = vunpack.c.l.b16 %v241
    %v900 = vunpack.c.h.b16 %v241
    %v901 = vunpack.c.l.b16 %v242
    %v902 = vunpack.c.h.b16 %v242
    %v903 = vunpack.c.l.b16 %v243
    %v904 = vunpack.c.h.b16 %v243
    %v905 = vunpack.c.l.b16 %v244
    %v906 = vunpack.c.h.b16 %v244
    %v907 = vunpack.c.l.b16 %v245
    %v908 = vunpack.c.h.b16 %v245
    %v909 = vunpack.c.l.b16 %v246
    %v910 = vunpack.c.h.b16 %v246
    %v911 = vunpack.c.l.b16 %v247
    %v912 = vunpack.c.h.b16 %v247
    %v913 = vunpack.c.l.b16 %v248
    %v914 = vunpack.c.h.b16 %v248
    %v915 = vunpack.c.l.b16 %v249
    %v916 = vunpack.c.h.b16 %v249
    %v917 = vunpack.c.l.b16 %v250
    %v918 = vunpack.c.h.b16 %v250
    %v919 = vunpack.c.l.b16 %v251
    %v920 = vunpack.c.h.b16 %v251
    %v921 = vunpack.c.l.b16 %v252
    %v922 = vunpack.c.h.b16 %v252
    %v923 = vunpack.c.l.b16 %v253
    %v924 = vunpack.c.h.b16 %v253
    %v925 = vunpack.c.l.b16 %v254
    %v926 = vunpack.c.h.b16 %v254
    %v927 = vunpack.c.l.b16 %v255
    %v928 = vunpack.c.h.b16 %v255
    %v929 = vunpack.c.l.b16 %v256
    %v930 = vunpack.c.h.b16 %v256
    %v931 = vunpack.c.l.b16 %v257
    %v932 = vunpack.c.h.b16 %v257
    %v933 = vunpack.c.l.b16 %v258
    %v934 = vunpack.c.h.b16 %v258
    %v935 = vunpack.c.l.b16 %v259
    %v936 = vunpack.c.h.b16 %v259
    %v937 = vunpack.c.l.b16 %v260
    %v938 = vunpack.c.h.b16 %v260
    %v939 = vunpack.c.l.b16 %v261
    %v940 = vunpack.c.h.b16 %v261
    %v941 = vunpack.c.l.b16 %v262
    %v942 = vunpack.c.h.b16 %v262
    %v943 = vunpack.c.l.b16 %v263
    %v944 = vunpack.c.h.b16 %v263
    %v945 = vunpack.c.l.b16 %v264
    %v946 = vunpack.c.h.b16 %v264
    %v947 = vunpack.c.l.b16 %v265
    %v948 = vunpack.c.h.b16 %v265
    %v949 = vunpack.c.l.b16 %v266
    %v950 = vunpack.c.h.b16 %v266
    %v951 = vunpack.c.l.b16 %v267
    %v952 = vunpack.c.h.b16 %v267
    %v953 = vunpack.c.l.b16 %v268
    %v954 = vunpack.c.h.b16 %v268
    %v955 = vunpack.c.l.b16 %v269
    %v956 = vunpack.c.h.b16 %v269
    %v957 = vunpack.c.l.b16 %v270
    %v958 = vunpack.c.h.b16 %v270
    %v959 = vunpack.c.l.b16 %v271
    %v960 = vunpack.c.h.b16 %v271
    %v961 = vunpack.c.l.b16 %v272
    %v962 = vunpack.c.h.b16 %v272
    %v963 = vunpack.c.l.b16 %v273
    %v964 = vunpack.c.h.b16 %v273
    %v965 = vunpack.c.l.b16 %v274
    %v966 = vunpack.c.h.b16 %v274
    %v967 = vunpack.c.l.b16 %v275
    %v968 = vunpack.c.h.b16 %v275
    %v969 = vunpack.c.l.b16 %v276
    %v970 = vunpack.c.h.b16 %v276
    %v971 = vunpack.c.l.b16 %v277
    %v972 = vunpack.c.h.b16 %v277
    %v973 = vunpack.c.l.b16 %v278
    %v974 = vunpack.c.h.b16 %v278
    %v975 = vunpack.c.l.b16 %v279
    %v976 = vunpack.c.h.b16 %v279
    %v977 = vunpack.c.l.b16 %v280
    %v978 = vunpack.c.h.b16 %v280
    %v979 = vunpack.c.l.b16 %v281
    %v980 = vunpack.c.h.b16 %v281
    %v981 = vunpack.c.l.b16 %v282
    %v982 = vunpack.c.h.b16 %v282
    %v983 = vunpack.c.l.b16 %v283
    %v984 = vunpack.c.h.b16 %v283
    %v985 = vunpack.c.l.b16 %v284
    %v986 = vunpack.c.h.b16 %v284
    %v987 = vunpack.c.l.b16 %v285
    %v988 = vunpack.c.h.b16 %v285
    %v989 = vunpack.c.l.b16 %v286
    %v990 = vunpack.c.h.b16 %v286
    %v991 = vunpack.c.l.b16 %v287
    %v992 = vunpack.c.h.b16 %v287
    %v993 = vunpack.c.l.b16 %v288
    %v994 = vunpack.c.h.b16 %v288
    %v995 = vunpack.c.l.b16 %v289
    %v996 = vunpack.c.h.b16 %v289
    %v997 = vunpack.c.l.b16 %v290
    %v998 = vunpack.c.h.b16 %v290
    %v999 = vunpack.c.l.b16 %v291
    %v1000 = vunpack.c.h.b16 %v291
    %v1001 = vunpack.c.l.b16 %v292
    %v1002 = vunpack.c.h.b16 %v292
    %v1003 = vunpack.c.l.b16 %v293
    %v1004 = vunpack.c.h.b16 %v293
    %v1005 = vunpack.c.l.b16 %v294
    %v1006 = vunpack.c.h.b16 %v294
    %v1007 = vunpack.c.l.b16 %v295
    %v1008 = vunpack.c.h.b16 %v295
    %v1009 = vunpack.c.l.b16 %v296
    %v1010 = vunpack.c.h.b16 %v296
    %v1011 = vunpack.c.l.b16 %v297
    %v1012 = vunpack.c.h.b16 %v297
    %v1013 = vunpack.c.l.b16 %v298
    %v1014 = vunpack.c.h.b16 %v298
    %v1015 = vunpack.c.l.b16 %v299
    %v1016 = vunpack.c.h.b16 %v299
    %v1017 = vunpack.c.l.b16 %v300
    %v1018 = vunpack.c.h.b16 %v300
    %v1019 = vunpack.c.l.b16 %v301
    %v1020 = vunpack.c.h.b16 %v301
    %v1021 = vunpack.c.l.b16 %v302
    %v1022 = vunpack.c.h.b16 %v302
    %v1023 = vunpack.c.l.b16 %v303
    %v1024 = vunpack.c.h.b16 %v303
    %v1025 = vunpack.c.l.b16 %v304
    %v1026 = vunpack.c.h.b16 %v304
    %v1027 = vunpack.c.l.b16 %v305
    %v1028 = vunpack.c.h.b16 %v305
    %v1029 = vunpack.c.l.b16 %v306
    %v1030 = vunpack.c.h.b16 %v306
    %v1031 = vunpack.c.l.b16 %v307
    %v1032 = vunpack.c.h.b16 %v307
    %v1033 = vunpack.c.l.b16 %v308
    %v1034 = vunpack.c.h.b16 %v308
    %v1035 = vunpack.c.l.b16 %v309
    %v1036 = vunpack.c.h.b16 %v309
    %v1037 = vunpack.c.l.b16 %v310
    %v1038 = vunpack.c.h.b16 %v310
    %v1039 = vunpack.c.l.b16 %v311
    %v1040 = vunpack.c.h.b16 %v311
    %v1041 = vunpack.c.l.b16 %v312
    %v1042 = vunpack.c.h.b16 %v312
    %v1043 = vunpack.c.l.b16 %v313
    %v1044 = vunpack.c.h.b16 %v313
    %v1045 = vunpack.c.l.b16 %v314
    %v1046 = vunpack.c.h.b16 %v314
    %v1047 = vunpack.c.l.b16 %v315
    %v1048 = vunpack.c.h.b16 %v315
    %v1049 = vunpack.c.l.b16 %v316
    %v1050 = vunpack.c.h.b16 %v316
    %v1051 = vunpack.c.l.b16 %v317
    %v1052 = vunpack.c.h.b16 %v317
    %v1053 = vunpack.c.l.b16 %v318
    %v1054 = vunpack.c.h.b16 %v318
    %v1055 = vunpack.c.l.b16 %v319
    %v1056 = vunpack.c.h.b16 %v319
    %v1057 = vunpack.c.l.b16 %v320
    %v1058 = vunpack.c.h.b16 %v320
    %v1059 = vunpack.c.l.b16 %v321
    %v1060 = vunpack.c.h.b16 %v321
    %v1061 = vunpack.c.l.b16 %v322
    %v1062 = vunpack.c.h.b16 %v322
    %v1063 = vunpack.c.l.b16 %v323
    %v1064 = vunpack.c.h.b16 %v323
    %v1065 = vunpack.c.l.b16 %v324
    %v1066 = vunpack.c.h.b16 %v324
    %v1067 = vunpack.c.l.b16 %v325
    %v1068 = vunpack.c.h.b16 %v325
    %v1069 = vunpack.c.l.b16 %v326
    %v1070 = vunpack.c.h.b16 %v326
    %v1071 = vunpack.c.l.b16 %v327
    %v1072 = vunpack.c.h.b16 %v327
    %v1073 = vunpack.c.l.b16 %v328
    %v1074 = vunpack.c.h.b16 %v328
    %v1075 = vunpack.c.l.b16 %v329
    %v1076 = vunpack.c.h.b16 %v329
    %v1077 = vunpack.c.l.b16 %v330
    %v1078 = vunpack.c.h.b16 %v330
    %v1079 = vunpack.c.l.b16 %v331
    %v1080 = vunpack.c.h.b16 %v331
    %v1081 = vunpack.c.l.b16 %v332
    %v1082 = vunpack.c.h.b16 %v332
    %v1083 = vunpack.c.l.b16 %v333
    %v1084 = vunpack.c.h.b16 %v333
    %v1085 = vunpack.c.l.b16 %v334
    %v1086 = vunpack.c.h.b16 %v334
    %v1087 = vunpack.c.l.b16 %v335
    %v1088 = vunpack.c.h.b16 %v335
    %v1089 = vunpack.c.l.b16 %v336
    %v1090 = vunpack.c.h.b16 %v336
    %v1091 = vunpack.c.l.b16 %v337
    %v1092 = vunpack.c.h.b16 %v337
    %v1093 = vunpack.c.l.b16 %v338
    %v1094 = vunpack.c.h.b16 %v338
    %v1095 = vunpack.c.l.b16 %v339
    %v1096 = vunpack.c.h.b16 %v339
    %v1097 = vunpack.c.l.b16 %v340
    %v1098 = vunpack.c.h.b16 %v340
    %v1099 = vunpack.c.l.b16 %v341
    %v1100 = vunpack.c.h.b16 %v341
    %v1101 = vunpack.c.l.b16 %v342
    %v1102 = vunpack.c.h.b16 %v342
    %v1103 = vunpack.c.l.b16 %v343
    %v1104 = vunpack.c.h.b16 %v343
    %v1105 = vunpack.c.l.b16 %v344
    %v1106 = vunpack.c.h.b16 %v344
    %v1107 = vunpack.c.l.b16 %v345
    %v1108 = vunpack.c.h.b16 %v345
    %v1109 = vunpack.c.l.b16 %v346
    %v1110 = vunpack.c.h.b16 %v346
    %v1111 = vunpack.c.l.b16 %v347
    %v1112 = vunpack.c.h.b16 %v347
    %v1113 = vunpack.c.l.b16 %v348
    %v1114 = vunpack.c.h.b16 %v348
    %v1115 = vunpack.c.l.b16 %v349
    %v1116 = vunpack.c.h.b16 %v349
    %v1117 = vunpack.c.l.b16 %v350
    %v1118 = vunpack.c.h.b16 %v350
    %v1119 = vunpack.c.l.b16 %v351
    %v1120 = vunpack.c.h.b16 %v351
    %v1121 = vunpack.c.l.b16 %v352
    %v1122 = vunpack.c.h.b16 %v352
    %v1123 = vunpack.c.l.b16 %v353
    %v1124 = vunpack.c.h.b16 %v353
    %v1125 = vunpack.c.l.b16 %v354
    %v1126 = vunpack.c.h.b16 %v354
    %v1127 = vunpack.c.l.b16 %v355
    %v1128 = vunpack.c.h.b16 %v355
    %v1129 = vunpack.c.l.b16 %v356
    %v1130 = vunpack.c.h.b16 %v356
    %v1131 = vunpack.c.l.b16 %v357
    %v1132 = vunpack.c.h.b16 %v357
    %v1133 = vunpack.c.l.b16 %v358
    %v1134 = vunpack.c.h.b16 %v358
    %v1135 = vunpack.c.l.b16 %v359
    %v1136 = vunpack.c.h.b16 %v359
    %v1137 = vunpack.c.l.b16 %v360
    %v1138 = vunpack.c.h.b16 %v360
    %v1139 = vunpack.c.l.b16 %v361
    %v1140 = vunpack.c.h.b16 %v361
    %v1141 = vunpack.c.l.b16 %v362
    %v1142 = vunpack.c.h.b16 %v362
    %v1143 = vunpack.c.l.b16 %v363
    %v1144 = vunpack.c.h.b16 %v363
    %v1145 = vunpack.c.l.b16 %v364
    %v1146 = vunpack.c.h.b16 %v364
    %v1147 = vunpack.c.l.b16 %v365
    %v1148 = vunpack.c.h.b16 %v365
    %v1149 = vunpack.c.l.b16 %v366
    %v1150 = vunpack.c.h.b16 %v366
    %v1151 = vunpack.c.l.b16 %v367
    %v1152 = vunpack.c.h.b16 %v367
    %v1153 = vunpack.c.l.b16 %v368
    %v1154 = vunpack.c.h.b16 %v368
    %v1155 = vunpack.c.l.b16 %v369
    %v1156 = vunpack.c.h.b16 %v369
    %v1157 = vunpack.c.l.b16 %v370
    %v1158 = vunpack.c.h.b16 %v370
    %v1159 = vpack.c.b16 %v655, %v647
    %v1160 = vpack.c.b16 %v656, %v648
    %v1161 = vpack.c.b16 %v657, %v649
    %v1162 = vpack.c.b16 %v658, %v650
    %v1163 = vpack.c.b16 %v659, %v651
    %v1164 = vpack.c.b16 %v660, %v652
    %v1165 = vpack.c.b16 %v661, %v653
    %v1166 = vpack.c.b16 %v662, %v654
    %v1167 = vpack.c.b16 %v671, %v663
    %v1168 = vpack.c.b16 %v672, %v664
    %v1169 = vpack.c.b16 %v673, %v665
    %v1170 = vpack.c.b16 %v674, %v666
    %v1171 = vpack.c.b16 %v675, %v667
    %v1172 = vpack.c.b16 %v676, %v668
    %v1173 = vpack.c.b16 %v677, %v669
    %v1174 = vpack.c.b16 %v678, %v670
    %v1175 = vpack.c.b16 %v687, %v679
    %v1176 = vpack.c.b16 %v688, %v680
    %v1177 = vpack.c.b16 %v689, %v681
    %v1178 = vpack.c.b16 %v690, %v682
    %v1179 = vpack.c.b16 %v691, %v683
    %v1180 = vpack.c.b16 %v692, %v684
    %v1181 = vpack.c.b16 %v693, %v685
    %v1182 = vpack.c.b16 %v694, %v686
    %v1183 = vpack.c.b16 %v703, %v695
    %v1184 = vpack.c.b16 %v704, %v696
    %v1185 = vpack.c.b16 %v705, %v697
    %v1186 = vpack.c.b16 %v706, %v698
    %v1187 = vpack.c.b16 %v707, %v699
    %v1188 = vpack.c.b16 %v708, %v700
    %v1189 = vpack.c.b16 %v709, %v701
    %v1190 = vpack.c.b16 %v710, %v702
    %v1191 = vpack.c.b16 %v719, %v711
    %v1192 = vpack.c.b16 %v720, %v712
    %v1193 = vpack.c.b16 %v721, %v713
    %v1194 = vpack.c.b16 %v722, %v714
    %v1195 = vpack.c.b16 %v723, %v715
    %v1196 = vpack.c.b16 %v724, %v716
    %v1197 = vpack.c.b16 %v725, %v717
    %v1198 = vpack.c.b16 %v726, %v718
    %v1199 = vpack.c.b16 %v735, %v727
    %v1200 = vpack.c.b16 %v736, %v728
    %v1201 = vpack.c.b16 %v737, %v729
    %v1202 = vpack.c.b16 %v738, %v730
    %v1203 = vpack.c.b16 %v739, %v731
    %v1204 = vpack.c.b16 %v740, %v732
    %v1205 = vpack.c.b16 %v741, %v733
    %v1206 = vpack.c.b16 %v742, %v734
    %v1207 = vpack.c.b16 %v751, %v743
    %v1208 = vpack.c.b16 %v752, %v744
    %v1209 = vpack.c.b16 %v753, %v745
    %v1210 = vpack.c.b16 %v754, %v746
    %v1211 = vpack.c.b16 %v755, %v747
    %v1212 = vpack.c.b16 %v756, %v748
    %v1213 = vpack.c.b16 %v757, %v749
    %v1214 = vpack.c.b16 %v758, %v750
    %v1215 = vpack.c.b16 %v767, %v759
    %v1216 = vpack.c.b16 %v768, %v760
    %v1217 = vpack.c.b16 %v769, %v761
    %v1218 = vpack.c.b16 %v770, %v762
    %v1219 = vpack.c.b16 %v771, %v763
    %v1220 = vpack.c.b16 %v772, %v764
    %v1221 = vpack.c.b16 %v773, %v765
    %v1222 = vpack.c.b16 %v774, %v766
    %v1223 = vpack.c.b16 %v783, %v775
    %v1224 = vpack.c.b16 %v784, %v776
    %v1225 = vpack.c.b16 %v785, %v777
    %v1226 = vpack.c.b16 %v786, %v778
    %v1227 = vpack.c.b16 %v787, %v779
    %v1228 = vpack.c.b16 %v788, %v780
    %v1229 = vpack.c.b16 %v789, %v781
    %v1230 = vpack.c.b16 %v790, %v782
    %v1231 = vpack.c.b16 %v799, %v791
    %v1232 = vpack.c.b16 %v800, %v792
    %v1233 = vpack.c.b16 %v801, %v793
    %v1234 = vpack.c.b16 %v802, %v794
    %v1235 = vpack.c.b16 %v803, %v795
    %v1236 = vpack.c.b16 %v804, %v796
    %v1237 = vpack.c.b16 %v805, %v797
    %v1238 = vpack.c.b16 %v806, %v798
    %v1239 = vpack.c.b16 %v815, %v807
    %v1240 = vpack.c.b16 %v816, %v808
    %v1241 = vpack.c.b16 %v817, %v809
    %v1242 = vpack.c.b16 %v818, %v810
    %v1243 = vpack.c.b16 %v819, %v811
    %v1244 = vpack.c.b16 %v820, %v812
    %v1245 = vpack.c.b16 %v821, %v813
    %v1246 = vpack.c.b16 %v822, %v814
    %v1247 = vpack.c.b16 %v831, %v823
    %v1248 = vpack.c.b16 %v832, %v824
    %v1249 = vpack.c.b16 %v833, %v825
    %v1250 = vpack.c.b16 %v834, %v826
    %v1251 = vpack.c.b16 %v835, %v827
    %v1252 = vpack.c.b16 %v836, %v828
    %v1253 = vpack.c.b16 %v837, %v829
    %v1254 = vpack.c.b16 %v838, %v830
    %v1255 = vpack.c.b16 %v847, %v839
    %v1256 = vpack.c.b16 %v848, %v840
    %v1257 = vpack.c.b16 %v849, %v841
    %v1258 = vpack.c.b16 %v850, %v842
    %v1259 = vpack.c.b16 %v851, %v843
    %v1260 = vpack.c.b16 %v852, %v844
    %v1261 = vpack.c.b16 %v853, %v845
    %v1262 = vpack.c.b16 %v854, %v846
    %v1263 = vpack.c.b16 %v863, %v855
    %v1264 = vpack.c.b16 %v864, %v856
    %v1265 = vpack.c.b16 %v865, %v857
    %v1266 = vpack.c.b16 %v866, %v858
    %v1267 = vpack.c.b16 %v867, %v859
    %v1268 = vpack.c.b16 %v868, %v860
    %v1269 = vpack.c.b16 %v869, %v861
    %v1270 = vpack.c.b16 %v870, %v862
    %v1271 = vpack.c.b16 %v879, %v871
    %v1272 = vpack.c.b16 %v880, %v872
    %v1273 = vpack.c.b16 %v881, %v873
    %v1274 = vpack.c.b16 %v882, %v874
    %v1275 = vpack.c.b16 %v883, %v875
    %v1276 = vpack.c.b16 %v884, %v876
    %v1277 = vpack.c.b16 %v885, %v877
    %v1278 = vpack.c.b16 %v886, %v878
    %v1279 = vpack.c.b16 %v895, %v887
    %v1280 = vpack.c.b16 %v896, %v888
    %v1281 = vpack.c.b16 %v897, %v889
    %v1282 = vpack.c.b16 %v898, %v890
    %v1283 = vpack.c.b16 %v899, %v891
    %v1284 = vpack.c.b16 %v900, %v892
    %v1285 = vpack.c.b16 %v901, %v893
    %v1286 = vpack.c.b16 %v902, %v894
    %v1287 = vpack.c.b16 %v911, %v903
    %v1288 = vpack.c.b16 %v912, %v904
    %v1289 = vpack.c.b16 %v913, %v905
    %v1290 = vpack.c.b16 %v914, %v906
    %v1291 = vpack.c.b16 %v915, %v907
    %v1292 = vpack.c.b16 %v916, %v908
    %v1293 = vpack.c.b16 %v917, %v909
    %v1294 = vpack.c.b16 %v918, %v910
    %v1295 = vpack.c.b16 %v927, %v919
    %v1296 = vpack.c.b16 %v928, %v920
    %v1297 = vpack.c.b16 %v929, %v921
    %v1298 = vpack.c.b16 %v930, %v922
    %v1299 = vpack.c.b16 %v931, %v923
    %v1300 = vpack.c.b16 %v932, %v924
    %v1301 = vpack.c.b16 %v933, %v925
    %v1302 = vpack.c.b16 %v934, %v926
    %v1303 = vpack.c.b16 %v943, %v935
    %v1304 = vpack.c.b16 %v944, %v936
    %v1305 = vpack.c.b16 %v945, %v937
    %v1306 = vpack.c.b16 %v946, %v938
    %v1307 = vpack.c.b16 %v947, %v939
    %v1308 = vpack.c.b16 %v948, %v940
    %v1309 = vpack.c.b16 %v949, %v941
    %v1310 = vpack.c.b16 %v950, %v942
    %v1311 = vpack.c.b16 %v959, %v951
    %v1312 = vpack.c.b16 %v960, %v952
    %v1313 = vpack.c.b16 %v961, %v953
    %v1314 = vpack.c.b16 %v962, %v954
    %v1315 = vpack.c.b16 %v963, %v955
    %v1316 = vpack.c.b16 %v964, %v956
    %v1317 = vpack.c.b16 %v965, %v957
    %v1318 = vpack.c.b16 %v966, %v958
    %v1319 = vpack.c.b16 %v975, %v967
    %v1320 = vpack.c.b16 %v976, %v968
    %v1321 = vpack.c.b16 %v977, %v969
    %v1322 = vpack.c.b16 %v978, %v970
    %v1323 = vpack.c.b16 %v979, %v971
    %v1324 = vpack.c.b16 %v980, %v972
    %v1325 = vpack.c.b16 %v981, %v973
    %v1326 = vpack.c.b16 %v982, %v974
    %v1327 = vpack.c.b16 %v991, %v983
    %v1328 = vpack.c.b16 %v992, %v984
    %v1329 = vpack.c.b16 %v993, %v985
    %v1330 = vpack.c.b16 %v994, %v986
    %v1331 = vpack.c.b16 %v995, %v987
    %v1332 = vpack.c.b16 %v996, %v988
    %v1333 = vpack.c.b16 %v997, %v989
    %v1334 = vpack.c.b16 %v998, %v990
    %v1335 = vpack.c.b16 %v1007, %v999
    %v1336 = vpack.c.b16 %v1008, %v1000
    %v1337 = vpack.c.b16 %v1009, %v1001
    %v1338 = vpack.c.b16 %v1010, %v1002
    %v1339 = vpack.c.b16 %v1011, %v1003
    %v1340 = vpack.c.b16 %v1012, %v1004
    %v1341 = vpack.c.b16 %v1013, %v1005
    %v1342 = vpack.c.b16 %v1014, %v1006
    %v1343 = vpack.c.b16 %v1023, %v1015
    %v1344 = vpack.c.b16 %v1024, %v1016
    %v1345 = vpack.c.b16 %v1025, %v1017
    %v1346 = vpack.c.b16 %v1026, %v1018
    %v1347 = vpack.c.b16 %v1027, %v1019
    %v1348 = vpack.c.b16 %v1028, %v1020
    %v1349 = vpack.c.b16 %v1029, %v1021
    %v1350 = vpack.c.b16 %v1030, %v1022
    %v1351 = vpack.c.b16 %v1039, %v1031
    %v1352 = vpack.c.b16 %v1040, %v1032
    %v1353 = vpack.c.b16 %v1041, %v1033
    %v1354 = vpack.c.b16 %v1042, %v1034
    %v1355 = vpack.c.b16 %v1043, %v1035
    %v1356 = vpack.c.b16 %v1044, %v1036
    %v1357 = vpack.c.b16 %v1045, %v1037
    %v1358 = vpack.c.b16 %v1046, %v1038
    %v1359 = vpack.c.b16 %v1055, %v1047
    %v1360 = vpack.c.b16 %v1056, %v1048
    %v1361 = vpack.c.b16 %v1057, %v1049
    %v1362 = vpack.c.b16 %v1058, %v1050
    %v1363 = vpack.c.b16 %v1059, %v1051
    %v1364 = vpack.c.b16 %v1060, %v1052
    %v1365 = vpack.c.b16 %v1061, %v1053
    %v1366 = vpack.c.b16 %v1062, %v1054
    %v1367 = vpack.c.b16 %v1071, %v1063
    %v1368 = vpack.c.b16 %v1072, %v1064
    %v1369 = vpack.c.b16 %v1073, %v1065
    %v1370 = vpack.c.b16 %v1074, %v1066
    %v1371 = vpack.c.b16 %v1075, %v1067
    %v1372 = vpack.c.b16 %v1076, %v1068
    %v1373 = vpack.c.b16 %v1077, %v1069
    %v1374 = vpack.c.b16 %v1078, %v1070
    %v1375 = vpack.c.b16 %v1087, %v1079
    %v1376 = vpack.c.b16 %v1088, %v1080
    %v1377 = vpack.c.b16 %v1089, %v1081
    %v1378 = vpack.c.b16 %v1090, %v1082
    %v1379 = vpack.c.b16 %v1091, %v1083
    %v1380 = vpack.c.b16 %v1092, %v1084
    %v1381 = vpack.c.b16 %v1093, %v1085
    %v1382 = vpack.c.b16 %v1094, %v1086
    %v1383 = vpack.c.b16 %v1103, %v1095
    %v1384 = vpack.c.b16 %v1104, %v1096
    %v1385 = vpack.c.b16 %v1105, %v1097
    %v1386 = vpack.c.b16 %v1106, %v1098
    %v1387 = vpack.c.b16 %v1107, %v1099
    %v1388 = vpack.c.b16 %v1108, %v1100
    %v1389 = vpack.c.b16 %v1109, %v1101
    %v1390 = vpack.c.b16 %v1110, %v1102
    %v1391 = vpack.c.b16 %v1119, %v1111
    %v1392 = vpack.c.b16 %v1120, %v1112
    %v1393 = vpack.c.b16 %v1121, %v1113
    %v1394 = vpack.c.b16 %v1122, %v1114
    %v1395 = vpack.c.b16 %v1123, %v1115
    %v1396 = vpack.c.b16 %v1124, %v1116
    %v1397 = vpack.c.b16 %v1125, %v1117
    %v1398 = vpack.c.b16 %v1126, %v1118
    %v1399 = vpack.c.b16 %v1135, %v1127
    %v1400 = vpack.c.b16 %v1136, %v1128
    %v1401 = vpack.c.b16 %v1137, %v1129
    %v1402 = vpack.c.b16 %v1138, %v1130
    %v1403 = vpack.c.b16 %v1139, %v1131
    %v1404 = vpack.c.b16 %v1140, %v1132
    %v1405 = vpack.c.b16 %v1141, %v1133
    %v1406 = vpack.c.b16 %v1142, %v1134
    %v1407 = vpack.c.b16 %v1151, %v1143
    %v1408 = vpack.c.b16 %v1152, %v1144
    %v1409 = vpack.c.b16 %v1153, %v1145
    %v1410 = vpack.c.b16 %v1154, %v1146
    %v1411 = vpack.c.b16 %v1155, %v1147
    %v1412 = vpack.c.b16 %v1156, %v1148
    %v1413 = vpack.c.b16 %v1157, %v1149
    %v1414 = vpack.c.b16 %v1158, %v1150
    %1671 = vmatpush.bf16.msra.mxu0 %v1215
    %1672 = vmatpush.bf16.msra.mxu0 %v1207
    %1673 = vmatpush.bf16.msra.mxu0 %v1199
    %1674 = vmatpush.bf16.msra.mxu0 %v1191
    %1675 = vmatpush.bf16.msra.mxu0 %v1183
    %1676 = vmatpush.bf16.msra.mxu0 %v1175
    %1677 = vmatpush.bf16.msra.mxu0 %v1167
    %1678 = vmatpush.bf16.msra.mxu0 %v1159
    %1679 = vmatmul.bf16.gmra.mxu0 %v383
    %v1680 = vpop.f32.mrf.mxu0
    %v1681 = vadd.f32 0.0, %v1680
    %v1682 = vpop.f32.mrf.mxu0
    %v1683 = vadd.f32 0.0, %v1682
    %1684 = vdwg.mxu0
    %1685 = vmatpush.bf16.msra.mxu0 %v1279
    %1686 = vmatpush.bf16.msra.mxu0 %v1271
    %1687 = vmatpush.bf16.msra.mxu0 %v1263
    %1688 = vmatpush.bf16.msra.mxu0 %v1255
    %1689 = vmatpush.bf16.msra.mxu0 %v1247
    %1690 = vmatpush.bf16.msra.mxu0 %v1239
    %1691 = vmatpush.bf16.msra.mxu0 %v1231
    %1692 = vmatpush.bf16.msra.mxu0 %v1223
    %1693 = vmatmul.bf16.gmra.mxu0 %v384
    %v1694 = vpop.f32.mrf.mxu0
    %v1695 = vadd.f32 %v1681, %v1694
    %v1696 = vpop.f32.mrf.mxu0
    %v1697 = vadd.f32 %v1683, %v1696
    %1698 = vdwg.mxu0
    %1699 = vmatpush.bf16.msra.mxu0 %v1343
    %1700 = vmatpush.bf16.msra.mxu0 %v1335
    %1701 = vmatpush.bf16.msra.mxu0 %v1327
    %1702 = vmatpush.bf16.msra.mxu0 %v1319
    %1703 = vmatpush.bf16.msra.mxu0 %v1311
    %1704 = vmatpush.bf16.msra.mxu0 %v1303
    %1705 = vmatpush.bf16.msra.mxu0 %v1295
    %1706 = vmatpush.bf16.msra.mxu0 %v1287
    %1707 = vmatmul.bf16.gmra.mxu0 %v385
    %v1708 = vpop.f32.mrf.mxu0
    %v1709 = vadd.f32 %v1695, %v1708
    %v1710 = vpop.f32.mrf.mxu0
    %v1711 = vadd.f32 %v1697, %v1710
    %1712 = vdwg.mxu0
    %1713 = vmatpush.bf16.msra.mxu0 %v1407
    %1714 = vmatpush.bf16.msra.mxu0 %v1399
    %1715 = vmatpush.bf16.msra.mxu0 %v1391
    %1716 = vmatpush.bf16.msra.mxu0 %v1383
    %1717 = vmatpush.bf16.msra.mxu0 %v1375
    %1718 = vmatpush.bf16.msra.mxu0 %v1367
    %1719 = vmatpush.bf16.msra.mxu0 %v1359
    %1720 = vmatpush.bf16.msra.mxu0 %v1351
    %1721 = vmatmul.bf16.gmra.mxu0 %v386
    %v1722 = vpop.f32.mrf.mxu0
    %v1723 = vadd.f32 %v1709, %v1722
    %v1724 = vpop.f32.mrf.mxu0
    %v1725 = vadd.f32 %v1711, %v1724
    %1726 = vdwg.mxu0
    %1727 = vmatpush.bf16.msra.mxu0 %v1216
    %1728 = vmatpush.bf16.msra.mxu0 %v1208
    %1729 = vmatpush.bf16.msra.mxu0 %v1200
    %1730 = vmatpush.bf16.msra.mxu0 %v1192
    %1731 = vmatpush.bf16.msra.mxu0 %v1184
    %1732 = vmatpush.bf16.msra.mxu0 %v1176
    %1733 = vmatpush.bf16.msra.mxu0 %v1168
    %1734 = vmatpush.bf16.msra.mxu0 %v1160
    %1735 = vmatmul.bf16.gmra.mxu0 %v383
    %v1736 = vpop.f32.mrf.mxu0
    %v1737 = vadd.f32 0.0, %v1736
    %v1738 = vpop.f32.mrf.mxu0
    %v1739 = vadd.f32 0.0, %v1738
    %1740 = vdwg.mxu0
    %1741 = vmatpush.bf16.msra.mxu0 %v1280
    %1742 = vmatpush.bf16.msra.mxu0 %v1272
    %1743 = vmatpush.bf16.msra.mxu0 %v1264
    %1744 = vmatpush.bf16.msra.mxu0 %v1256
    %1745 = vmatpush.bf16.msra.mxu0 %v1248
    %1746 = vmatpush.bf16.msra.mxu0 %v1240
    %1747 = vmatpush.bf16.msra.mxu0 %v1232
    %1748 = vmatpush.bf16.msra.mxu0 %v1224
    %1749 = vmatmul.bf16.gmra.mxu0 %v384
    %v1750 = vpop.f32.mrf.mxu0
    %v1751 = vadd.f32 %v1737, %v1750
    %v1752 = vpop.f32.mrf.mxu0
    %v1753 = vadd.f32 %v1739, %v1752
    %1754 = vdwg.mxu0
    %1755 = vmatpush.bf16.msra.mxu0 %v1344
    %1756 = vmatpush.bf16.msra.mxu0 %v1336
    %1757 = vmatpush.bf16.msra.mxu0 %v1328
    %1758 = vmatpush.bf16.msra.mxu0 %v1320
    %1759 = vmatpush.bf16.msra.mxu0 %v1312
    %1760 = vmatpush.bf16.msra.mxu0 %v1304
    %1761 = vmatpush.bf16.msra.mxu0 %v1296
    %1762 = vmatpush.bf16.msra.mxu0 %v1288
    %1763 = vmatmul.bf16.gmra.mxu0 %v385
    %v1764 = vpop.f32.mrf.mxu0
    %v1765 = vadd.f32 %v1751, %v1764
    %v1766 = vpop.f32.mrf.mxu0
    %v1767 = vadd.f32 %v1753, %v1766
    %1768 = vdwg.mxu0
    %1769 = vmatpush.bf16.msra.mxu0 %v1408
    %1770 = vmatpush.bf16.msra.mxu0 %v1400
    %1771 = vmatpush.bf16.msra.mxu0 %v1392
    %1772 = vmatpush.bf16.msra.mxu0 %v1384
    %1773 = vmatpush.bf16.msra.mxu0 %v1376
    %1774 = vmatpush.bf16.msra.mxu0 %v1368
    %1775 = vmatpush.bf16.msra.mxu0 %v1360
    %1776 = vmatpush.bf16.msra.mxu0 %v1352
    %1777 = vmatmul.bf16.gmra.mxu0 %v386
    %v1778 = vpop.f32.mrf.mxu0
    %v1779 = vadd.f32 %v1765, %v1778
    %v1780 = vpop.f32.mrf.mxu0
    %v1781 = vadd.f32 %v1767, %v1780
    %1782 = vdwg.mxu0
    %1783 = vmatpush.bf16.msra.mxu0 %v1217
    %1784 = vmatpush.bf16.msra.mxu0 %v1209
    %1785 = vmatpush.bf16.msra.mxu0 %v1201
    %1786 = vmatpush.bf16.msra.mxu0 %v1193
    %1787 = vmatpush.bf16.msra.mxu0 %v1185
    %1788 = vmatpush.bf16.msra.mxu0 %v1177
    %1789 = vmatpush.bf16.msra.mxu0 %v1169
    %1790 = vmatpush.bf16.msra.mxu0 %v1161
    %1791 = vmatmul.bf16.gmra.mxu0 %v383
    %v1792 = vpop.f32.mrf.mxu0
    %v1793 = vadd.f32 0.0, %v1792
    %v1794 = vpop.f32.mrf.mxu0
    %v1795 = vadd.f32 0.0, %v1794
    %1796 = vdwg.mxu0
    %1797 = vmatpush.bf16.msra.mxu0 %v1281
    %1798 = vmatpush.bf16.msra.mxu0 %v1273
    %1799 = vmatpush.bf16.msra.mxu0 %v1265
    %1800 = vmatpush.bf16.msra.mxu0 %v1257
    %1801 = vmatpush.bf16.msra.mxu0 %v1249
    %1802 = vmatpush.bf16.msra.mxu0 %v1241
    %1803 = vmatpush.bf16.msra.mxu0 %v1233
    %1804 = vmatpush.bf16.msra.mxu0 %v1225
    %1805 = vmatmul.bf16.gmra.mxu0 %v384
    %v1806 = vpop.f32.mrf.mxu0
    %v1807 = vadd.f32 %v1793, %v1806
    %v1808 = vpop.f32.mrf.mxu0
    %v1809 = vadd.f32 %v1795, %v1808
    %1810 = vdwg.mxu0
    %1811 = vmatpush.bf16.msra.mxu0 %v1345
    %1812 = vmatpush.bf16.msra.mxu0 %v1337
    %1813 = vmatpush.bf16.msra.mxu0 %v1329
    %1814 = vmatpush.bf16.msra.mxu0 %v1321
    %1815 = vmatpush.bf16.msra.mxu0 %v1313
    %1816 = vmatpush.bf16.msra.mxu0 %v1305
    %1817 = vmatpush.bf16.msra.mxu0 %v1297
    %1818 = vmatpush.bf16.msra.mxu0 %v1289
    %1819 = vmatmul.bf16.gmra.mxu0 %v385
    %v1820 = vpop.f32.mrf.mxu0
    %v1821 = vadd.f32 %v1807, %v1820
    %v1822 = vpop.f32.mrf.mxu0
    %v1823 = vadd.f32 %v1809, %v1822
    %1824 = vdwg.mxu0
    %1825 = vmatpush.bf16.msra.mxu0 %v1409
    %1826 = vmatpush.bf16.msra.mxu0 %v1401
    %1827 = vmatpush.bf16.msra.mxu0 %v1393
    %1828 = vmatpush.bf16.msra.mxu0 %v1385
    %1829 = vmatpush.bf16.msra.mxu0 %v1377
    %1830 = vmatpush.bf16.msra.mxu0 %v1369
    %1831 = vmatpush.bf16.msra.mxu0 %v1361
    %1832 = vmatpush.bf16.msra.mxu0 %v1353
    %1833 = vmatmul.bf16.gmra.mxu0 %v386
    %v1834 = vpop.f32.mrf.mxu0
    %v1835 = vadd.f32 %v1821, %v1834
    %v1836 = vpop.f32.mrf.mxu0
    %v1837 = vadd.f32 %v1823, %v1836
    %1838 = vdwg.mxu0
    %1839 = vmatpush.bf16.msra.mxu0 %v1218
    %1840 = vmatpush.bf16.msra.mxu0 %v1210
    %1841 = vmatpush.bf16.msra.mxu0 %v1202
    %1842 = vmatpush.bf16.msra.mxu0 %v1194
    %1843 = vmatpush.bf16.msra.mxu0 %v1186
    %1844 = vmatpush.bf16.msra.mxu0 %v1178
    %1845 = vmatpush.bf16.msra.mxu0 %v1170
    %1846 = vmatpush.bf16.msra.mxu0 %v1162
    %1847 = vmatmul.bf16.gmra.mxu0 %v383
    %v1848 = vpop.f32.mrf.mxu0
    %v1849 = vadd.f32 0.0, %v1848
    %v1850 = vpop.f32.mrf.mxu0
    %v1851 = vadd.f32 0.0, %v1850
    %1852 = vdwg.mxu0
    %1853 = vmatpush.bf16.msra.mxu0 %v1282
    %1854 = vmatpush.bf16.msra.mxu0 %v1274
    %1855 = vmatpush.bf16.msra.mxu0 %v1266
    %1856 = vmatpush.bf16.msra.mxu0 %v1258
    %1857 = vmatpush.bf16.msra.mxu0 %v1250
    %1858 = vmatpush.bf16.msra.mxu0 %v1242
    %1859 = vmatpush.bf16.msra.mxu0 %v1234
    %1860 = vmatpush.bf16.msra.mxu0 %v1226
    %1861 = vmatmul.bf16.gmra.mxu0 %v384
    %v1862 = vpop.f32.mrf.mxu0
    %v1863 = vadd.f32 %v1849, %v1862
    %v1864 = vpop.f32.mrf.mxu0
    %v1865 = vadd.f32 %v1851, %v1864
    %1866 = vdwg.mxu0
    %1867 = vmatpush.bf16.msra.mxu0 %v1346
    %1868 = vmatpush.bf16.msra.mxu0 %v1338
    %1869 = vmatpush.bf16.msra.mxu0 %v1330
    %1870 = vmatpush.bf16.msra.mxu0 %v1322
    %1871 = vmatpush.bf16.msra.mxu0 %v1314
    %1872 = vmatpush.bf16.msra.mxu0 %v1306
    %1873 = vmatpush.bf16.msra.mxu0 %v1298
    %1874 = vmatpush.bf16.msra.mxu0 %v1290
    %1875 = vmatmul.bf16.gmra.mxu0 %v385
    %v1876 = vpop.f32.mrf.mxu0
    %v1877 = vadd.f32 %v1863, %v1876
    %v1878 = vpop.f32.mrf.mxu0
    %v1879 = vadd.f32 %v1865, %v1878
    %1880 = vdwg.mxu0
    %1881 = vmatpush.bf16.msra.mxu0 %v1410
    %1882 = vmatpush.bf16.msra.mxu0 %v1402
    %1883 = vmatpush.bf16.msra.mxu0 %v1394
    %1884 = vmatpush.bf16.msra.mxu0 %v1386
    %1885 = vmatpush.bf16.msra.mxu0 %v1378
    %1886 = vmatpush.bf16.msra.mxu0 %v1370
    %1887 = vmatpush.bf16.msra.mxu0 %v1362
    %1888 = vmatpush.bf16.msra.mxu0 %v1354
    %1889 = vmatmul.bf16.gmra.mxu0 %v386
    %v1890 = vpop.f32.mrf.mxu0
    %v1891 = vadd.f32 %v1877, %v1890
    %v1892 = vpop.f32.mrf.mxu0
    %v1893 = vadd.f32 %v1879, %v1892
    %1894 = vdwg.mxu0
    %1895 = vmatpush.bf16.msra.mxu0 %v1219
    %1896 = vmatpush.bf16.msra.mxu0 %v1211
    %1897 = vmatpush.bf16.msra.mxu0 %v1203
    %1898 = vmatpush.bf16.msra.mxu0 %v1195
    %1899 = vmatpush.bf16.msra.mxu0 %v1187
    %1900 = vmatpush.bf16.msra.mxu0 %v1179
    %1901 = vmatpush.bf16.msra.mxu0 %v1171
    %1902 = vmatpush.bf16.msra.mxu0 %v1163
    %1903 = vmatmul.bf16.gmra.mxu0 %v383
    %v1904 = vpop.f32.mrf.mxu0
    %v1905 = vadd.f32 0.0, %v1904
    %v1906 = vpop.f32.mrf.mxu0
    %v1907 = vadd.f32 0.0, %v1906
    %1908 = vdwg.mxu0
    %1909 = vmatpush.bf16.msra.mxu0 %v1283
    %1910 = vmatpush.bf16.msra.mxu0 %v1275
    %1911 = vmatpush.bf16.msra.mxu0 %v1267
    %1912 = vmatpush.bf16.msra.mxu0 %v1259
    %1913 = vmatpush.bf16.msra.mxu0 %v1251
    %1914 = vmatpush.bf16.msra.mxu0 %v1243
    %1915 = vmatpush.bf16.msra.mxu0 %v1235
    %1916 = vmatpush.bf16.msra.mxu0 %v1227
    %1917 = vmatmul.bf16.gmra.mxu0 %v384
    %v1918 = vpop.f32.mrf.mxu0
    %v1919 = vadd.f32 %v1905, %v1918
    %v1920 = vpop.f32.mrf.mxu0
    %v1921 = vadd.f32 %v1907, %v1920
    %1922 = vdwg.mxu0
    %1923 = vmatpush.bf16.msra.mxu0 %v1347
    %1924 = vmatpush.bf16.msra.mxu0 %v1339
    %1925 = vmatpush.bf16.msra.mxu0 %v1331
    %1926 = vmatpush.bf16.msra.mxu0 %v1323
    %1927 = vmatpush.bf16.msra.mxu0 %v1315
    %1928 = vmatpush.bf16.msra.mxu0 %v1307
    %1929 = vmatpush.bf16.msra.mxu0 %v1299
    %1930 = vmatpush.bf16.msra.mxu0 %v1291
    %1931 = vmatmul.bf16.gmra.mxu0 %v385
    %v1932 = vpop.f32.mrf.mxu0
    %v1933 = vadd.f32 %v1919, %v1932
    %v1934 = vpop.f32.mrf.mxu0
    %v1935 = vadd.f32 %v1921, %v1934
    %1936 = vdwg.mxu0
    %1937 = vmatpush.bf16.msra.mxu0 %v1411
    %1938 = vmatpush.bf16.msra.mxu0 %v1403
    %1939 = vmatpush.bf16.msra.mxu0 %v1395
    %1940 = vmatpush.bf16.msra.mxu0 %v1387
    %1941 = vmatpush.bf16.msra.mxu0 %v1379
    %1942 = vmatpush.bf16.msra.mxu0 %v1371
    %1943 = vmatpush.bf16.msra.mxu0 %v1363
    %1944 = vmatpush.bf16.msra.mxu0 %v1355
    %1945 = vmatmul.bf16.gmra.mxu0 %v386
    %v1946 = vpop.f32.mrf.mxu0
    %v1947 = vadd.f32 %v1933, %v1946
    %v1948 = vpop.f32.mrf.mxu0
    %v1949 = vadd.f32 %v1935, %v1948
    %1950 = vdwg.mxu0
    %1951 = vmatpush.bf16.msra.mxu0 %v1220
    %1952 = vmatpush.bf16.msra.mxu0 %v1212
    %1953 = vmatpush.bf16.msra.mxu0 %v1204
    %1954 = vmatpush.bf16.msra.mxu0 %v1196
    %1955 = vmatpush.bf16.msra.mxu0 %v1188
    %1956 = vmatpush.bf16.msra.mxu0 %v1180
    %1957 = vmatpush.bf16.msra.mxu0 %v1172
    %1958 = vmatpush.bf16.msra.mxu0 %v1164
    %1959 = vmatmul.bf16.gmra.mxu0 %v383
    %v1960 = vpop.f32.mrf.mxu0
    %v1961 = vadd.f32 0.0, %v1960
    %v1962 = vpop.f32.mrf.mxu0
    %v1963 = vadd.f32 0.0, %v1962
    %1964 = vdwg.mxu0
    %1965 = vmatpush.bf16.msra.mxu0 %v1284
    %1966 = vmatpush.bf16.msra.mxu0 %v1276
    %1967 = vmatpush.bf16.msra.mxu0 %v1268
    %1968 = vmatpush.bf16.msra.mxu0 %v1260
    %1969 = vmatpush.bf16.msra.mxu0 %v1252
    %1970 = vmatpush.bf16.msra.mxu0 %v1244
    %1971 = vmatpush.bf16.msra.mxu0 %v1236
    %1972 = vmatpush.bf16.msra.mxu0 %v1228
    %1973 = vmatmul.bf16.gmra.mxu0 %v384
    %v1974 = vpop.f32.mrf.mxu0
    %v1975 = vadd.f32 %v1961, %v1974
    %v1976 = vpop.f32.mrf.mxu0
    %v1977 = vadd.f32 %v1963, %v1976
    %1978 = vdwg.mxu0
    %1979 = vmatpush.bf16.msra.mxu0 %v1348
    %1980 = vmatpush.bf16.msra.mxu0 %v1340
    %1981 = vmatpush.bf16.msra.mxu0 %v1332
    %1982 = vmatpush.bf16.msra.mxu0 %v1324
    %1983 = vmatpush.bf16.msra.mxu0 %v1316
    %1984 = vmatpush.bf16.msra.mxu0 %v1308
    %1985 = vmatpush.bf16.msra.mxu0 %v1300
    %1986 = vmatpush.bf16.msra.mxu0 %v1292
    %1987 = vmatmul.bf16.gmra.mxu0 %v385
    %v1988 = vpop.f32.mrf.mxu0
    %v1989 = vadd.f32 %v1975, %v1988
    %v1990 = vpop.f32.mrf.mxu0
    %v1991 = vadd.f32 %v1977, %v1990
    %1992 = vdwg.mxu0
    %1993 = vmatpush.bf16.msra.mxu0 %v1412
    %1994 = vmatpush.bf16.msra.mxu0 %v1404
    %1995 = vmatpush.bf16.msra.mxu0 %v1396
    %1996 = vmatpush.bf16.msra.mxu0 %v1388
    %1997 = vmatpush.bf16.msra.mxu0 %v1380
    %1998 = vmatpush.bf16.msra.mxu0 %v1372
    %1999 = vmatpush.bf16.msra.mxu0 %v1364
    %2000 = vmatpush.bf16.msra.mxu0 %v1356
    %2001 = vmatmul.bf16.gmra.mxu0 %v386
    %v2002 = vpop.f32.mrf.mxu0
    %v2003 = vadd.f32 %v1989, %v2002
    %v2004 = vpop.f32.mrf.mxu0
    %v2005 = vadd.f32 %v1991, %v2004
    %2006 = vdwg.mxu0
    %2007 = vmatpush.bf16.msra.mxu0 %v1221
    %2008 = vmatpush.bf16.msra.mxu0 %v1213
    %2009 = vmatpush.bf16.msra.mxu0 %v1205
    %2010 = vmatpush.bf16.msra.mxu0 %v1197
    %2011 = vmatpush.bf16.msra.mxu0 %v1189
    %2012 = vmatpush.bf16.msra.mxu0 %v1181
    %2013 = vmatpush.bf16.msra.mxu0 %v1173
    %2014 = vmatpush.bf16.msra.mxu0 %v1165
    %2015 = vmatmul.bf16.gmra.mxu0 %v383
    %v2016 = vpop.f32.mrf.mxu0
    %v2017 = vadd.f32 0.0, %v2016
    %v2018 = vpop.f32.mrf.mxu0
    %v2019 = vadd.f32 0.0, %v2018
    %2020 = vdwg.mxu0
    %2021 = vmatpush.bf16.msra.mxu0 %v1285
    %2022 = vmatpush.bf16.msra.mxu0 %v1277
    %2023 = vmatpush.bf16.msra.mxu0 %v1269
    %2024 = vmatpush.bf16.msra.mxu0 %v1261
    %2025 = vmatpush.bf16.msra.mxu0 %v1253
    %2026 = vmatpush.bf16.msra.mxu0 %v1245
    %2027 = vmatpush.bf16.msra.mxu0 %v1237
    %2028 = vmatpush.bf16.msra.mxu0 %v1229
    %2029 = vmatmul.bf16.gmra.mxu0 %v384
    %v2030 = vpop.f32.mrf.mxu0
    %v2031 = vadd.f32 %v2017, %v2030
    %v2032 = vpop.f32.mrf.mxu0
    %v2033 = vadd.f32 %v2019, %v2032
    %2034 = vdwg.mxu0
    %2035 = vmatpush.bf16.msra.mxu0 %v1349
    %2036 = vmatpush.bf16.msra.mxu0 %v1341
    %2037 = vmatpush.bf16.msra.mxu0 %v1333
    %2038 = vmatpush.bf16.msra.mxu0 %v1325
    %2039 = vmatpush.bf16.msra.mxu0 %v1317
    %2040 = vmatpush.bf16.msra.mxu0 %v1309
    %2041 = vmatpush.bf16.msra.mxu0 %v1301
    %2042 = vmatpush.bf16.msra.mxu0 %v1293
    %2043 = vmatmul.bf16.gmra.mxu0 %v385
    %v2044 = vpop.f32.mrf.mxu0
    %v2045 = vadd.f32 %v2031, %v2044
    %v2046 = vpop.f32.mrf.mxu0
    %v2047 = vadd.f32 %v2033, %v2046
    %2048 = vdwg.mxu0
    %2049 = vmatpush.bf16.msra.mxu0 %v1413
    %2050 = vmatpush.bf16.msra.mxu0 %v1405
    %2051 = vmatpush.bf16.msra.mxu0 %v1397
    %2052 = vmatpush.bf16.msra.mxu0 %v1389
    %2053 = vmatpush.bf16.msra.mxu0 %v1381
    %2054 = vmatpush.bf16.msra.mxu0 %v1373
    %2055 = vmatpush.bf16.msra.mxu0 %v1365
    %2056 = vmatpush.bf16.msra.mxu0 %v1357
    %2057 = vmatmul.bf16.gmra.mxu0 %v386
    %v2058 = vpop.f32.mrf.mxu0
    %v2059 = vadd.f32 %v2045, %v2058
    %v2060 = vpop.f32.mrf.mxu0
    %v2061 = vadd.f32 %v2047, %v2060
    %2062 = vdwg.mxu0
    %2063 = vmatpush.bf16.msra.mxu0 %v1222
    %2064 = vmatpush.bf16.msra.mxu0 %v1214
    %2065 = vmatpush.bf16.msra.mxu0 %v1206
    %2066 = vmatpush.bf16.msra.mxu0 %v1198
    %2067 = vmatpush.bf16.msra.mxu0 %v1190
    %2068 = vmatpush.bf16.msra.mxu0 %v1182
    %2069 = vmatpush.bf16.msra.mxu0 %v1174
    %2070 = vmatpush.bf16.msra.mxu0 %v1166
    %2071 = vmatmul.bf16.gmra.mxu0 %v383
    %v2072 = vpop.f32.mrf.mxu0
    %v2073 = vadd.f32 0.0, %v2072
    %v2074 = vpop.f32.mrf.mxu0
    %v2075 = vadd.f32 0.0, %v2074
    %2076 = vdwg.mxu0
    %2077 = vmatpush.bf16.msra.mxu0 %v1286
    %2078 = vmatpush.bf16.msra.mxu0 %v1278
    %2079 = vmatpush.bf16.msra.mxu0 %v1270
    %2080 = vmatpush.bf16.msra.mxu0 %v1262
    %2081 = vmatpush.bf16.msra.mxu0 %v1254
    %2082 = vmatpush.bf16.msra.mxu0 %v1246
    %2083 = vmatpush.bf16.msra.mxu0 %v1238
    %2084 = vmatpush.bf16.msra.mxu0 %v1230
    %2085 = vmatmul.bf16.gmra.mxu0 %v384
    %v2086 = vpop.f32.mrf.mxu0
    %v2087 = vadd.f32 %v2073, %v2086
    %v2088 = vpop.f32.mrf.mxu0
    %v2089 = vadd.f32 %v2075, %v2088
    %2090 = vdwg.mxu0
    %2091 = vmatpush.bf16.msra.mxu0 %v1350
    %2092 = vmatpush.bf16.msra.mxu0 %v1342
    %2093 = vmatpush.bf16.msra.mxu0 %v1334
    %2094 = vmatpush.bf16.msra.mxu0 %v1326
    %2095 = vmatpush.bf16.msra.mxu0 %v1318
    %2096 = vmatpush.bf16.msra.mxu0 %v1310
    %2097 = vmatpush.bf16.msra.mxu0 %v1302
    %2098 = vmatpush.bf16.msra.mxu0 %v1294
    %2099 = vmatmul.bf16.gmra.mxu0 %v385
    %v2100 = vpop.f32.mrf.mxu0
    %v2101 = vadd.f32 %v2087, %v2100
    %v2102 = vpop.f32.mrf.mxu0
    %v2103 = vadd.f32 %v2089, %v2102
    %2104 = vdwg.mxu0
    %2105 = vmatpush.bf16.msra.mxu0 %v1414
    %2106 = vmatpush.bf16.msra.mxu0 %v1406
    %2107 = vmatpush.bf16.msra.mxu0 %v1398
    %2108 = vmatpush.bf16.msra.mxu0 %v1390
    %2109 = vmatpush.bf16.msra.mxu0 %v1382
    %2110 = vmatpush.bf16.msra.mxu0 %v1374
    %2111 = vmatpush.bf16.msra.mxu0 %v1366
    %2112 = vmatpush.bf16.msra.mxu0 %v1358
    %2113 = vmatmul.bf16.gmra.mxu0 %v386
    %v2114 = vpop.f32.mrf.mxu0
    %v2115 = vadd.f32 %v2101, %v2114
    %v2116 = vpop.f32.mrf.mxu0
    %v2117 = vadd.f32 %v2103, %v2116
    %2118 = vdwg.mxu0
    %2119 = vst [vmem:[#allocation2] sm:$0xff] %v1723
    %2120 = vst [vmem:[#allocation2 + $0x8] sm:$0xff] %v1779
    %2121 = vst [vmem:[#allocation2 + $0x10] sm:$0xff] %v1835
    %2122 = vst [vmem:[#allocation2 + $0x18] sm:$0xff] %v1891
    %2123 = vst [vmem:[#allocation2 + $0x20] sm:$0xff] %v1947
    %2124 = vst [vmem:[#allocation2 + $0x28] sm:$0xff] %v2003
    %2125 = vst [vmem:[#allocation2 + $0x30] sm:$0xff] %v2059
    %2126 = vst [vmem:[#allocation2 + $0x38] sm:$0xff] %v2115
    %2127 = vst [vmem:[#allocation2 + $0x40] sm:$0xff] %v1725
    %2128 = vst [vmem:[#allocation2 + $0x48] sm:$0xff] %v1781
    %2129 = vst [vmem:[#allocation2 + $0x50] sm:$0xff] %v1837
    %2130 = vst [vmem:[#allocation2 + $0x58] sm:$0xff] %v1893
    %2131 = vst [vmem:[#allocation2 + $0x60] sm:$0xff] %v1949
    %2132 = vst [vmem:[#allocation2 + $0x68] sm:$0xff] %v2005
    %2133 = vst [vmem:[#allocation2 + $0x70] sm:$0xff] %v2061
    %2134 = vst [vmem:[#allocation2 + $0x78] sm:$0xff] %v2117
    %v2135 = vld [vmem:[#allocation2] sm:$0x3]
    %v2136 = vld [vmem:[#allocation2 + $0x8] sm:$0x3]
    %v2137 = vld [vmem:[#allocation2 + $0x10] sm:$0x3]
    %v2138 = vld [vmem:[#allocation2 + $0x18] sm:$0x3]
    %v2139 = vld [vmem:[#allocation2 + $0x20] sm:$0xc]
    %v2140 = vld [vmem:[#allocation2 + $0x28] sm:$0xc]
    %v2141 = vld [vmem:[#allocation2 + $0x30] sm:$0xc]
    %v2142 = vld [vmem:[#allocation2 + $0x38] sm:$0xc]
    %v2147 = vrot.slane %v2139, 2
    %v2148 = vrot.slane %v2140, 2
    %v2149 = vrot.slane %v2141, 2
    %v2150 = vrot.slane %v2142, 2
    %v2155 = vadd.f32 %v2135, %v2147
    %v2156 = vadd.f32 %v2136, %v2148
    %v2157 = vadd.f32 %v2137, %v2149
    %v2158 = vadd.f32 %v2138, %v2150
    %v2159 = vld [vmem:[#allocation2] sm:$0xc]
    %v2160 = vld [vmem:[#allocation2 + $0x8] sm:$0xc]
    %v2161 = vld [vmem:[#allocation2 + $0x10] sm:$0xc]
    %v2162 = vld [vmem:[#allocation2 + $0x18] sm:$0xc]
    %v2163 = vld [vmem:[#allocation2 + $0x20] sm:$0x30]
    %v2164 = vld [vmem:[#allocation2 + $0x28] sm:$0x30]
    %v2165 = vld [vmem:[#allocation2 + $0x30] sm:$0x30]
    %v2166 = vld [vmem:[#allocation2 + $0x38] sm:$0x30]
    %v2171 = vrot.slane %v2163, 2
    %v2172 = vrot.slane %v2164, 2
    %v2173 = vrot.slane %v2165, 2
    %v2174 = vrot.slane %v2166, 2
    %v2179 = vadd.f32 %v2159, %v2171
    %v2180 = vadd.f32 %v2160, %v2172
    %v2181 = vadd.f32 %v2161, %v2173
    %v2182 = vadd.f32 %v2162, %v2174
    %v2187 = vrot.slane %v2179, 2
    %v2188 = vrot.slane %v2180, 2
    %v2189 = vrot.slane %v2181, 2
    %v2190 = vrot.slane %v2182, 2
    %v2195 = vmax.f32 %v2155, %v2187
    %v2196 = vmax.f32 %v2156, %v2188
    %v2197 = vmax.f32 %v2157, %v2189
    %v2198 = vmax.f32 %v2158, %v2190
    %v2199 = vld [vmem:[#allocation2] sm:$0x30]
    %v2200 = vld [vmem:[#allocation2 + $0x8] sm:$0x30]
    %v2201 = vld [vmem:[#allocation2 + $0x10] sm:$0x30]
    %v2202 = vld [vmem:[#allocation2 + $0x18] sm:$0x30]
    %v2203 = vld [vmem:[#allocation2 + $0x20] sm:$0xc0]
    %v2204 = vld [vmem:[#allocation2 + $0x28] sm:$0xc0]
    %v2205 = vld [vmem:[#allocation2 + $0x30] sm:$0xc0]
    %v2206 = vld [vmem:[#allocation2 + $0x38] sm:$0xc0]
    %v2211 = vrot.slane %v2203, 2
    %v2212 = vrot.slane %v2204, 2
    %v2213 = vrot.slane %v2205, 2
    %v2214 = vrot.slane %v2206, 2
    %v2219 = vadd.f32 %v2199, %v2211
    %v2220 = vadd.f32 %v2200, %v2212
    %v2221 = vadd.f32 %v2201, %v2213
    %v2222 = vadd.f32 %v2202, %v2214
    %v2227 = vrot.slane %v2219, 4
    %v2228 = vrot.slane %v2220, 4
    %v2229 = vrot.slane %v2221, 4
    %v2230 = vrot.slane %v2222, 4
    %v2235 = vmax.f32 %v2195, %v2227
    %v2236 = vmax.f32 %v2196, %v2228
    %v2237 = vmax.f32 %v2197, %v2229
    %v2238 = vmax.f32 %v2198, %v2230
    %v2239 = vld [vmem:[#allocation2] sm:$0xc0]
    %v2240 = vld [vmem:[#allocation2 + $0x8] sm:$0xc0]
    %v2241 = vld [vmem:[#allocation2 + $0x10] sm:$0xc0]
    %v2242 = vld [vmem:[#allocation2 + $0x18] sm:$0xc0]
    %v2243 = vld [vmem:[#allocation2 + $0x60] sm:$0x3]
    %v2244 = vld [vmem:[#allocation2 + $0x68] sm:$0x3]
    %v2245 = vld [vmem:[#allocation2 + $0x70] sm:$0x3]
    %v2246 = vld [vmem:[#allocation2 + $0x78] sm:$0x3]
    %v2251 = vrot.slane %v2243, 2
    %v2252 = vrot.slane %v2244, 2
    %v2253 = vrot.slane %v2245, 2
    %v2254 = vrot.slane %v2246, 2
    %v2259 = vadd.f32 %v2239, %v2251
    %v2260 = vadd.f32 %v2240, %v2252
    %v2261 = vadd.f32 %v2241, %v2253
    %v2262 = vadd.f32 %v2242, %v2254
    %v2267 = vrot.slane %v2259, 6
    %v2268 = vrot.slane %v2260, 6
    %v2269 = vrot.slane %v2261, 6
    %v2270 = vrot.slane %v2262, 6
    %v2275 = vmax.f32 %v2235, %v2267
    %v2276 = vmax.f32 %v2236, %v2268
    %v2277 = vmax.f32 %v2237, %v2269
    %v2278 = vmax.f32 %v2238, %v2270
    %v2279 = vld [vmem:[#allocation2 + $0x40] sm:$0x3]
    %v2280 = vld [vmem:[#allocation2 + $0x48] sm:$0x3]
    %v2281 = vld [vmem:[#allocation2 + $0x50] sm:$0x3]
    %v2282 = vld [vmem:[#allocation2 + $0x58] sm:$0x3]
    %v2283 = vld [vmem:[#allocation2 + $0x60] sm:$0xc]
    %v2284 = vld [vmem:[#allocation2 + $0x68] sm:$0xc]
    %v2285 = vld [vmem:[#allocation2 + $0x70] sm:$0xc]
    %v2286 = vld [vmem:[#allocation2 + $0x78] sm:$0xc]
    %v2291 = vrot.slane %v2283, 2
    %v2292 = vrot.slane %v2284, 2
    %v2293 = vrot.slane %v2285, 2
    %v2294 = vrot.slane %v2286, 2
    %v2299 = vadd.f32 %v2279, %v2291
    %v2300 = vadd.f32 %v2280, %v2292
    %v2301 = vadd.f32 %v2281, %v2293
    %v2302 = vadd.f32 %v2282, %v2294
    %v2303 = vmax.f32 %v2275, %v2299
    %v2304 = vmax.f32 %v2276, %v2300
    %v2305 = vmax.f32 %v2277, %v2301
    %v2306 = vmax.f32 %v2278, %v2302
    %v2307 = vld [vmem:[#allocation2 + $0x40] sm:$0xc]
    %v2308 = vld [vmem:[#allocation2 + $0x48] sm:$0xc]
    %v2309 = vld [vmem:[#allocation2 + $0x50] sm:$0xc]
    %v2310 = vld [vmem:[#allocation2 + $0x58] sm:$0xc]
    %v2311 = vld [vmem:[#allocation2 + $0x60] sm:$0x30]
    %v2312 = vld [vmem:[#allocation2 + $0x68] sm:$0x30]
    %v2313 = vld [vmem:[#allocation2 + $0x70] sm:$0x30]
    %v2314 = vld [vmem:[#allocation2 + $0x78] sm:$0x30]
    %v2319 = vrot.slane %v2311, 2
    %v2320 = vrot.slane %v2312, 2
    %v2321 = vrot.slane %v2313, 2
    %v2322 = vrot.slane %v2314, 2
    %v2327 = vadd.f32 %v2307, %v2319
    %v2328 = vadd.f32 %v2308, %v2320
    %v2329 = vadd.f32 %v2309, %v2321
    %v2330 = vadd.f32 %v2310, %v2322
    %v2335 = vrot.slane %v2327, 2
    %v2336 = vrot.slane %v2328, 2
    %v2337 = vrot.slane %v2329, 2
    %v2338 = vrot.slane %v2330, 2
    %v2343 = vmax.f32 %v2303, %v2335
    %v2344 = vmax.f32 %v2304, %v2336
    %v2345 = vmax.f32 %v2305, %v2337
    %v2346 = vmax.f32 %v2306, %v2338
    %v2347 = vld [vmem:[#allocation2 + $0x40] sm:$0x30]
    %v2348 = vld [vmem:[#allocation2 + $0x48] sm:$0x30]
    %v2349 = vld [vmem:[#allocation2 + $0x50] sm:$0x30]
    %v2350 = vld [vmem:[#allocation2 + $0x58] sm:$0x30]
    %v2351 = vld [vmem:[#allocation2 + $0x60] sm:$0xc0]
    %v2352 = vld [vmem:[#allocation2 + $0x68] sm:$0xc0]
    %v2353 = vld [vmem:[#allocation2 + $0x70] sm:$0xc0]
    %v2354 = vld [vmem:[#allocation2 + $0x78] sm:$0xc0]
    %v2359 = vrot.slane %v2351, 2
    %v2360 = vrot.slane %v2352, 2
    %v2361 = vrot.slane %v2353, 2
    %v2362 = vrot.slane %v2354, 2
    %v2367 = vadd.f32 %v2347, %v2359
    %v2368 = vadd.f32 %v2348, %v2360
    %v2369 = vadd.f32 %v2349, %v2361
    %v2370 = vadd.f32 %v2350, %v2362
    %v2375 = vrot.slane %v2367, 4
    %v2376 = vrot.slane %v2368, 4
    %v2377 = vrot.slane %v2369, 4
    %v2378 = vrot.slane %v2370, 4
    %v2383 = vmax.f32 %v2343, %v2375
    %v2384 = vmax.f32 %v2344, %v2376
    %v2385 = vmax.f32 %v2345, %v2377
    %v2386 = vmax.f32 %v2346, %v2378
    %v2387 = vld [vmem:[%s5] sm:$0xf]
    %v2389 = vperm.slane %v2387, 0
    %v2390 = vperm.slane %v2387, 1
    %v2391 = vperm.slane %v2387, 2
    %v2392 = vperm.slane %v2387, 3
    %v2397 = vadd.f32 %v2383, %v2389
    %v2398 = vadd.f32 %v2384, %v2390
    %v2399 = vadd.f32 %v2385, %v2391
    %v2400 = vadd.f32 %v2386, %v2392
    %v2401 = vld [vmem:[%s3] sm:$0x3]
    %vm2402 = vcmask 15360
    %v2404 = vsel %vm2402, %v2401, 0
    %vm2406 = vcmask 1041408
    %v2408 = vsel %vm2406, %v2397, 0
    %v2411 = vsel %vm2406, %v2398, 0
    %v2414 = vsel %vm2406, %v2399, 0
    %v2417 = vsel %vm2406, %v2400, 0
    %2419 = vmatpush.msra.mxu0 0.0
    %2420 = vmatpush.msra.mxu0 0.0
    %2421 = vmatpush.msra.mxu0 0.0
    %2422 = vmatpush.msra.mxu0 0.0
    %2423 = vmatpush.msra.mxu0 0.0
    %2424 = vmatpush.msra.mxu0 0.0
    %2425 = vmatpush.msra.mxu0 0.0
    %2426 = vmatpush.msra.mxu0 0.0
    %2427 = vmatpush.msra.mxu0 0.0
    %2428 = vmatpush.msra.mxu0 0.0
    %2429 = vmatpush.msra.mxu0 0.0
    %2430 = vmatpush.msra.mxu0 0.0
    %2431 = vmatpush.msra.mxu0 0.0
    %2432 = vmatpush.msra.mxu0 0.0
    %2433 = vmatpush.msra.mxu0 0.0
    %2434 = vmatpush.msra.mxu0 %v2408
    %2435 = vmatmul.f32.gmra.mxu0 %v2404
    %v2436 = vpop.f32.mrf.mxu0
    %v2437 = vadd.f32 0.0, %v2436
    %2438 = vdwg.mxu0
    %2439 = vmatpush.msra.mxu0 0.0
    %2440 = vmatpush.msra.mxu0 0.0
    %2441 = vmatpush.msra.mxu0 0.0
    %2442 = vmatpush.msra.mxu0 0.0
    %2443 = vmatpush.msra.mxu0 0.0
    %2444 = vmatpush.msra.mxu0 0.0
    %2445 = vmatpush.msra.mxu0 0.0
    %2446 = vmatpush.msra.mxu0 0.0
    %2447 = vmatpush.msra.mxu0 0.0
    %2448 = vmatpush.msra.mxu0 0.0
    %2449 = vmatpush.msra.mxu0 0.0
    %2450 = vmatpush.msra.mxu0 0.0
    %2451 = vmatpush.msra.mxu0 0.0
    %2452 = vmatpush.msra.mxu0 0.0
    %2453 = vmatpush.msra.mxu0 0.0
    %2454 = vmatpush.msra.mxu0 %v2411
    %2455 = vmatmul.f32.gmra.mxu0 %v2404
    %v2456 = vpop.f32.mrf.mxu0
    %v2457 = vadd.f32 0.0, %v2456
    %2458 = vdwg.mxu0
    %2459 = vmatpush.msra.mxu0 0.0
    %2460 = vmatpush.msra.mxu0 0.0
    %2461 = vmatpush.msra.mxu0 0.0
    %2462 = vmatpush.msra.mxu0 0.0
    %2463 = vmatpush.msra.mxu0 0.0
    %2464 = vmatpush.msra.mxu0 0.0
    %2465 = vmatpush.msra.mxu0 0.0
    %2466 = vmatpush.msra.mxu0 0.0
    %2467 = vmatpush.msra.mxu0 0.0
    %2468 = vmatpush.msra.mxu0 0.0
    %2469 = vmatpush.msra.mxu0 0.0
    %2470 = vmatpush.msra.mxu0 0.0
    %2471 = vmatpush.msra.mxu0 0.0
    %2472 = vmatpush.msra.mxu0 0.0
    %2473 = vmatpush.msra.mxu0 0.0
    %2474 = vmatpush.msra.mxu0 %v2414
    %2475 = vmatmul.f32.gmra.mxu0 %v2404
    %v2476 = vpop.f32.mrf.mxu0
    %v2477 = vadd.f32 0.0, %v2476
    %2478 = vdwg.mxu0
    %2479 = vmatpush.msra.mxu0 0.0
    %2480 = vmatpush.msra.mxu0 0.0
    %2481 = vmatpush.msra.mxu0 0.0
    %2482 = vmatpush.msra.mxu0 0.0
    %2483 = vmatpush.msra.mxu0 0.0
    %2484 = vmatpush.msra.mxu0 0.0
    %2485 = vmatpush.msra.mxu0 0.0
    %2486 = vmatpush.msra.mxu0 0.0
    %2487 = vmatpush.msra.mxu0 0.0
    %2488 = vmatpush.msra.mxu0 0.0
    %2489 = vmatpush.msra.mxu0 0.0
    %2490 = vmatpush.msra.mxu0 0.0
    %2491 = vmatpush.msra.mxu0 0.0
    %2492 = vmatpush.msra.mxu0 0.0
    %2493 = vmatpush.msra.mxu0 0.0
    %2494 = vmatpush.msra.mxu0 %v2417
    %2495 = vmatmul.f32.gmra.mxu0 %v2404
    %v2496 = vpop.f32.mrf.mxu0
    %v2497 = vadd.f32 0.0, %v2496
    %2498 = vdwg.mxu0
    %v2499 = vsub.f32 %v2397, %v2437
    %v2500 = vsub.f32 %v2398, %v2457
    %v2501 = vsub.f32 %v2399, %v2477
    %v2502 = vsub.f32 %v2400, %v2497
    %v2503 = vmul.f32 %v2499, %v2499
    %v2504 = vmul.f32 %v2500, %v2500
    %v2505 = vmul.f32 %v2501, %v2501
    %v2506 = vmul.f32 %v2502, %v2502
    %v2508 = vsel %vm2406, %v2503, 0
    %v2511 = vsel %vm2406, %v2504, 0
    %v2514 = vsel %vm2406, %v2505, 0
    %v2517 = vsel %vm2406, %v2506, 0
    %2519 = vmatpush.msra.mxu0 0.0
    %2520 = vmatpush.msra.mxu0 0.0
    %2521 = vmatpush.msra.mxu0 0.0
    %2522 = vmatpush.msra.mxu0 0.0
    %2523 = vmatpush.msra.mxu0 0.0
    %2524 = vmatpush.msra.mxu0 0.0
    %2525 = vmatpush.msra.mxu0 0.0
    %2526 = vmatpush.msra.mxu0 0.0
    %2527 = vmatpush.msra.mxu0 0.0
    %2528 = vmatpush.msra.mxu0 0.0
    %2529 = vmatpush.msra.mxu0 0.0
    %2530 = vmatpush.msra.mxu0 0.0
    %2531 = vmatpush.msra.mxu0 0.0
    %2532 = vmatpush.msra.mxu0 0.0
    %2533 = vmatpush.msra.mxu0 0.0
    %2534 = vmatpush.msra.mxu0 %v2508
    %2535 = vmatmul.f32.gmra.mxu0 %v2404
    %v2536 = vpop.f32.mrf.mxu0
    %v2537 = vadd.f32 1e-05, %v2536
    %2538 = vdwg.mxu0
    %2539 = vmatpush.msra.mxu0 0.0
    %2540 = vmatpush.msra.mxu0 0.0
    %2541 = vmatpush.msra.mxu0 0.0
    %2542 = vmatpush.msra.mxu0 0.0
    %2543 = vmatpush.msra.mxu0 0.0
    %2544 = vmatpush.msra.mxu0 0.0
    %2545 = vmatpush.msra.mxu0 0.0
    %2546 = vmatpush.msra.mxu0 0.0
    %2547 = vmatpush.msra.mxu0 0.0
    %2548 = vmatpush.msra.mxu0 0.0
    %2549 = vmatpush.msra.mxu0 0.0
    %2550 = vmatpush.msra.mxu0 0.0
    %2551 = vmatpush.msra.mxu0 0.0
    %2552 = vmatpush.msra.mxu0 0.0
    %2553 = vmatpush.msra.mxu0 0.0
    %2554 = vmatpush.msra.mxu0 %v2511
    %2555 = vmatmul.f32.gmra.mxu0 %v2404
    %v2556 = vpop.f32.mrf.mxu0
    %v2557 = vadd.f32 1e-05, %v2556
    %2558 = vdwg.mxu0
    %2559 = vmatpush.msra.mxu0 0.0
    %2560 = vmatpush.msra.mxu0 0.0
    %2561 = vmatpush.msra.mxu0 0.0
    %2562 = vmatpush.msra.mxu0 0.0
    %2563 = vmatpush.msra.mxu0 0.0
    %2564 = vmatpush.msra.mxu0 0.0
    %2565 = vmatpush.msra.mxu0 0.0
    %2566 = vmatpush.msra.mxu0 0.0
    %2567 = vmatpush.msra.mxu0 0.0
    %2568 = vmatpush.msra.mxu0 0.0
    %2569 = vmatpush.msra.mxu0 0.0
    %2570 = vmatpush.msra.mxu0 0.0
    %2571 = vmatpush.msra.mxu0 0.0
    %2572 = vmatpush.msra.mxu0 0.0
    %2573 = vmatpush.msra.mxu0 0.0
    %2574 = vmatpush.msra.mxu0 %v2514
    %2575 = vmatmul.f32.gmra.mxu0 %v2404
    %v2576 = vpop.f32.mrf.mxu0
    %v2577 = vadd.f32 1e-05, %v2576
    %2578 = vdwg.mxu0
    %2579 = vmatpush.msra.mxu0 0.0
    %2580 = vmatpush.msra.mxu0 0.0
    %2581 = vmatpush.msra.mxu0 0.0
    %2582 = vmatpush.msra.mxu0 0.0
    %2583 = vmatpush.msra.mxu0 0.0
    %2584 = vmatpush.msra.mxu0 0.0
    %2585 = vmatpush.msra.mxu0 0.0
    %2586 = vmatpush.msra.mxu0 0.0
    %2587 = vmatpush.msra.mxu0 0.0
    %2588 = vmatpush.msra.mxu0 0.0
    %2589 = vmatpush.msra.mxu0 0.0
    %2590 = vmatpush.msra.mxu0 0.0
    %2591 = vmatpush.msra.mxu0 0.0
    %2592 = vmatpush.msra.mxu0 0.0
    %2593 = vmatpush.msra.mxu0 0.0
    %2594 = vmatpush.msra.mxu0 %v2517
    %2595 = vmatmul.f32.gmra.mxu0 %v2404
    %v2596 = vpop.f32.mrf.mxu0
    %v2597 = vadd.f32 1e-05, %v2596
    %2598 = vdwg.mxu0
    %v2599 = vrsqrt.pop %v2537
    %v2600 = vmul.f32 %v2599, %v2537
    %v2601 = vmul.f32 %v2600, %v2599
    %v2602 = vmul.f32 0.5, %v2601
    %v2603 = vsub.f32 1.5, %v2602
    %v2604 = vmul.f32 %v2599, %v2603
    %vm2605 = vweird.f32 %v2537
    %vm2606 = vweird.f32 %v2599
    %vm2607 = vmor %vm2605, %vm2606
    %v2608 = vsel %vm2607, %v2599, %v2604
    %v2609 = vrsqrt.pop %v2557
    %v2610 = vmul.f32 %v2609, %v2557
    %v2611 = vmul.f32 %v2610, %v2609
    %v2612 = vmul.f32 0.5, %v2611
    %v2613 = vsub.f32 1.5, %v2612
    %v2614 = vmul.f32 %v2609, %v2613
    %vm2615 = vweird.f32 %v2557
    %vm2616 = vweird.f32 %v2609
    %vm2617 = vmor %vm2615, %vm2616
    %v2618 = vsel %vm2617, %v2609, %v2614
    %v2619 = vrsqrt.pop %v2577
    %v2620 = vmul.f32 %v2619, %v2577
    %v2621 = vmul.f32 %v2620, %v2619
    %v2622 = vmul.f32 0.5, %v2621
    %v2623 = vsub.f32 1.5, %v2622
    %v2624 = vmul.f32 %v2619, %v2623
    %vm2625 = vweird.f32 %v2577
    %vm2626 = vweird.f32 %v2619
    %vm2627 = vmor %vm2625, %vm2626
    %v2628 = vsel %vm2627, %v2619, %v2624
    %v2629 = vrsqrt.pop %v2597
    %v2630 = vmul.f32 %v2629, %v2597
    %v2631 = vmul.f32 %v2630, %v2629
    %v2632 = vmul.f32 0.5, %v2631
    %v2633 = vsub.f32 1.5, %v2632
    %v2634 = vmul.f32 %v2629, %v2633
    %vm2635 = vweird.f32 %v2597
    %vm2636 = vweird.f32 %v2629
    %vm2637 = vmor %vm2635, %vm2636
    %v2638 = vsel %vm2637, %v2629, %v2634
    %v2639 = vmul.f32 %v2499, %v2608
    %v2640 = vmul.f32 %v2500, %v2618
    %v2641 = vmul.f32 %v2501, %v2628
    %v2642 = vmul.f32 %v2502, %v2638
    %v2643 = vld [vmem:[%s6] sm:$0xf]
    %v2645 = vperm.slane %v2643, 0
    %v2646 = vperm.slane %v2643, 1
    %v2647 = vperm.slane %v2643, 2
    %v2648 = vperm.slane %v2643, 3
    %v2653 = vmul.f32 %v2639, %v2645
    %v2654 = vmul.f32 %v2640, %v2646
    %v2655 = vmul.f32 %v2641, %v2647
    %v2656 = vmul.f32 %v2642, %v2648
    %v2657 = vld [vmem:[%s7] sm:$0xf]
    %v2659 = vperm.slane %v2657, 0
    %v2660 = vperm.slane %v2657, 1
    %v2661 = vperm.slane %v2657, 2
    %v2662 = vperm.slane %v2657, 3
    %v2667 = vadd.f32 %v2653, %v2659
    %v2668 = vadd.f32 %v2654, %v2660
    %v2669 = vadd.f32 %v2655, %v2661
    %v2670 = vadd.f32 %v2656, %v2662
    %v2671 = vld [vmem:[%s1] sm:$0xf]
    %2673 = vst [vmem:[#allocation1] ss:$4 sm:$0xff] %v2671
    %v2674 = vld.sshfl [vmem:[#allocation1] sm:$0xff pattern:$0x73625140]
    %v2675 = vld.sshfl [vmem:[#allocation1 + $0x8] sm:$0xff pattern:$0x73625140]
    %v2678 = vpack.c.bf16 %v2667, %v2667
    %v2679 = vpack.c.bf16 %v2668, %v2668
    %v2680 = vpack.c.bf16 %v2669, %v2669
    %v2681 = vpack.c.bf16 %v2670, %v2670
    %v2682 = vpack.c.bf16 %v2674, %v2674
    %v2683 = vpack.c.bf16 %v2675, %v2675
    %v2684 = vld [vmem:[#allocation6] sm:$0xff]
    %v2685 = vld [vmem:[#allocation6 + $0x8] sm:$0xff]
    %v2686 = vld [vmem:[#allocation6 + $0x10] sm:$0xff]
    %v2687 = vld [vmem:[#allocation6 + $0x18] sm:$0xff]
    %v2688 = vld [vmem:[#allocation6 + $0x20] sm:$0xff]
    %v2689 = vld [vmem:[#allocation6 + $0x28] sm:$0xff]
    %v2690 = vld [vmem:[#allocation6 + $0x30] sm:$0xff]
    %v2691 = vld [vmem:[#allocation6 + $0x38] sm:$0xff]
    %v2692 = vld [vmem:[#allocation6 + $0x40] sm:$0xff]
    %v2693 = vld [vmem:[#allocation6 + $0x48] sm:$0xff]
    %v2694 = vld [vmem:[#allocation6 + $0x50] sm:$0xff]
    %v2695 = vld [vmem:[#allocation6 + $0x58] sm:$0xff]
    %v2696 = vld [vmem:[#allocation6 + $0x60] sm:$0xff]
    %v2697 = vld [vmem:[#allocation6 + $0x68] sm:$0xff]
    %v2698 = vld [vmem:[#allocation6 + $0x70] sm:$0xff]
    %v2699 = vld [vmem:[#allocation6 + $0x78] sm:$0xff]
    %v2700 = vld [vmem:[#allocation6 + $0x80] sm:$0xff]
    %v2701 = vld [vmem:[#allocation6 + $0x88] sm:$0xff]
    %v2702 = vld [vmem:[#allocation6 + $0x90] sm:$0xff]
    %v2703 = vld [vmem:[#allocation6 + $0x98] sm:$0xff]
    %v2704 = vld [vmem:[#allocation6 + $0xa0] sm:$0xff]
    %v2705 = vld [vmem:[#allocation6 + $0xa8] sm:$0xff]
    %v2706 = vld [vmem:[#allocation6 + $0xb0] sm:$0xff]
    %v2707 = vld [vmem:[#allocation6 + $0xb8] sm:$0xff]
    %v2708 = vld [vmem:[#allocation6 + $0xc0] sm:$0xff]
    %v2709 = vld [vmem:[#allocation6 + $0xc8] sm:$0xff]
    %v2710 = vld [vmem:[#allocation6 + $0xd0] sm:$0xff]
    %v2711 = vld [vmem:[#allocation6 + $0xd8] sm:$0xff]
    %v2712 = vld [vmem:[#allocation6 + $0xe0] sm:$0xff]
    %v2713 = vld [vmem:[#allocation6 + $0xe8] sm:$0xff]
    %v2714 = vld [vmem:[#allocation6 + $0xf0] sm:$0xff]
    %v2715 = vld [vmem:[#allocation6 + $0xf8] sm:$0xff]
    %v2716 = vld [vmem:[#allocation6 + $0x100] sm:$0xff]
    %v2717 = vld [vmem:[#allocation6 + $0x108] sm:$0xff]
    %v2718 = vld [vmem:[#allocation6 + $0x110] sm:$0xff]
    %v2719 = vld [vmem:[#allocation6 + $0x118] sm:$0xff]
    %v2720 = vld [vmem:[#allocation6 + $0x120] sm:$0xff]
    %v2721 = vld [vmem:[#allocation6 + $0x128] sm:$0xff]
    %v2722 = vld [vmem:[#allocation6 + $0x130] sm:$0xff]
    %v2723 = vld [vmem:[#allocation6 + $0x138] sm:$0xff]
    %v2724 = vld [vmem:[#allocation6 + $0x140] sm:$0xff]
    %v2725 = vld [vmem:[#allocation6 + $0x148] sm:$0xff]
    %v2726 = vld [vmem:[#allocation6 + $0x150] sm:$0xff]
    %v2727 = vld [vmem:[#allocation6 + $0x158] sm:$0xff]
    %v2728 = vld [vmem:[#allocation6 + $0x160] sm:$0xff]
    %v2729 = vld [vmem:[#allocation6 + $0x168] sm:$0xff]
    %v2730 = vld [vmem:[#allocation6 + $0x170] sm:$0xff]
    %v2731 = vld [vmem:[#allocation6 + $0x178] sm:$0xff]
    %v2732 = vld [vmem:[#allocation6 + $0x180] sm:$0xff]
    %v2733 = vld [vmem:[#allocation6 + $0x188] sm:$0xff]
    %v2734 = vld [vmem:[#allocation6 + $0x190] sm:$0xff]
    %v2735 = vld [vmem:[#allocation6 + $0x198] sm:$0xff]
    %v2736 = vld [vmem:[#allocation6 + $0x1a0] sm:$0xff]
    %v2737 = vld [vmem:[#allocation6 + $0x1a8] sm:$0xff]
    %v2738 = vld [vmem:[#allocation6 + $0x1b0] sm:$0xff]
    %v2739 = vld [vmem:[#allocation6 + $0x1b8] sm:$0xff]
    %v2740 = vld [vmem:[#allocation6 + $0x1c0] sm:$0xff]
    %v2741 = vld [vmem:[#allocation6 + $0x1c8] sm:$0xff]
    %v2742 = vld [vmem:[#allocation6 + $0x1d0] sm:$0xff]
    %v2743 = vld [vmem:[#allocation6 + $0x1d8] sm:$0xff]
    %v2744 = vld [vmem:[#allocation6 + $0x1e0] sm:$0xff]
    %v2745 = vld [vmem:[#allocation6 + $0x1e8] sm:$0xff]
    %v2746 = vld [vmem:[#allocation6 + $0x1f0] sm:$0xff]
    %v2747 = vld [vmem:[#allocation6 + $0x1f8] sm:$0xff]
    %v2748 = vld [vmem:[#allocation6 + $0x200] sm:$0xff]
    %v2749 = vld [vmem:[#allocation6 + $0x208] sm:$0xff]
    %v2750 = vld [vmem:[#allocation6 + $0x210] sm:$0xff]
    %v2751 = vld [vmem:[#allocation6 + $0x218] sm:$0xff]
    %v2752 = vld [vmem:[#allocation6 + $0x220] sm:$0xff]
    %v2753 = vld [vmem:[#allocation6 + $0x228] sm:$0xff]
    %v2754 = vld [vmem:[#allocation6 + $0x230] sm:$0xff]
    %v2755 = vld [vmem:[#allocation6 + $0x238] sm:$0xff]
    %v2756 = vld [vmem:[#allocation6 + $0x240] sm:$0xff]
    %v2757 = vld [vmem:[#allocation6 + $0x248] sm:$0xff]
    %v2758 = vld [vmem:[#allocation6 + $0x250] sm:$0xff]
    %v2759 = vld [vmem:[#allocation6 + $0x258] sm:$0xff]
    %v2760 = vld [vmem:[#allocation6 + $0x260] sm:$0xff]
    %v2761 = vld [vmem:[#allocation6 + $0x268] sm:$0xff]
    %v2762 = vld [vmem:[#allocation6 + $0x270] sm:$0xff]
    %v2763 = vld [vmem:[#allocation6 + $0x278] sm:$0xff]
    %v2764 = vld [vmem:[#allocation6 + $0x280] sm:$0xff]
    %v2765 = vld [vmem:[#allocation6 + $0x288] sm:$0xff]
    %v2766 = vld [vmem:[#allocation6 + $0x290] sm:$0xff]
    %v2767 = vld [vmem:[#allocation6 + $0x298] sm:$0xff]
    %v2768 = vld [vmem:[#allocation6 + $0x2a0] sm:$0xff]
    %v2769 = vld [vmem:[#allocation6 + $0x2a8] sm:$0xff]
    %v2770 = vld [vmem:[#allocation6 + $0x2b0] sm:$0xff]
    %v2771 = vld [vmem:[#allocation6 + $0x2b8] sm:$0xff]
    %v2772 = vld [vmem:[#allocation6 + $0x2c0] sm:$0xff]
    %v2773 = vld [vmem:[#allocation6 + $0x2c8] sm:$0xff]
    %v2774 = vld [vmem:[#allocation6 + $0x2d0] sm:$0xff]
    %v2775 = vld [vmem:[#allocation6 + $0x2d8] sm:$0xff]
    %v2776 = vld [vmem:[#allocation6 + $0x2e0] sm:$0xff]
    %v2777 = vld [vmem:[#allocation6 + $0x2e8] sm:$0xff]
    %v2778 = vld [vmem:[#allocation6 + $0x2f0] sm:$0xff]
    %v2779 = vld [vmem:[#allocation6 + $0x2f8] sm:$0xff]
    %v2780 = vld [vmem:[%s9] sm:$0x3]
    %v2782 = vperm.slane %v2780, 0
    %v2783 = vperm.slane %v2780, 1
    %v2882 = vunpack.c.l.b16 %v2684
    %v2883 = vunpack.c.h.b16 %v2684
    %v2884 = vunpack.c.l.b16 %v2685
    %v2885 = vunpack.c.h.b16 %v2685
    %v2886 = vunpack.c.l.b16 %v2686
    %v2887 = vunpack.c.h.b16 %v2686
    %v2888 = vunpack.c.l.b16 %v2687
    %v2889 = vunpack.c.h.b16 %v2687
    %v2890 = vunpack.c.l.b16 %v2688
    %v2891 = vunpack.c.h.b16 %v2688
    %v2892 = vunpack.c.l.b16 %v2689
    %v2893 = vunpack.c.h.b16 %v2689
    %v2894 = vunpack.c.l.b16 %v2690
    %v2895 = vunpack.c.h.b16 %v2690
    %v2896 = vunpack.c.l.b16 %v2691
    %v2897 = vunpack.c.h.b16 %v2691
    %v2898 = vunpack.c.l.b16 %v2692
    %v2899 = vunpack.c.h.b16 %v2692
    %v2900 = vunpack.c.l.b16 %v2693
    %v2901 = vunpack.c.h.b16 %v2693
    %v2902 = vunpack.c.l.b16 %v2694
    %v2903 = vunpack.c.h.b16 %v2694
    %v2904 = vunpack.c.l.b16 %v2695
    %v2905 = vunpack.c.h.b16 %v2695
    %v2906 = vunpack.c.l.b16 %v2696
    %v2907 = vunpack.c.h.b16 %v2696
    %v2908 = vunpack.c.l.b16 %v2697
    %v2909 = vunpack.c.h.b16 %v2697
    %v2910 = vunpack.c.l.b16 %v2698
    %v2911 = vunpack.c.h.b16 %v2698
    %v2912 = vunpack.c.l.b16 %v2699
    %v2913 = vunpack.c.h.b16 %v2699
    %v2914 = vunpack.c.l.b16 %v2700
    %v2915 = vunpack.c.h.b16 %v2700
    %v2916 = vunpack.c.l.b16 %v2701
    %v2917 = vunpack.c.h.b16 %v2701
    %v2918 = vunpack.c.l.b16 %v2702
    %v2919 = vunpack.c.h.b16 %v2702
    %v2920 = vunpack.c.l.b16 %v2703
    %v2921 = vunpack.c.h.b16 %v2703
    %v2922 = vunpack.c.l.b16 %v2704
    %v2923 = vunpack.c.h.b16 %v2704
    %v2924 = vunpack.c.l.b16 %v2705
    %v2925 = vunpack.c.h.b16 %v2705
    %v2926 = vunpack.c.l.b16 %v2706
    %v2927 = vunpack.c.h.b16 %v2706
    %v2928 = vunpack.c.l.b16 %v2707
    %v2929 = vunpack.c.h.b16 %v2707
    %v2930 = vunpack.c.l.b16 %v2708
    %v2931 = vunpack.c.h.b16 %v2708
    %v2932 = vunpack.c.l.b16 %v2709
    %v2933 = vunpack.c.h.b16 %v2709
    %v2934 = vunpack.c.l.b16 %v2710
    %v2935 = vunpack.c.h.b16 %v2710
    %v2936 = vunpack.c.l.b16 %v2711
    %v2937 = vunpack.c.h.b16 %v2711
    %v2938 = vunpack.c.l.b16 %v2712
    %v2939 = vunpack.c.h.b16 %v2712
    %v2940 = vunpack.c.l.b16 %v2713
    %v2941 = vunpack.c.h.b16 %v2713
    %v2942 = vunpack.c.l.b16 %v2714
    %v2943 = vunpack.c.h.b16 %v2714
    %v2944 = vunpack.c.l.b16 %v2715
    %v2945 = vunpack.c.h.b16 %v2715
    %v2946 = vunpack.c.l.b16 %v2716
    %v2947 = vunpack.c.h.b16 %v2716
    %v2948 = vunpack.c.l.b16 %v2717
    %v2949 = vunpack.c.h.b16 %v2717
    %v2950 = vunpack.c.l.b16 %v2718
    %v2951 = vunpack.c.h.b16 %v2718
    %v2952 = vunpack.c.l.b16 %v2719
    %v2953 = vunpack.c.h.b16 %v2719
    %v2954 = vunpack.c.l.b16 %v2720
    %v2955 = vunpack.c.h.b16 %v2720
    %v2956 = vunpack.c.l.b16 %v2721
    %v2957 = vunpack.c.h.b16 %v2721
    %v2958 = vunpack.c.l.b16 %v2722
    %v2959 = vunpack.c.h.b16 %v2722
    %v2960 = vunpack.c.l.b16 %v2723
    %v2961 = vunpack.c.h.b16 %v2723
    %v2962 = vunpack.c.l.b16 %v2724
    %v2963 = vunpack.c.h.b16 %v2724
    %v2964 = vunpack.c.l.b16 %v2725
    %v2965 = vunpack.c.h.b16 %v2725
    %v2966 = vunpack.c.l.b16 %v2726
    %v2967 = vunpack.c.h.b16 %v2726
    %v2968 = vunpack.c.l.b16 %v2727
    %v2969 = vunpack.c.h.b16 %v2727
    %v2970 = vunpack.c.l.b16 %v2728
    %v2971 = vunpack.c.h.b16 %v2728
    %v2972 = vunpack.c.l.b16 %v2729
    %v2973 = vunpack.c.h.b16 %v2729
    %v2974 = vunpack.c.l.b16 %v2730
    %v2975 = vunpack.c.h.b16 %v2730
    %v2976 = vunpack.c.l.b16 %v2731
    %v2977 = vunpack.c.h.b16 %v2731
    %v2978 = vunpack.c.l.b16 %v2732
    %v2979 = vunpack.c.h.b16 %v2732
    %v2980 = vunpack.c.l.b16 %v2733
    %v2981 = vunpack.c.h.b16 %v2733
    %v2982 = vunpack.c.l.b16 %v2734
    %v2983 = vunpack.c.h.b16 %v2734
    %v2984 = vunpack.c.l.b16 %v2735
    %v2985 = vunpack.c.h.b16 %v2735
    %v2986 = vunpack.c.l.b16 %v2736
    %v2987 = vunpack.c.h.b16 %v2736
    %v2988 = vunpack.c.l.b16 %v2737
    %v2989 = vunpack.c.h.b16 %v2737
    %v2990 = vunpack.c.l.b16 %v2738
    %v2991 = vunpack.c.h.b16 %v2738
    %v2992 = vunpack.c.l.b16 %v2739
    %v2993 = vunpack.c.h.b16 %v2739
    %v2994 = vunpack.c.l.b16 %v2740
    %v2995 = vunpack.c.h.b16 %v2740
    %v2996 = vunpack.c.l.b16 %v2741
    %v2997 = vunpack.c.h.b16 %v2741
    %v2998 = vunpack.c.l.b16 %v2742
    %v2999 = vunpack.c.h.b16 %v2742
    %v3000 = vunpack.c.l.b16 %v2743
    %v3001 = vunpack.c.h.b16 %v2743
    %v3002 = vunpack.c.l.b16 %v2744
    %v3003 = vunpack.c.h.b16 %v2744
    %v3004 = vunpack.c.l.b16 %v2745
    %v3005 = vunpack.c.h.b16 %v2745
    %v3006 = vunpack.c.l.b16 %v2746
    %v3007 = vunpack.c.h.b16 %v2746
    %v3008 = vunpack.c.l.b16 %v2747
    %v3009 = vunpack.c.h.b16 %v2747
    %v3010 = vunpack.c.l.b16 %v2748
    %v3011 = vunpack.c.h.b16 %v2748
    %v3012 = vunpack.c.l.b16 %v2749
    %v3013 = vunpack.c.h.b16 %v2749
    %v3014 = vunpack.c.l.b16 %v2750
    %v3015 = vunpack.c.h.b16 %v2750
    %v3016 = vunpack.c.l.b16 %v2751
    %v3017 = vunpack.c.h.b16 %v2751
    %v3018 = vunpack.c.l.b16 %v2752
    %v3019 = vunpack.c.h.b16 %v2752
    %v3020 = vunpack.c.l.b16 %v2753
    %v3021 = vunpack.c.h.b16 %v2753
    %v3022 = vunpack.c.l.b16 %v2754
    %v3023 = vunpack.c.h.b16 %v2754
    %v3024 = vunpack.c.l.b16 %v2755
    %v3025 = vunpack.c.h.b16 %v2755
    %v3026 = vunpack.c.l.b16 %v2756
    %v3027 = vunpack.c.h.b16 %v2756
    %v3028 = vunpack.c.l.b16 %v2757
    %v3029 = vunpack.c.h.b16 %v2757
    %v3030 = vunpack.c.l.b16 %v2758
    %v3031 = vunpack.c.h.b16 %v2758
    %v3032 = vunpack.c.l.b16 %v2759
    %v3033 = vunpack.c.h.b16 %v2759
    %v3034 = vunpack.c.l.b16 %v2760
    %v3035 = vunpack.c.h.b16 %v2760
    %v3036 = vunpack.c.l.b16 %v2761
    %v3037 = vunpack.c.h.b16 %v2761
    %v3038 = vunpack.c.l.b16 %v2762
    %v3039 = vunpack.c.h.b16 %v2762
    %v3040 = vunpack.c.l.b16 %v2763
    %v3041 = vunpack.c.h.b16 %v2763
    %v3042 = vunpack.c.l.b16 %v2764
    %v3043 = vunpack.c.h.b16 %v2764
    %v3044 = vunpack.c.l.b16 %v2765
    %v3045 = vunpack.c.h.b16 %v2765
    %v3046 = vunpack.c.l.b16 %v2766
    %v3047 = vunpack.c.h.b16 %v2766
    %v3048 = vunpack.c.l.b16 %v2767
    %v3049 = vunpack.c.h.b16 %v2767
    %v3050 = vunpack.c.l.b16 %v2768
    %v3051 = vunpack.c.h.b16 %v2768
    %v3052 = vunpack.c.l.b16 %v2769
    %v3053 = vunpack.c.h.b16 %v2769
    %v3054 = vunpack.c.l.b16 %v2770
    %v3055 = vunpack.c.h.b16 %v2770
    %v3056 = vunpack.c.l.b16 %v2771
    %v3057 = vunpack.c.h.b16 %v2771
    %v3058 = vunpack.c.l.b16 %v2772
    %v3059 = vunpack.c.h.b16 %v2772
    %v3060 = vunpack.c.l.b16 %v2773
    %v3061 = vunpack.c.h.b16 %v2773
    %v3062 = vunpack.c.l.b16 %v2774
    %v3063 = vunpack.c.h.b16 %v2774
    %v3064 = vunpack.c.l.b16 %v2775
    %v3065 = vunpack.c.h.b16 %v2775
    %v3066 = vunpack.c.l.b16 %v2776
    %v3067 = vunpack.c.h.b16 %v2776
    %v3068 = vunpack.c.l.b16 %v2777
    %v3069 = vunpack.c.h.b16 %v2777
    %v3070 = vunpack.c.l.b16 %v2778
    %v3071 = vunpack.c.h.b16 %v2778
    %v3072 = vunpack.c.l.b16 %v2779
    %v3073 = vunpack.c.h.b16 %v2779
    %v3074 = vpack.c.b16 %v2884, %v2882
    %v3075 = vpack.c.b16 %v2885, %v2883
    %v3076 = vpack.c.b16 %v2888, %v2886
    %v3077 = vpack.c.b16 %v2889, %v2887
    %v3078 = vpack.c.b16 %v2892, %v2890
    %v3079 = vpack.c.b16 %v2893, %v2891
    %v3080 = vpack.c.b16 %v2896, %v2894
    %v3081 = vpack.c.b16 %v2897, %v2895
    %v3082 = vpack.c.b16 %v2900, %v2898
    %v3083 = vpack.c.b16 %v2901, %v2899
    %v3084 = vpack.c.b16 %v2904, %v2902
    %v3085 = vpack.c.b16 %v2905, %v2903
    %v3086 = vpack.c.b16 %v2908, %v2906
    %v3087 = vpack.c.b16 %v2909, %v2907
    %v3088 = vpack.c.b16 %v2912, %v2910
    %v3089 = vpack.c.b16 %v2913, %v2911
    %v3090 = vpack.c.b16 %v2916, %v2914
    %v3091 = vpack.c.b16 %v2917, %v2915
    %v3092 = vpack.c.b16 %v2920, %v2918
    %v3093 = vpack.c.b16 %v2921, %v2919
    %v3094 = vpack.c.b16 %v2924, %v2922
    %v3095 = vpack.c.b16 %v2925, %v2923
    %v3096 = vpack.c.b16 %v2928, %v2926
    %v3097 = vpack.c.b16 %v2929, %v2927
    %v3098 = vpack.c.b16 %v2932, %v2930
    %v3099 = vpack.c.b16 %v2933, %v2931
    %v3100 = vpack.c.b16 %v2936, %v2934
    %v3101 = vpack.c.b16 %v2937, %v2935
    %v3102 = vpack.c.b16 %v2940, %v2938
    %v3103 = vpack.c.b16 %v2941, %v2939
    %v3104 = vpack.c.b16 %v2944, %v2942
    %v3105 = vpack.c.b16 %v2945, %v2943
    %v3106 = vpack.c.b16 %v2948, %v2946
    %v3107 = vpack.c.b16 %v2949, %v2947
    %v3108 = vpack.c.b16 %v2952, %v2950
    %v3109 = vpack.c.b16 %v2953, %v2951
    %v3110 = vpack.c.b16 %v2956, %v2954
    %v3111 = vpack.c.b16 %v2957, %v2955
    %v3112 = vpack.c.b16 %v2960, %v2958
    %v3113 = vpack.c.b16 %v2961, %v2959
    %v3114 = vpack.c.b16 %v2964, %v2962
    %v3115 = vpack.c.b16 %v2965, %v2963
    %v3116 = vpack.c.b16 %v2968, %v2966
    %v3117 = vpack.c.b16 %v2969, %v2967
    %v3118 = vpack.c.b16 %v2972, %v2970
    %v3119 = vpack.c.b16 %v2973, %v2971
    %v3120 = vpack.c.b16 %v2976, %v2974
    %v3121 = vpack.c.b16 %v2977, %v2975
    %v3122 = vpack.c.b16 %v2980, %v2978
    %v3123 = vpack.c.b16 %v2981, %v2979
    %v3124 = vpack.c.b16 %v2984, %v2982
    %v3125 = vpack.c.b16 %v2985, %v2983
    %v3126 = vpack.c.b16 %v2988, %v2986
    %v3127 = vpack.c.b16 %v2989, %v2987
    %v3128 = vpack.c.b16 %v2992, %v2990
    %v3129 = vpack.c.b16 %v2993, %v2991
    %v3130 = vpack.c.b16 %v2996, %v2994
    %v3131 = vpack.c.b16 %v2997, %v2995
    %v3132 = vpack.c.b16 %v3000, %v2998
    %v3133 = vpack.c.b16 %v3001, %v2999
    %v3134 = vpack.c.b16 %v3004, %v3002
    %v3135 = vpack.c.b16 %v3005, %v3003
    %v3136 = vpack.c.b16 %v3008, %v3006
    %v3137 = vpack.c.b16 %v3009, %v3007
    %v3138 = vpack.c.b16 %v3012, %v3010
    %v3139 = vpack.c.b16 %v3013, %v3011
    %v3140 = vpack.c.b16 %v3016, %v3014
    %v3141 = vpack.c.b16 %v3017, %v3015
    %v3142 = vpack.c.b16 %v3020, %v3018
    %v3143 = vpack.c.b16 %v3021, %v3019
    %v3144 = vpack.c.b16 %v3024, %v3022
    %v3145 = vpack.c.b16 %v3025, %v3023
    %v3146 = vpack.c.b16 %v3028, %v3026
    %v3147 = vpack.c.b16 %v3029, %v3027
    %v3148 = vpack.c.b16 %v3032, %v3030
    %v3149 = vpack.c.b16 %v3033, %v3031
    %v3150 = vpack.c.b16 %v3036, %v3034
    %v3151 = vpack.c.b16 %v3037, %v3035
    %v3152 = vpack.c.b16 %v3040, %v3038
    %v3153 = vpack.c.b16 %v3041, %v3039
    %v3154 = vpack.c.b16 %v3044, %v3042
    %v3155 = vpack.c.b16 %v3045, %v3043
    %v3156 = vpack.c.b16 %v3048, %v3046
    %v3157 = vpack.c.b16 %v3049, %v3047
    %v3158 = vpack.c.b16 %v3052, %v3050
    %v3159 = vpack.c.b16 %v3053, %v3051
    %v3160 = vpack.c.b16 %v3056, %v3054
    %v3161 = vpack.c.b16 %v3057, %v3055
    %v3162 = vpack.c.b16 %v3060, %v3058
    %v3163 = vpack.c.b16 %v3061, %v3059
    %v3164 = vpack.c.b16 %v3064, %v3062
    %v3165 = vpack.c.b16 %v3065, %v3063
    %v3166 = vpack.c.b16 %v3068, %v3066
    %v3167 = vpack.c.b16 %v3069, %v3067
    %v3168 = vpack.c.b16 %v3072, %v3070
    %v3169 = vpack.c.b16 %v3073, %v3071
    %3266 = vmatpush.bf16.msra.mxu0 %v3088
    %3267 = vmatpush.bf16.msra.mxu0 %v3086
    %3268 = vmatpush.bf16.msra.mxu0 %v3084
    %3269 = vmatpush.bf16.msra.mxu0 %v3082
    %3270 = vmatpush.bf16.msra.mxu0 %v3080
    %3271 = vmatpush.bf16.msra.mxu0 %v3078
    %3272 = vmatpush.bf16.msra.mxu0 %v3076
    %3273 = vmatpush.bf16.msra.mxu0 %v3074
    %3274 = vmatmul.bf16.gmra.mxu0 %v2678
    %v3275 = vpop.f32.mrf.mxu0
    %v3276 = vadd.f32 %v2782, %v3275
    %v3277 = vpop.f32.mrf.mxu0
    %3278 = vdwg.mxu0
    %3279 = vmatpush.bf16.msra.mxu0 %v3104
    %3280 = vmatpush.bf16.msra.mxu0 %v3102
    %3281 = vmatpush.bf16.msra.mxu0 %v3100
    %3282 = vmatpush.bf16.msra.mxu0 %v3098
    %3283 = vmatpush.bf16.msra.mxu0 %v3096
    %3284 = vmatpush.bf16.msra.mxu0 %v3094
    %3285 = vmatpush.bf16.msra.mxu0 %v3092
    %3286 = vmatpush.bf16.msra.mxu0 %v3090
    %3287 = vmatmul.bf16.gmra.mxu0 %v2679
    %v3288 = vpop.f32.mrf.mxu0
    %v3289 = vadd.f32 %v3276, %v3288
    %v3290 = vpop.f32.mrf.mxu0
    %3291 = vdwg.mxu0
    %3292 = vmatpush.bf16.msra.mxu0 %v3120
    %3293 = vmatpush.bf16.msra.mxu0 %v3118
    %3294 = vmatpush.bf16.msra.mxu0 %v3116
    %3295 = vmatpush.bf16.msra.mxu0 %v3114
    %3296 = vmatpush.bf16.msra.mxu0 %v3112
    %3297 = vmatpush.bf16.msra.mxu0 %v3110
    %3298 = vmatpush.bf16.msra.mxu0 %v3108
    %3299 = vmatpush.bf16.msra.mxu0 %v3106
    %3300 = vmatmul.bf16.gmra.mxu0 %v2680
    %v3301 = vpop.f32.mrf.mxu0
    %v3302 = vadd.f32 %v3289, %v3301
    %v3303 = vpop.f32.mrf.mxu0
    %3304 = vdwg.mxu0
    %3305 = vmatpush.bf16.msra.mxu0 %v3136
    %3306 = vmatpush.bf16.msra.mxu0 %v3134
    %3307 = vmatpush.bf16.msra.mxu0 %v3132
    %3308 = vmatpush.bf16.msra.mxu0 %v3130
    %3309 = vmatpush.bf16.msra.mxu0 %v3128
    %3310 = vmatpush.bf16.msra.mxu0 %v3126
    %3311 = vmatpush.bf16.msra.mxu0 %v3124
    %3312 = vmatpush.bf16.msra.mxu0 %v3122
    %3313 = vmatmul.bf16.gmra.mxu0 %v2681
    %v3314 = vpop.f32.mrf.mxu0
    %v3315 = vadd.f32 %v3302, %v3314
    %v3316 = vpop.f32.mrf.mxu0
    %3317 = vdwg.mxu0
    %3318 = vmatpush.bf16.msra.mxu0 %v3152
    %3319 = vmatpush.bf16.msra.mxu0 %v3150
    %3320 = vmatpush.bf16.msra.mxu0 %v3148
    %3321 = vmatpush.bf16.msra.mxu0 %v3146
    %3322 = vmatpush.bf16.msra.mxu0 %v3144
    %3323 = vmatpush.bf16.msra.mxu0 %v3142
    %3324 = vmatpush.bf16.msra.mxu0 %v3140
    %3325 = vmatpush.bf16.msra.mxu0 %v3138
    %3326 = vmatmul.bf16.gmra.mxu0 %v2682
    %v3327 = vpop.f32.mrf.mxu0
    %v3328 = vadd.f32 %v3315, %v3327
    %v3329 = vpop.f32.mrf.mxu0
    %3330 = vdwg.mxu0
    %3331 = vmatpush.bf16.msra.mxu0 %v3168
    %3332 = vmatpush.bf16.msra.mxu0 %v3166
    %3333 = vmatpush.bf16.msra.mxu0 %v3164
    %3334 = vmatpush.bf16.msra.mxu0 %v3162
    %3335 = vmatpush.bf16.msra.mxu0 %v3160
    %3336 = vmatpush.bf16.msra.mxu0 %v3158
    %3337 = vmatpush.bf16.msra.mxu0 %v3156
    %3338 = vmatpush.bf16.msra.mxu0 %v3154
    %3339 = vmatmul.bf16.gmra.mxu0 %v2683
    %v3340 = vpop.f32.mrf.mxu0
    %v3341 = vadd.f32 %v3328, %v3340
    %v3342 = vpop.f32.mrf.mxu0
    %3343 = vdwg.mxu0
    %3344 = vmatpush.bf16.msra.mxu0 %v3089
    %3345 = vmatpush.bf16.msra.mxu0 %v3087
    %3346 = vmatpush.bf16.msra.mxu0 %v3085
    %3347 = vmatpush.bf16.msra.mxu0 %v3083
    %3348 = vmatpush.bf16.msra.mxu0 %v3081
    %3349 = vmatpush.bf16.msra.mxu0 %v3079
    %3350 = vmatpush.bf16.msra.mxu0 %v3077
    %3351 = vmatpush.bf16.msra.mxu0 %v3075
    %3352 = vmatmul.bf16.gmra.mxu0 %v2678
    %v3353 = vpop.f32.mrf.mxu0
    %v3354 = vadd.f32 %v2783, %v3353
    %v3355 = vpop.f32.mrf.mxu0
    %3356 = vdwg.mxu0
    %3357 = vmatpush.bf16.msra.mxu0 %v3105
    %3358 = vmatpush.bf16.msra.mxu0 %v3103
    %3359 = vmatpush.bf16.msra.mxu0 %v3101
    %3360 = vmatpush.bf16.msra.mxu0 %v3099
    %3361 = vmatpush.bf16.msra.mxu0 %v3097
    %3362 = vmatpush.bf16.msra.mxu0 %v3095
    %3363 = vmatpush.bf16.msra.mxu0 %v3093
    %3364 = vmatpush.bf16.msra.mxu0 %v3091
    %3365 = vmatmul.bf16.gmra.mxu0 %v2679
    %v3366 = vpop.f32.mrf.mxu0
    %v3367 = vadd.f32 %v3354, %v3366
    %v3368 = vpop.f32.mrf.mxu0
    %3369 = vdwg.mxu0
    %3370 = vmatpush.bf16.msra.mxu0 %v3121
    %3371 = vmatpush.bf16.msra.mxu0 %v3119
    %3372 = vmatpush.bf16.msra.mxu0 %v3117
    %3373 = vmatpush.bf16.msra.mxu0 %v3115
    %3374 = vmatpush.bf16.msra.mxu0 %v3113
    %3375 = vmatpush.bf16.msra.mxu0 %v3111
    %3376 = vmatpush.bf16.msra.mxu0 %v3109
    %3377 = vmatpush.bf16.msra.mxu0 %v3107
    %3378 = vmatmul.bf16.gmra.mxu0 %v2680
    %v3379 = vpop.f32.mrf.mxu0
    %v3380 = vadd.f32 %v3367, %v3379
    %v3381 = vpop.f32.mrf.mxu0
    %3382 = vdwg.mxu0
    %3383 = vmatpush.bf16.msra.mxu0 %v3137
    %3384 = vmatpush.bf16.msra.mxu0 %v3135
    %3385 = vmatpush.bf16.msra.mxu0 %v3133
    %3386 = vmatpush.bf16.msra.mxu0 %v3131
    %3387 = vmatpush.bf16.msra.mxu0 %v3129
    %3388 = vmatpush.bf16.msra.mxu0 %v3127
    %3389 = vmatpush.bf16.msra.mxu0 %v3125
    %3390 = vmatpush.bf16.msra.mxu0 %v3123
    %3391 = vmatmul.bf16.gmra.mxu0 %v2681
    %v3392 = vpop.f32.mrf.mxu0
    %v3393 = vadd.f32 %v3380, %v3392
    %v3394 = vpop.f32.mrf.mxu0
    %3395 = vdwg.mxu0
    %3396 = vmatpush.bf16.msra.mxu0 %v3153
    %3397 = vmatpush.bf16.msra.mxu0 %v3151
    %3398 = vmatpush.bf16.msra.mxu0 %v3149
    %3399 = vmatpush.bf16.msra.mxu0 %v3147
    %3400 = vmatpush.bf16.msra.mxu0 %v3145
    %3401 = vmatpush.bf16.msra.mxu0 %v3143
    %3402 = vmatpush.bf16.msra.mxu0 %v3141
    %3403 = vmatpush.bf16.msra.mxu0 %v3139
    %3404 = vmatmul.bf16.gmra.mxu0 %v2682
    %v3405 = vpop.f32.mrf.mxu0
    %v3406 = vadd.f32 %v3393, %v3405
    %v3407 = vpop.f32.mrf.mxu0
    %3408 = vdwg.mxu0
    %3409 = vmatpush.bf16.msra.mxu0 %v3169
    %3410 = vmatpush.bf16.msra.mxu0 %v3167
    %3411 = vmatpush.bf16.msra.mxu0 %v3165
    %3412 = vmatpush.bf16.msra.mxu0 %v3163
    %3413 = vmatpush.bf16.msra.mxu0 %v3161
    %3414 = vmatpush.bf16.msra.mxu0 %v3159
    %3415 = vmatpush.bf16.msra.mxu0 %v3157
    %3416 = vmatpush.bf16.msra.mxu0 %v3155
    %3417 = vmatmul.bf16.gmra.mxu0 %v2683
    %v3418 = vpop.f32.mrf.mxu0
    %v3419 = vadd.f32 %v3406, %v3418
    %v3420 = vpop.f32.mrf.mxu0
    %3421 = vdwg.mxu0
    %v3422 = vpack.c.bf16 %v3341, %v3341
    %v3423 = vpack.c.bf16 %v3419, %v3419
    %v3424 = vld [vmem:[#allocation8] sm:$0xff]
    %v3425 = vld [vmem:[#allocation8 + $0x8] sm:$0xff]
    %v3426 = vld [vmem:[#allocation8 + $0x10] sm:$0xff]
    %v3427 = vld [vmem:[#allocation8 + $0x18] sm:$0xff]
    %v3428 = vld [vmem:[#allocation8 + $0x20] sm:$0xff]
    %v3429 = vld [vmem:[#allocation8 + $0x28] sm:$0xff]
    %v3430 = vld [vmem:[#allocation8 + $0x30] sm:$0xff]
    %v3431 = vld [vmem:[#allocation8 + $0x38] sm:$0xff]
    %v3432 = vld [vmem:[#allocation8 + $0x40] sm:$0xff]
    %v3433 = vld [vmem:[#allocation8 + $0x48] sm:$0xff]
    %v3434 = vld [vmem:[#allocation8 + $0x50] sm:$0xff]
    %v3435 = vld [vmem:[#allocation8 + $0x58] sm:$0xff]
    %v3436 = vld [vmem:[#allocation8 + $0x60] sm:$0xff]
    %v3437 = vld [vmem:[#allocation8 + $0x68] sm:$0xff]
    %v3438 = vld [vmem:[#allocation8 + $0x70] sm:$0xff]
    %v3439 = vld [vmem:[#allocation8 + $0x78] sm:$0xff]
    %v3440 = vld [vmem:[#allocation8 + $0x80] sm:$0xff]
    %v3441 = vld [vmem:[#allocation8 + $0x88] sm:$0xff]
    %v3442 = vld [vmem:[#allocation8 + $0x90] sm:$0xff]
    %v3443 = vld [vmem:[#allocation8 + $0x98] sm:$0xff]
    %v3444 = vld [vmem:[#allocation8 + $0xa0] sm:$0xff]
    %v3445 = vld [vmem:[#allocation8 + $0xa8] sm:$0xff]
    %v3446 = vld [vmem:[#allocation8 + $0xb0] sm:$0xff]
    %v3447 = vld [vmem:[#allocation8 + $0xb8] sm:$0xff]
    %v3448 = vld [vmem:[#allocation8 + $0xc0] sm:$0xff]
    %v3449 = vld [vmem:[#allocation8 + $0xc8] sm:$0xff]
    %v3450 = vld [vmem:[#allocation8 + $0xd0] sm:$0xff]
    %v3451 = vld [vmem:[#allocation8 + $0xd8] sm:$0xff]
    %v3452 = vld [vmem:[#allocation8 + $0xe0] sm:$0xff]
    %v3453 = vld [vmem:[#allocation8 + $0xe8] sm:$0xff]
    %v3454 = vld [vmem:[#allocation8 + $0xf0] sm:$0xff]
    %v3455 = vld [vmem:[#allocation8 + $0xf8] sm:$0xff]
    %v3456 = vld [vmem:[#allocation8 + $0x100] sm:$0xff]
    %v3457 = vld [vmem:[#allocation8 + $0x108] sm:$0xff]
    %v3458 = vld [vmem:[#allocation8 + $0x110] sm:$0xff]
    %v3459 = vld [vmem:[#allocation8 + $0x118] sm:$0xff]
    %v3460 = vld [vmem:[#allocation8 + $0x120] sm:$0xff]
    %v3461 = vld [vmem:[#allocation8 + $0x128] sm:$0xff]
    %v3462 = vld [vmem:[#allocation8 + $0x130] sm:$0xff]
    %v3463 = vld [vmem:[#allocation8 + $0x138] sm:$0xff]
    %v3464 = vld [vmem:[#allocation8 + $0x140] sm:$0xff]
    %v3465 = vld [vmem:[#allocation8 + $0x148] sm:$0xff]
    %v3466 = vld [vmem:[#allocation8 + $0x150] sm:$0xff]
    %v3467 = vld [vmem:[#allocation8 + $0x158] sm:$0xff]
    %v3468 = vld [vmem:[#allocation8 + $0x160] sm:$0xff]
    %v3469 = vld [vmem:[#allocation8 + $0x168] sm:$0xff]
    %v3470 = vld [vmem:[#allocation8 + $0x170] sm:$0xff]
    %v3471 = vld [vmem:[#allocation8 + $0x178] sm:$0xff]
    %v3472 = vld [vmem:[#allocation8 + $0x180] sm:$0xff]
    %v3473 = vld [vmem:[#allocation8 + $0x188] sm:$0xff]
    %v3474 = vld [vmem:[#allocation8 + $0x190] sm:$0xff]
    %v3475 = vld [vmem:[#allocation8 + $0x198] sm:$0xff]
    %v3476 = vld [vmem:[#allocation8 + $0x1a0] sm:$0xff]
    %v3477 = vld [vmem:[#allocation8 + $0x1a8] sm:$0xff]
    %v3478 = vld [vmem:[#allocation8 + $0x1b0] sm:$0xff]
    %v3479 = vld [vmem:[#allocation8 + $0x1b8] sm:$0xff]
    %v3480 = vld [vmem:[#allocation8 + $0x1c0] sm:$0xff]
    %v3481 = vld [vmem:[#allocation8 + $0x1c8] sm:$0xff]
    %v3482 = vld [vmem:[#allocation8 + $0x1d0] sm:$0xff]
    %v3483 = vld [vmem:[#allocation8 + $0x1d8] sm:$0xff]
    %v3484 = vld [vmem:[#allocation8 + $0x1e0] sm:$0xff]
    %v3485 = vld [vmem:[#allocation8 + $0x1e8] sm:$0xff]
    %v3486 = vld [vmem:[#allocation8 + $0x1f0] sm:$0xff]
    %v3487 = vld [vmem:[#allocation8 + $0x1f8] sm:$0xff]
    %v3488 = vld [vmem:[#allocation8 + $0x200] sm:$0xff]
    %v3489 = vld [vmem:[#allocation8 + $0x208] sm:$0xff]
    %v3490 = vld [vmem:[#allocation8 + $0x210] sm:$0xff]
    %v3491 = vld [vmem:[#allocation8 + $0x218] sm:$0xff]
    %v3492 = vld [vmem:[#allocation8 + $0x220] sm:$0xff]
    %v3493 = vld [vmem:[#allocation8 + $0x228] sm:$0xff]
    %v3494 = vld [vmem:[#allocation8 + $0x230] sm:$0xff]
    %v3495 = vld [vmem:[#allocation8 + $0x238] sm:$0xff]
    %v3496 = vld [vmem:[#allocation8 + $0x240] sm:$0xff]
    %v3497 = vld [vmem:[#allocation8 + $0x248] sm:$0xff]
    %v3498 = vld [vmem:[#allocation8 + $0x250] sm:$0xff]
    %v3499 = vld [vmem:[#allocation8 + $0x258] sm:$0xff]
    %v3500 = vld [vmem:[#allocation8 + $0x260] sm:$0xff]
    %v3501 = vld [vmem:[#allocation8 + $0x268] sm:$0xff]
    %v3502 = vld [vmem:[#allocation8 + $0x270] sm:$0xff]
    %v3503 = vld [vmem:[#allocation8 + $0x278] sm:$0xff]
    %v3504 = vld [vmem:[#allocation8 + $0x280] sm:$0xff]
    %v3505 = vld [vmem:[#allocation8 + $0x288] sm:$0xff]
    %v3506 = vld [vmem:[#allocation8 + $0x290] sm:$0xff]
    %v3507 = vld [vmem:[#allocation8 + $0x298] sm:$0xff]
    %v3508 = vld [vmem:[#allocation8 + $0x2a0] sm:$0xff]
    %v3509 = vld [vmem:[#allocation8 + $0x2a8] sm:$0xff]
    %v3510 = vld [vmem:[#allocation8 + $0x2b0] sm:$0xff]
    %v3511 = vld [vmem:[#allocation8 + $0x2b8] sm:$0xff]
    %v3512 = vld [vmem:[#allocation8 + $0x2c0] sm:$0xff]
    %v3513 = vld [vmem:[#allocation8 + $0x2c8] sm:$0xff]
    %v3514 = vld [vmem:[#allocation8 + $0x2d0] sm:$0xff]
    %v3515 = vld [vmem:[#allocation8 + $0x2d8] sm:$0xff]
    %v3516 = vld [vmem:[#allocation8 + $0x2e0] sm:$0xff]
    %v3517 = vld [vmem:[#allocation8 + $0x2e8] sm:$0xff]
    %v3518 = vld [vmem:[#allocation8 + $0x2f0] sm:$0xff]
    %v3519 = vld [vmem:[#allocation8 + $0x2f8] sm:$0xff]
    %v3616 = vunpack.c.l.b16 %v3424
    %v3617 = vunpack.c.h.b16 %v3424
    %v3618 = vunpack.c.l.b16 %v3425
    %v3619 = vunpack.c.h.b16 %v3425
    %v3620 = vunpack.c.l.b16 %v3426
    %v3621 = vunpack.c.h.b16 %v3426
    %v3622 = vunpack.c.l.b16 %v3427
    %v3623 = vunpack.c.h.b16 %v3427
    %v3624 = vunpack.c.l.b16 %v3428
    %v3625 = vunpack.c.h.b16 %v3428
    %v3626 = vunpack.c.l.b16 %v3429
    %v3627 = vunpack.c.h.b16 %v3429
    %v3628 = vunpack.c.l.b16 %v3430
    %v3629 = vunpack.c.h.b16 %v3430
    %v3630 = vunpack.c.l.b16 %v3431
    %v3631 = vunpack.c.h.b16 %v3431
    %v3632 = vunpack.c.l.b16 %v3432
    %v3633 = vunpack.c.h.b16 %v3432
    %v3634 = vunpack.c.l.b16 %v3433
    %v3635 = vunpack.c.h.b16 %v3433
    %v3636 = vunpack.c.l.b16 %v3434
    %v3637 = vunpack.c.h.b16 %v3434
    %v3638 = vunpack.c.l.b16 %v3435
    %v3639 = vunpack.c.h.b16 %v3435
    %v3640 = vunpack.c.l.b16 %v3436
    %v3641 = vunpack.c.h.b16 %v3436
    %v3642 = vunpack.c.l.b16 %v3437
    %v3643 = vunpack.c.h.b16 %v3437
    %v3644 = vunpack.c.l.b16 %v3438
    %v3645 = vunpack.c.h.b16 %v3438
    %v3646 = vunpack.c.l.b16 %v3439
    %v3647 = vunpack.c.h.b16 %v3439
    %v3648 = vunpack.c.l.b16 %v3440
    %v3649 = vunpack.c.h.b16 %v3440
    %v3650 = vunpack.c.l.b16 %v3441
    %v3651 = vunpack.c.h.b16 %v3441
    %v3652 = vunpack.c.l.b16 %v3442
    %v3653 = vunpack.c.h.b16 %v3442
    %v3654 = vunpack.c.l.b16 %v3443
    %v3655 = vunpack.c.h.b16 %v3443
    %v3656 = vunpack.c.l.b16 %v3444
    %v3657 = vunpack.c.h.b16 %v3444
    %v3658 = vunpack.c.l.b16 %v3445
    %v3659 = vunpack.c.h.b16 %v3445
    %v3660 = vunpack.c.l.b16 %v3446
    %v3661 = vunpack.c.h.b16 %v3446
    %v3662 = vunpack.c.l.b16 %v3447
    %v3663 = vunpack.c.h.b16 %v3447
    %v3664 = vunpack.c.l.b16 %v3448
    %v3665 = vunpack.c.h.b16 %v3448
    %v3666 = vunpack.c.l.b16 %v3449
    %v3667 = vunpack.c.h.b16 %v3449
    %v3668 = vunpack.c.l.b16 %v3450
    %v3669 = vunpack.c.h.b16 %v3450
    %v3670 = vunpack.c.l.b16 %v3451
    %v3671 = vunpack.c.h.b16 %v3451
    %v3672 = vunpack.c.l.b16 %v3452
    %v3673 = vunpack.c.h.b16 %v3452
    %v3674 = vunpack.c.l.b16 %v3453
    %v3675 = vunpack.c.h.b16 %v3453
    %v3676 = vunpack.c.l.b16 %v3454
    %v3677 = vunpack.c.h.b16 %v3454
    %v3678 = vunpack.c.l.b16 %v3455
    %v3679 = vunpack.c.h.b16 %v3455
    %v3680 = vunpack.c.l.b16 %v3456
    %v3681 = vunpack.c.h.b16 %v3456
    %v3682 = vunpack.c.l.b16 %v3457
    %v3683 = vunpack.c.h.b16 %v3457
    %v3684 = vunpack.c.l.b16 %v3458
    %v3685 = vunpack.c.h.b16 %v3458
    %v3686 = vunpack.c.l.b16 %v3459
    %v3687 = vunpack.c.h.b16 %v3459
    %v3688 = vunpack.c.l.b16 %v3460
    %v3689 = vunpack.c.h.b16 %v3460
    %v3690 = vunpack.c.l.b16 %v3461
    %v3691 = vunpack.c.h.b16 %v3461
    %v3692 = vunpack.c.l.b16 %v3462
    %v3693 = vunpack.c.h.b16 %v3462
    %v3694 = vunpack.c.l.b16 %v3463
    %v3695 = vunpack.c.h.b16 %v3463
    %v3696 = vunpack.c.l.b16 %v3464
    %v3697 = vunpack.c.h.b16 %v3464
    %v3698 = vunpack.c.l.b16 %v3465
    %v3699 = vunpack.c.h.b16 %v3465
    %v3700 = vunpack.c.l.b16 %v3466
    %v3701 = vunpack.c.h.b16 %v3466
    %v3702 = vunpack.c.l.b16 %v3467
    %v3703 = vunpack.c.h.b16 %v3467
    %v3704 = vunpack.c.l.b16 %v3468
    %v3705 = vunpack.c.h.b16 %v3468
    %v3706 = vunpack.c.l.b16 %v3469
    %v3707 = vunpack.c.h.b16 %v3469
    %v3708 = vunpack.c.l.b16 %v3470
    %v3709 = vunpack.c.h.b16 %v3470
    %v3710 = vunpack.c.l.b16 %v3471
    %v3711 = vunpack.c.h.b16 %v3471
    %v3712 = vunpack.c.l.b16 %v3472
    %v3713 = vunpack.c.h.b16 %v3472
    %v3714 = vunpack.c.l.b16 %v3473
    %v3715 = vunpack.c.h.b16 %v3473
    %v3716 = vunpack.c.l.b16 %v3474
    %v3717 = vunpack.c.h.b16 %v3474
    %v3718 = vunpack.c.l.b16 %v3475
    %v3719 = vunpack.c.h.b16 %v3475
    %v3720 = vunpack.c.l.b16 %v3476
    %v3721 = vunpack.c.h.b16 %v3476
    %v3722 = vunpack.c.l.b16 %v3477
    %v3723 = vunpack.c.h.b16 %v3477
    %v3724 = vunpack.c.l.b16 %v3478
    %v3725 = vunpack.c.h.b16 %v3478
    %v3726 = vunpack.c.l.b16 %v3479
    %v3727 = vunpack.c.h.b16 %v3479
    %v3728 = vunpack.c.l.b16 %v3480
    %v3729 = vunpack.c.h.b16 %v3480
    %v3730 = vunpack.c.l.b16 %v3481
    %v3731 = vunpack.c.h.b16 %v3481
    %v3732 = vunpack.c.l.b16 %v3482
    %v3733 = vunpack.c.h.b16 %v3482
    %v3734 = vunpack.c.l.b16 %v3483
    %v3735 = vunpack.c.h.b16 %v3483
    %v3736 = vunpack.c.l.b16 %v3484
    %v3737 = vunpack.c.h.b16 %v3484
    %v3738 = vunpack.c.l.b16 %v3485
    %v3739 = vunpack.c.h.b16 %v3485
    %v3740 = vunpack.c.l.b16 %v3486
    %v3741 = vunpack.c.h.b16 %v3486
    %v3742 = vunpack.c.l.b16 %v3487
    %v3743 = vunpack.c.h.b16 %v3487
    %v3744 = vunpack.c.l.b16 %v3488
    %v3745 = vunpack.c.h.b16 %v3488
    %v3746 = vunpack.c.l.b16 %v3489
    %v3747 = vunpack.c.h.b16 %v3489
    %v3748 = vunpack.c.l.b16 %v3490
    %v3749 = vunpack.c.h.b16 %v3490
    %v3750 = vunpack.c.l.b16 %v3491
    %v3751 = vunpack.c.h.b16 %v3491
    %v3752 = vunpack.c.l.b16 %v3492
    %v3753 = vunpack.c.h.b16 %v3492
    %v3754 = vunpack.c.l.b16 %v3493
    %v3755 = vunpack.c.h.b16 %v3493
    %v3756 = vunpack.c.l.b16 %v3494
    %v3757 = vunpack.c.h.b16 %v3494
    %v3758 = vunpack.c.l.b16 %v3495
    %v3759 = vunpack.c.h.b16 %v3495
    %v3760 = vunpack.c.l.b16 %v3496
    %v3761 = vunpack.c.h.b16 %v3496
    %v3762 = vunpack.c.l.b16 %v3497
    %v3763 = vunpack.c.h.b16 %v3497
    %v3764 = vunpack.c.l.b16 %v3498
    %v3765 = vunpack.c.h.b16 %v3498
    %v3766 = vunpack.c.l.b16 %v3499
    %v3767 = vunpack.c.h.b16 %v3499
    %v3768 = vunpack.c.l.b16 %v3500
    %v3769 = vunpack.c.h.b16 %v3500
    %v3770 = vunpack.c.l.b16 %v3501
    %v3771 = vunpack.c.h.b16 %v3501
    %v3772 = vunpack.c.l.b16 %v3502
    %v3773 = vunpack.c.h.b16 %v3502
    %v3774 = vunpack.c.l.b16 %v3503
    %v3775 = vunpack.c.h.b16 %v3503
    %v3776 = vunpack.c.l.b16 %v3504
    %v3777 = vunpack.c.h.b16 %v3504
    %v3778 = vunpack.c.l.b16 %v3505
    %v3779 = vunpack.c.h.b16 %v3505
    %v3780 = vunpack.c.l.b16 %v3506
    %v3781 = vunpack.c.h.b16 %v3506
    %v3782 = vunpack.c.l.b16 %v3507
    %v3783 = vunpack.c.h.b16 %v3507
    %v3784 = vunpack.c.l.b16 %v3508
    %v3785 = vunpack.c.h.b16 %v3508
    %v3786 = vunpack.c.l.b16 %v3509
    %v3787 = vunpack.c.h.b16 %v3509
    %v3788 = vunpack.c.l.b16 %v3510
    %v3789 = vunpack.c.h.b16 %v3510
    %v3790 = vunpack.c.l.b16 %v3511
    %v3791 = vunpack.c.h.b16 %v3511
    %v3792 = vunpack.c.l.b16 %v3512
    %v3793 = vunpack.c.h.b16 %v3512
    %v3794 = vunpack.c.l.b16 %v3513
    %v3795 = vunpack.c.h.b16 %v3513
    %v3796 = vunpack.c.l.b16 %v3514
    %v3797 = vunpack.c.h.b16 %v3514
    %v3798 = vunpack.c.l.b16 %v3515
    %v3799 = vunpack.c.h.b16 %v3515
    %v3800 = vunpack.c.l.b16 %v3516
    %v3801 = vunpack.c.h.b16 %v3516
    %v3802 = vunpack.c.l.b16 %v3517
    %v3803 = vunpack.c.h.b16 %v3517
    %v3804 = vunpack.c.l.b16 %v3518
    %v3805 = vunpack.c.h.b16 %v3518
    %v3806 = vunpack.c.l.b16 %v3519
    %v3807 = vunpack.c.h.b16 %v3519
    %v3808 = vpack.c.b16 %v3622, %v3616
    %v3809 = vpack.c.b16 %v3623, %v3617
    %v3810 = vpack.c.b16 %v3624, %v3618
    %v3811 = vpack.c.b16 %v3625, %v3619
    %v3812 = vpack.c.b16 %v3626, %v3620
    %v3813 = vpack.c.b16 %v3627, %v3621
    %v3814 = vpack.c.b16 %v3634, %v3628
    %v3815 = vpack.c.b16 %v3635, %v3629
    %v3816 = vpack.c.b16 %v3636, %v3630
    %v3817 = vpack.c.b16 %v3637, %v3631
    %v3818 = vpack.c.b16 %v3638, %v3632
    %v3819 = vpack.c.b16 %v3639, %v3633
    %v3820 = vpack.c.b16 %v3646, %v3640
    %v3821 = vpack.c.b16 %v3647, %v3641
    %v3822 = vpack.c.b16 %v3648, %v3642
    %v3823 = vpack.c.b16 %v3649, %v3643
    %v3824 = vpack.c.b16 %v3650, %v3644
    %v3825 = vpack.c.b16 %v3651, %v3645
    %v3826 = vpack.c.b16 %v3658, %v3652
    %v3827 = vpack.c.b16 %v3659, %v3653
    %v3828 = vpack.c.b16 %v3660, %v3654
    %v3829 = vpack.c.b16 %v3661, %v3655
    %v3830 = vpack.c.b16 %v3662, %v3656
    %v3831 = vpack.c.b16 %v3663, %v3657
    %v3832 = vpack.c.b16 %v3670, %v3664
    %v3833 = vpack.c.b16 %v3671, %v3665
    %v3834 = vpack.c.b16 %v3672, %v3666
    %v3835 = vpack.c.b16 %v3673, %v3667
    %v3836 = vpack.c.b16 %v3674, %v3668
    %v3837 = vpack.c.b16 %v3675, %v3669
    %v3838 = vpack.c.b16 %v3682, %v3676
    %v3839 = vpack.c.b16 %v3683, %v3677
    %v3840 = vpack.c.b16 %v3684, %v3678
    %v3841 = vpack.c.b16 %v3685, %v3679
    %v3842 = vpack.c.b16 %v3686, %v3680
    %v3843 = vpack.c.b16 %v3687, %v3681
    %v3844 = vpack.c.b16 %v3694, %v3688
    %v3845 = vpack.c.b16 %v3695, %v3689
    %v3846 = vpack.c.b16 %v3696, %v3690
    %v3847 = vpack.c.b16 %v3697, %v3691
    %v3848 = vpack.c.b16 %v3698, %v3692
    %v3849 = vpack.c.b16 %v3699, %v3693
    %v3850 = vpack.c.b16 %v3706, %v3700
    %v3851 = vpack.c.b16 %v3707, %v3701
    %v3852 = vpack.c.b16 %v3708, %v3702
    %v3853 = vpack.c.b16 %v3709, %v3703
    %v3854 = vpack.c.b16 %v3710, %v3704
    %v3855 = vpack.c.b16 %v3711, %v3705
    %v3856 = vpack.c.b16 %v3718, %v3712
    %v3857 = vpack.c.b16 %v3719, %v3713
    %v3858 = vpack.c.b16 %v3720, %v3714
    %v3859 = vpack.c.b16 %v3721, %v3715
    %v3860 = vpack.c.b16 %v3722, %v3716
    %v3861 = vpack.c.b16 %v3723, %v3717
    %v3862 = vpack.c.b16 %v3730, %v3724
    %v3863 = vpack.c.b16 %v3731, %v3725
    %v3864 = vpack.c.b16 %v3732, %v3726
    %v3865 = vpack.c.b16 %v3733, %v3727
    %v3866 = vpack.c.b16 %v3734, %v3728
    %v3867 = vpack.c.b16 %v3735, %v3729
    %v3868 = vpack.c.b16 %v3742, %v3736
    %v3869 = vpack.c.b16 %v3743, %v3737
    %v3870 = vpack.c.b16 %v3744, %v3738
    %v3871 = vpack.c.b16 %v3745, %v3739
    %v3872 = vpack.c.b16 %v3746, %v3740
    %v3873 = vpack.c.b16 %v3747, %v3741
    %v3874 = vpack.c.b16 %v3754, %v3748
    %v3875 = vpack.c.b16 %v3755, %v3749
    %v3876 = vpack.c.b16 %v3756, %v3750
    %v3877 = vpack.c.b16 %v3757, %v3751
    %v3878 = vpack.c.b16 %v3758, %v3752
    %v3879 = vpack.c.b16 %v3759, %v3753
    %v3880 = vpack.c.b16 %v3766, %v3760
    %v3881 = vpack.c.b16 %v3767, %v3761
    %v3882 = vpack.c.b16 %v3768, %v3762
    %v3883 = vpack.c.b16 %v3769, %v3763
    %v3884 = vpack.c.b16 %v3770, %v3764
    %v3885 = vpack.c.b16 %v3771, %v3765
    %v3886 = vpack.c.b16 %v3778, %v3772
    %v3887 = vpack.c.b16 %v3779, %v3773
    %v3888 = vpack.c.b16 %v3780, %v3774
    %v3889 = vpack.c.b16 %v3781, %v3775
    %v3890 = vpack.c.b16 %v3782, %v3776
    %v3891 = vpack.c.b16 %v3783, %v3777
    %v3892 = vpack.c.b16 %v3790, %v3784
    %v3893 = vpack.c.b16 %v3791, %v3785
    %v3894 = vpack.c.b16 %v3792, %v3786
    %v3895 = vpack.c.b16 %v3793, %v3787
    %v3896 = vpack.c.b16 %v3794, %v3788
    %v3897 = vpack.c.b16 %v3795, %v3789
    %v3898 = vpack.c.b16 %v3802, %v3796
    %v3899 = vpack.c.b16 %v3803, %v3797
    %v3900 = vpack.c.b16 %v3804, %v3798
    %v3901 = vpack.c.b16 %v3805, %v3799
    %v3902 = vpack.c.b16 %v3806, %v3800
    %v3903 = vpack.c.b16 %v3807, %v3801
    %4000 = vmatpush.bf16.msra.mxu0 %v3850
    %4001 = vmatpush.bf16.msra.mxu0 %v3844
    %4002 = vmatpush.bf16.msra.mxu0 %v3838
    %4003 = vmatpush.bf16.msra.mxu0 %v3832
    %4004 = vmatpush.bf16.msra.mxu0 %v3826
    %4005 = vmatpush.bf16.msra.mxu0 %v3820
    %4006 = vmatpush.bf16.msra.mxu0 %v3814
    %4007 = vmatpush.bf16.msra.mxu0 %v3808
    %4008 = vmatmul.bf16.gmra.mxu0 %v3422
    %v4009 = vpop.f32.mrf.mxu0
    %v4010 = vadd.f32 0.0, %v4009
    %v4011 = vpop.f32.mrf.mxu0
    %4012 = vdwg.mxu0
    %4013 = vmatpush.bf16.msra.mxu0 %v3898
    %4014 = vmatpush.bf16.msra.mxu0 %v3892
    %4015 = vmatpush.bf16.msra.mxu0 %v3886
    %4016 = vmatpush.bf16.msra.mxu0 %v3880
    %4017 = vmatpush.bf16.msra.mxu0 %v3874
    %4018 = vmatpush.bf16.msra.mxu0 %v3868
    %4019 = vmatpush.bf16.msra.mxu0 %v3862
    %4020 = vmatpush.bf16.msra.mxu0 %v3856
    %4021 = vmatmul.bf16.gmra.mxu0 %v3423
    %v4022 = vpop.f32.mrf.mxu0
    %v4023 = vadd.f32 %v4010, %v4022
    %v4024 = vpop.f32.mrf.mxu0
    %4025 = vdwg.mxu0
    %4026 = vmatpush.bf16.msra.mxu0 %v3851
    %4027 = vmatpush.bf16.msra.mxu0 %v3845
    %4028 = vmatpush.bf16.msra.mxu0 %v3839
    %4029 = vmatpush.bf16.msra.mxu0 %v3833
    %4030 = vmatpush.bf16.msra.mxu0 %v3827
    %4031 = vmatpush.bf16.msra.mxu0 %v3821
    %4032 = vmatpush.bf16.msra.mxu0 %v3815
    %4033 = vmatpush.bf16.msra.mxu0 %v3809
    %4034 = vmatmul.bf16.gmra.mxu0 %v3422
    %v4035 = vpop.f32.mrf.mxu0
    %v4036 = vadd.f32 0.0, %v4035
    %v4037 = vpop.f32.mrf.mxu0
    %4038 = vdwg.mxu0
    %4039 = vmatpush.bf16.msra.mxu0 %v3899
    %4040 = vmatpush.bf16.msra.mxu0 %v3893
    %4041 = vmatpush.bf16.msra.mxu0 %v3887
    %4042 = vmatpush.bf16.msra.mxu0 %v3881
    %4043 = vmatpush.bf16.msra.mxu0 %v3875
    %4044 = vmatpush.bf16.msra.mxu0 %v3869
    %4045 = vmatpush.bf16.msra.mxu0 %v3863
    %4046 = vmatpush.bf16.msra.mxu0 %v3857
    %4047 = vmatmul.bf16.gmra.mxu0 %v3423
    %v4048 = vpop.f32.mrf.mxu0
    %v4049 = vadd.f32 %v4036, %v4048
    %v4050 = vpop.f32.mrf.mxu0
    %4051 = vdwg.mxu0
    %4052 = vmatpush.bf16.msra.mxu0 %v3852
    %4053 = vmatpush.bf16.msra.mxu0 %v3846
    %4054 = vmatpush.bf16.msra.mxu0 %v3840
    %4055 = vmatpush.bf16.msra.mxu0 %v3834
    %4056 = vmatpush.bf16.msra.mxu0 %v3828
    %4057 = vmatpush.bf16.msra.mxu0 %v3822
    %4058 = vmatpush.bf16.msra.mxu0 %v3816
    %4059 = vmatpush.bf16.msra.mxu0 %v3810
    %4060 = vmatmul.bf16.gmra.mxu0 %v3422
    %v4061 = vpop.f32.mrf.mxu0
    %v4062 = vadd.f32 0.0, %v4061
    %v4063 = vpop.f32.mrf.mxu0
    %4064 = vdwg.mxu0
    %4065 = vmatpush.bf16.msra.mxu0 %v3900
    %4066 = vmatpush.bf16.msra.mxu0 %v3894
    %4067 = vmatpush.bf16.msra.mxu0 %v3888
    %4068 = vmatpush.bf16.msra.mxu0 %v3882
    %4069 = vmatpush.bf16.msra.mxu0 %v3876
    %4070 = vmatpush.bf16.msra.mxu0 %v3870
    %4071 = vmatpush.bf16.msra.mxu0 %v3864
    %4072 = vmatpush.bf16.msra.mxu0 %v3858
    %4073 = vmatmul.bf16.gmra.mxu0 %v3423
    %v4074 = vpop.f32.mrf.mxu0
    %v4075 = vadd.f32 %v4062, %v4074
    %v4076 = vpop.f32.mrf.mxu0
    %4077 = vdwg.mxu0
    %4078 = vmatpush.bf16.msra.mxu0 %v3853
    %4079 = vmatpush.bf16.msra.mxu0 %v3847
    %4080 = vmatpush.bf16.msra.mxu0 %v3841
    %4081 = vmatpush.bf16.msra.mxu0 %v3835
    %4082 = vmatpush.bf16.msra.mxu0 %v3829
    %4083 = vmatpush.bf16.msra.mxu0 %v3823
    %4084 = vmatpush.bf16.msra.mxu0 %v3817
    %4085 = vmatpush.bf16.msra.mxu0 %v3811
    %4086 = vmatmul.bf16.gmra.mxu0 %v3422
    %v4087 = vpop.f32.mrf.mxu0
    %v4088 = vadd.f32 0.0, %v4087
    %v4089 = vpop.f32.mrf.mxu0
    %4090 = vdwg.mxu0
    %4091 = vmatpush.bf16.msra.mxu0 %v3901
    %4092 = vmatpush.bf16.msra.mxu0 %v3895
    %4093 = vmatpush.bf16.msra.mxu0 %v3889
    %4094 = vmatpush.bf16.msra.mxu0 %v3883
    %4095 = vmatpush.bf16.msra.mxu0 %v3877
    %4096 = vmatpush.bf16.msra.mxu0 %v3871
    %4097 = vmatpush.bf16.msra.mxu0 %v3865
    %4098 = vmatpush.bf16.msra.mxu0 %v3859
    %4099 = vmatmul.bf16.gmra.mxu0 %v3423
    %v4100 = vpop.f32.mrf.mxu0
    %v4101 = vadd.f32 %v4088, %v4100
    %v4102 = vpop.f32.mrf.mxu0
    %4103 = vdwg.mxu0
    %4104 = vmatpush.bf16.msra.mxu0 %v3854
    %4105 = vmatpush.bf16.msra.mxu0 %v3848
    %4106 = vmatpush.bf16.msra.mxu0 %v3842
    %4107 = vmatpush.bf16.msra.mxu0 %v3836
    %4108 = vmatpush.bf16.msra.mxu0 %v3830
    %4109 = vmatpush.bf16.msra.mxu0 %v3824
    %4110 = vmatpush.bf16.msra.mxu0 %v3818
    %4111 = vmatpush.bf16.msra.mxu0 %v3812
    %4112 = vmatmul.bf16.gmra.mxu0 %v3422
    %v4113 = vpop.f32.mrf.mxu0
    %v4114 = vadd.f32 0.0, %v4113
    %v4115 = vpop.f32.mrf.mxu0
    %4116 = vdwg.mxu0
    %4117 = vmatpush.bf16.msra.mxu0 %v3902
    %4118 = vmatpush.bf16.msra.mxu0 %v3896
    %4119 = vmatpush.bf16.msra.mxu0 %v3890
    %4120 = vmatpush.bf16.msra.mxu0 %v3884
    %4121 = vmatpush.bf16.msra.mxu0 %v3878
    %4122 = vmatpush.bf16.msra.mxu0 %v3872
    %4123 = vmatpush.bf16.msra.mxu0 %v3866
    %4124 = vmatpush.bf16.msra.mxu0 %v3860
    %4125 = vmatmul.bf16.gmra.mxu0 %v3423
    %v4126 = vpop.f32.mrf.mxu0
    %v4127 = vadd.f32 %v4114, %v4126
    %v4128 = vpop.f32.mrf.mxu0
    %4129 = vdwg.mxu0
    %4130 = vmatpush.bf16.msra.mxu0 %v3855
    %4131 = vmatpush.bf16.msra.mxu0 %v3849
    %4132 = vmatpush.bf16.msra.mxu0 %v3843
    %4133 = vmatpush.bf16.msra.mxu0 %v3837
    %4134 = vmatpush.bf16.msra.mxu0 %v3831
    %4135 = vmatpush.bf16.msra.mxu0 %v3825
    %4136 = vmatpush.bf16.msra.mxu0 %v3819
    %4137 = vmatpush.bf16.msra.mxu0 %v3813
    %4138 = vmatmul.bf16.gmra.mxu0 %v3422
    %v4139 = vpop.f32.mrf.mxu0
    %v4140 = vadd.f32 0.0, %v4139
    %v4141 = vpop.f32.mrf.mxu0
    %4142 = vdwg.mxu0
    %4143 = vmatpush.bf16.msra.mxu0 %v3903
    %4144 = vmatpush.bf16.msra.mxu0 %v3897
    %4145 = vmatpush.bf16.msra.mxu0 %v3891
    %4146 = vmatpush.bf16.msra.mxu0 %v3885
    %4147 = vmatpush.bf16.msra.mxu0 %v3879
    %4148 = vmatpush.bf16.msra.mxu0 %v3873
    %4149 = vmatpush.bf16.msra.mxu0 %v3867
    %4150 = vmatpush.bf16.msra.mxu0 %v3861
    %4151 = vmatmul.bf16.gmra.mxu0 %v3423
    %v4152 = vpop.f32.mrf.mxu0
    %v4153 = vadd.f32 %v4140, %v4152
    %v4154 = vpop.f32.mrf.mxu0
    %4155 = vdwg.mxu0
    %v4156 = vld [vmem:[%s2] sm:$0xf]
    %4158 = vst [vmem:[#allocation1] ss:$4 sm:$0xff] %v4156
    %v4159 = vld.sshfl [vmem:[#allocation1] sm:$0xff pattern:$0x73625140]
    %v4160 = vld.sshfl [vmem:[#allocation1 + $0x8] sm:$0xff pattern:$0x73625140]
    %v4163 = vpack.c.bf16 %v4159, %v4159
    %v4164 = vpack.c.bf16 %v4160, %v4160
    %v4165 = vld [vmem:[#allocation9] sm:$0xff]
    %v4166 = vld [vmem:[#allocation9 + $0x8] sm:$0xff]
    %v4167 = vld [vmem:[#allocation9 + $0x10] sm:$0xff]
    %v4168 = vld [vmem:[#allocation9 + $0x18] sm:$0xff]
    %v4169 = vld [vmem:[#allocation9 + $0x20] sm:$0xff]
    %v4170 = vld [vmem:[#allocation9 + $0x28] sm:$0xff]
    %v4171 = vld [vmem:[#allocation9 + $0x30] sm:$0xff]
    %v4172 = vld [vmem:[#allocation9 + $0x38] sm:$0xff]
    %v4173 = vld [vmem:[#allocation9 + $0x40] sm:$0xff]
    %v4174 = vld [vmem:[#allocation9 + $0x48] sm:$0xff]
    %v4175 = vld [vmem:[#allocation9 + $0x50] sm:$0xff]
    %v4176 = vld [vmem:[#allocation9 + $0x58] sm:$0xff]
    %v4177 = vld [vmem:[#allocation9 + $0x60] sm:$0xff]
    %v4178 = vld [vmem:[#allocation9 + $0x68] sm:$0xff]
    %v4179 = vld [vmem:[#allocation9 + $0x70] sm:$0xff]
    %v4180 = vld [vmem:[#allocation9 + $0x78] sm:$0xff]
    %v4181 = vld [vmem:[#allocation9 + $0x80] sm:$0xff]
    %v4182 = vld [vmem:[#allocation9 + $0x88] sm:$0xff]
    %v4183 = vld [vmem:[#allocation9 + $0x90] sm:$0xff]
    %v4184 = vld [vmem:[#allocation9 + $0x98] sm:$0xff]
    %v4185 = vld [vmem:[#allocation9 + $0xa0] sm:$0xff]
    %v4186 = vld [vmem:[#allocation9 + $0xa8] sm:$0xff]
    %v4187 = vld [vmem:[#allocation9 + $0xb0] sm:$0xff]
    %v4188 = vld [vmem:[#allocation9 + $0xb8] sm:$0xff]
    %v4189 = vld [vmem:[#allocation9 + $0xc0] sm:$0xff]
    %v4190 = vld [vmem:[#allocation9 + $0xc8] sm:$0xff]
    %v4191 = vld [vmem:[#allocation9 + $0xd0] sm:$0xff]
    %v4192 = vld [vmem:[#allocation9 + $0xd8] sm:$0xff]
    %v4193 = vld [vmem:[#allocation9 + $0xe0] sm:$0xff]
    %v4194 = vld [vmem:[#allocation9 + $0xe8] sm:$0xff]
    %v4195 = vld [vmem:[#allocation9 + $0xf0] sm:$0xff]
    %v4196 = vld [vmem:[#allocation9 + $0xf8] sm:$0xff]
    %v4197 = vld [vmem:[#allocation9 + $0x100] sm:$0xff]
    %v4198 = vld [vmem:[#allocation9 + $0x108] sm:$0xff]
    %v4199 = vld [vmem:[#allocation9 + $0x110] sm:$0xff]
    %v4200 = vld [vmem:[#allocation9 + $0x118] sm:$0xff]
    %v4201 = vld [vmem:[#allocation9 + $0x120] sm:$0xff]
    %v4202 = vld [vmem:[#allocation9 + $0x128] sm:$0xff]
    %v4203 = vld [vmem:[#allocation9 + $0x130] sm:$0xff]
    %v4204 = vld [vmem:[#allocation9 + $0x138] sm:$0xff]
    %v4205 = vld [vmem:[#allocation9 + $0x140] sm:$0xff]
    %v4206 = vld [vmem:[#allocation9 + $0x148] sm:$0xff]
    %v4207 = vld [vmem:[#allocation9 + $0x150] sm:$0xff]
    %v4208 = vld [vmem:[#allocation9 + $0x158] sm:$0xff]
    %v4209 = vld [vmem:[#allocation9 + $0x160] sm:$0xff]
    %v4210 = vld [vmem:[#allocation9 + $0x168] sm:$0xff]
    %v4211 = vld [vmem:[#allocation9 + $0x170] sm:$0xff]
    %v4212 = vld [vmem:[#allocation9 + $0x178] sm:$0xff]
    %v4213 = vld [vmem:[#allocation9 + $0x180] sm:$0xff]
    %v4214 = vld [vmem:[#allocation9 + $0x188] sm:$0xff]
    %v4215 = vld [vmem:[#allocation9 + $0x190] sm:$0xff]
    %v4216 = vld [vmem:[#allocation9 + $0x198] sm:$0xff]
    %v4217 = vld [vmem:[#allocation9 + $0x1a0] sm:$0xff]
    %v4218 = vld [vmem:[#allocation9 + $0x1a8] sm:$0xff]
    %v4219 = vld [vmem:[#allocation9 + $0x1b0] sm:$0xff]
    %v4220 = vld [vmem:[#allocation9 + $0x1b8] sm:$0xff]
    %v4221 = vld [vmem:[#allocation9 + $0x1c0] sm:$0xff]
    %v4222 = vld [vmem:[#allocation9 + $0x1c8] sm:$0xff]
    %v4223 = vld [vmem:[#allocation9 + $0x1d0] sm:$0xff]
    %v4224 = vld [vmem:[#allocation9 + $0x1d8] sm:$0xff]
    %v4225 = vld [vmem:[#allocation9 + $0x1e0] sm:$0xff]
    %v4226 = vld [vmem:[#allocation9 + $0x1e8] sm:$0xff]
    %v4227 = vld [vmem:[#allocation9 + $0x1f0] sm:$0xff]
    %v4228 = vld [vmem:[#allocation9 + $0x1f8] sm:$0xff]
    %v4229 = vld [vmem:[#allocation9 + $0x200] sm:$0xff]
    %v4230 = vld [vmem:[#allocation9 + $0x208] sm:$0xff]
    %v4231 = vld [vmem:[#allocation9 + $0x210] sm:$0xff]
    %v4232 = vld [vmem:[#allocation9 + $0x218] sm:$0xff]
    %v4233 = vld [vmem:[#allocation9 + $0x220] sm:$0xff]
    %v4234 = vld [vmem:[#allocation9 + $0x228] sm:$0xff]
    %v4235 = vld [vmem:[#allocation9 + $0x230] sm:$0xff]
    %v4236 = vld [vmem:[#allocation9 + $0x238] sm:$0xff]
    %v4237 = vld [vmem:[#allocation9 + $0x240] sm:$0xff]
    %v4238 = vld [vmem:[#allocation9 + $0x248] sm:$0xff]
    %v4239 = vld [vmem:[#allocation9 + $0x250] sm:$0xff]
    %v4240 = vld [vmem:[#allocation9 + $0x258] sm:$0xff]
    %v4241 = vld [vmem:[#allocation9 + $0x260] sm:$0xff]
    %v4242 = vld [vmem:[#allocation9 + $0x268] sm:$0xff]
    %v4243 = vld [vmem:[#allocation9 + $0x270] sm:$0xff]
    %v4244 = vld [vmem:[#allocation9 + $0x278] sm:$0xff]
    %v4245 = vld [vmem:[#allocation9 + $0x280] sm:$0xff]
    %v4246 = vld [vmem:[#allocation9 + $0x288] sm:$0xff]
    %v4247 = vld [vmem:[#allocation9 + $0x290] sm:$0xff]
    %v4248 = vld [vmem:[#allocation9 + $0x298] sm:$0xff]
    %v4249 = vld [vmem:[#allocation9 + $0x2a0] sm:$0xff]
    %v4250 = vld [vmem:[#allocation9 + $0x2a8] sm:$0xff]
    %v4251 = vld [vmem:[#allocation9 + $0x2b0] sm:$0xff]
    %v4252 = vld [vmem:[#allocation9 + $0x2b8] sm:$0xff]
    %v4253 = vld [vmem:[#allocation9 + $0x2c0] sm:$0xff]
    %v4254 = vld [vmem:[#allocation9 + $0x2c8] sm:$0xff]
    %v4255 = vld [vmem:[#allocation9 + $0x2d0] sm:$0xff]
    %v4256 = vld [vmem:[#allocation9 + $0x2d8] sm:$0xff]
    %v4257 = vld [vmem:[#allocation9 + $0x2e0] sm:$0xff]
    %v4258 = vld [vmem:[#allocation9 + $0x2e8] sm:$0xff]
    %v4259 = vld [vmem:[#allocation9 + $0x2f0] sm:$0xff]
    %v4260 = vld [vmem:[#allocation9 + $0x2f8] sm:$0xff]
    %v4357 = vunpack.c.l.b16 %v4165
    %v4358 = vunpack.c.h.b16 %v4165
    %v4359 = vunpack.c.l.b16 %v4166
    %v4360 = vunpack.c.h.b16 %v4166
    %v4361 = vunpack.c.l.b16 %v4167
    %v4362 = vunpack.c.h.b16 %v4167
    %v4363 = vunpack.c.l.b16 %v4168
    %v4364 = vunpack.c.h.b16 %v4168
    %v4365 = vunpack.c.l.b16 %v4169
    %v4366 = vunpack.c.h.b16 %v4169
    %v4367 = vunpack.c.l.b16 %v4170
    %v4368 = vunpack.c.h.b16 %v4170
    %v4369 = vunpack.c.l.b16 %v4171
    %v4370 = vunpack.c.h.b16 %v4171
    %v4371 = vunpack.c.l.b16 %v4172
    %v4372 = vunpack.c.h.b16 %v4172
    %v4373 = vunpack.c.l.b16 %v4173
    %v4374 = vunpack.c.h.b16 %v4173
    %v4375 = vunpack.c.l.b16 %v4174
    %v4376 = vunpack.c.h.b16 %v4174
    %v4377 = vunpack.c.l.b16 %v4175
    %v4378 = vunpack.c.h.b16 %v4175
    %v4379 = vunpack.c.l.b16 %v4176
    %v4380 = vunpack.c.h.b16 %v4176
    %v4381 = vunpack.c.l.b16 %v4177
    %v4382 = vunpack.c.h.b16 %v4177
    %v4383 = vunpack.c.l.b16 %v4178
    %v4384 = vunpack.c.h.b16 %v4178
    %v4385 = vunpack.c.l.b16 %v4179
    %v4386 = vunpack.c.h.b16 %v4179
    %v4387 = vunpack.c.l.b16 %v4180
    %v4388 = vunpack.c.h.b16 %v4180
    %v4389 = vunpack.c.l.b16 %v4181
    %v4390 = vunpack.c.h.b16 %v4181
    %v4391 = vunpack.c.l.b16 %v4182
    %v4392 = vunpack.c.h.b16 %v4182
    %v4393 = vunpack.c.l.b16 %v4183
    %v4394 = vunpack.c.h.b16 %v4183
    %v4395 = vunpack.c.l.b16 %v4184
    %v4396 = vunpack.c.h.b16 %v4184
    %v4397 = vunpack.c.l.b16 %v4185
    %v4398 = vunpack.c.h.b16 %v4185
    %v4399 = vunpack.c.l.b16 %v4186
    %v4400 = vunpack.c.h.b16 %v4186
    %v4401 = vunpack.c.l.b16 %v4187
    %v4402 = vunpack.c.h.b16 %v4187
    %v4403 = vunpack.c.l.b16 %v4188
    %v4404 = vunpack.c.h.b16 %v4188
    %v4405 = vunpack.c.l.b16 %v4189
    %v4406 = vunpack.c.h.b16 %v4189
    %v4407 = vunpack.c.l.b16 %v4190
    %v4408 = vunpack.c.h.b16 %v4190
    %v4409 = vunpack.c.l.b16 %v4191
    %v4410 = vunpack.c.h.b16 %v4191
    %v4411 = vunpack.c.l.b16 %v4192
    %v4412 = vunpack.c.h.b16 %v4192
    %v4413 = vunpack.c.l.b16 %v4193
    %v4414 = vunpack.c.h.b16 %v4193
    %v4415 = vunpack.c.l.b16 %v4194
    %v4416 = vunpack.c.h.b16 %v4194
    %v4417 = vunpack.c.l.b16 %v4195
    %v4418 = vunpack.c.h.b16 %v4195
    %v4419 = vunpack.c.l.b16 %v4196
    %v4420 = vunpack.c.h.b16 %v4196
    %v4421 = vunpack.c.l.b16 %v4197
    %v4422 = vunpack.c.h.b16 %v4197
    %v4423 = vunpack.c.l.b16 %v4198
    %v4424 = vunpack.c.h.b16 %v4198
    %v4425 = vunpack.c.l.b16 %v4199
    %v4426 = vunpack.c.h.b16 %v4199
    %v4427 = vunpack.c.l.b16 %v4200
    %v4428 = vunpack.c.h.b16 %v4200
    %v4429 = vunpack.c.l.b16 %v4201
    %v4430 = vunpack.c.h.b16 %v4201
    %v4431 = vunpack.c.l.b16 %v4202
    %v4432 = vunpack.c.h.b16 %v4202
    %v4433 = vunpack.c.l.b16 %v4203
    %v4434 = vunpack.c.h.b16 %v4203
    %v4435 = vunpack.c.l.b16 %v4204
    %v4436 = vunpack.c.h.b16 %v4204
    %v4437 = vunpack.c.l.b16 %v4205
    %v4438 = vunpack.c.h.b16 %v4205
    %v4439 = vunpack.c.l.b16 %v4206
    %v4440 = vunpack.c.h.b16 %v4206
    %v4441 = vunpack.c.l.b16 %v4207
    %v4442 = vunpack.c.h.b16 %v4207
    %v4443 = vunpack.c.l.b16 %v4208
    %v4444 = vunpack.c.h.b16 %v4208
    %v4445 = vunpack.c.l.b16 %v4209
    %v4446 = vunpack.c.h.b16 %v4209
    %v4447 = vunpack.c.l.b16 %v4210
    %v4448 = vunpack.c.h.b16 %v4210
    %v4449 = vunpack.c.l.b16 %v4211
    %v4450 = vunpack.c.h.b16 %v4211
    %v4451 = vunpack.c.l.b16 %v4212
    %v4452 = vunpack.c.h.b16 %v4212
    %v4453 = vunpack.c.l.b16 %v4213
    %v4454 = vunpack.c.h.b16 %v4213
    %v4455 = vunpack.c.l.b16 %v4214
    %v4456 = vunpack.c.h.b16 %v4214
    %v4457 = vunpack.c.l.b16 %v4215
    %v4458 = vunpack.c.h.b16 %v4215
    %v4459 = vunpack.c.l.b16 %v4216
    %v4460 = vunpack.c.h.b16 %v4216
    %v4461 = vunpack.c.l.b16 %v4217
    %v4462 = vunpack.c.h.b16 %v4217
    %v4463 = vunpack.c.l.b16 %v4218
    %v4464 = vunpack.c.h.b16 %v4218
    %v4465 = vunpack.c.l.b16 %v4219
    %v4466 = vunpack.c.h.b16 %v4219
    %v4467 = vunpack.c.l.b16 %v4220
    %v4468 = vunpack.c.h.b16 %v4220
    %v4469 = vunpack.c.l.b16 %v4221
    %v4470 = vunpack.c.h.b16 %v4221
    %v4471 = vunpack.c.l.b16 %v4222
    %v4472 = vunpack.c.h.b16 %v4222
    %v4473 = vunpack.c.l.b16 %v4223
    %v4474 = vunpack.c.h.b16 %v4223
    %v4475 = vunpack.c.l.b16 %v4224
    %v4476 = vunpack.c.h.b16 %v4224
    %v4477 = vunpack.c.l.b16 %v4225
    %v4478 = vunpack.c.h.b16 %v4225
    %v4479 = vunpack.c.l.b16 %v4226
    %v4480 = vunpack.c.h.b16 %v4226
    %v4481 = vunpack.c.l.b16 %v4227
    %v4482 = vunpack.c.h.b16 %v4227
    %v4483 = vunpack.c.l.b16 %v4228
    %v4484 = vunpack.c.h.b16 %v4228
    %v4485 = vunpack.c.l.b16 %v4229
    %v4486 = vunpack.c.h.b16 %v4229
    %v4487 = vunpack.c.l.b16 %v4230
    %v4488 = vunpack.c.h.b16 %v4230
    %v4489 = vunpack.c.l.b16 %v4231
    %v4490 = vunpack.c.h.b16 %v4231
    %v4491 = vunpack.c.l.b16 %v4232
    %v4492 = vunpack.c.h.b16 %v4232
    %v4493 = vunpack.c.l.b16 %v4233
    %v4494 = vunpack.c.h.b16 %v4233
    %v4495 = vunpack.c.l.b16 %v4234
    %v4496 = vunpack.c.h.b16 %v4234
    %v4497 = vunpack.c.l.b16 %v4235
    %v4498 = vunpack.c.h.b16 %v4235
    %v4499 = vunpack.c.l.b16 %v4236
    %v4500 = vunpack.c.h.b16 %v4236
    %v4501 = vunpack.c.l.b16 %v4237
    %v4502 = vunpack.c.h.b16 %v4237
    %v4503 = vunpack.c.l.b16 %v4238
    %v4504 = vunpack.c.h.b16 %v4238
    %v4505 = vunpack.c.l.b16 %v4239
    %v4506 = vunpack.c.h.b16 %v4239
    %v4507 = vunpack.c.l.b16 %v4240
    %v4508 = vunpack.c.h.b16 %v4240
    %v4509 = vunpack.c.l.b16 %v4241
    %v4510 = vunpack.c.h.b16 %v4241
    %v4511 = vunpack.c.l.b16 %v4242
    %v4512 = vunpack.c.h.b16 %v4242
    %v4513 = vunpack.c.l.b16 %v4243
    %v4514 = vunpack.c.h.b16 %v4243
    %v4515 = vunpack.c.l.b16 %v4244
    %v4516 = vunpack.c.h.b16 %v4244
    %v4517 = vunpack.c.l.b16 %v4245
    %v4518 = vunpack.c.h.b16 %v4245
    %v4519 = vunpack.c.l.b16 %v4246
    %v4520 = vunpack.c.h.b16 %v4246
    %v4521 = vunpack.c.l.b16 %v4247
    %v4522 = vunpack.c.h.b16 %v4247
    %v4523 = vunpack.c.l.b16 %v4248
    %v4524 = vunpack.c.h.b16 %v4248
    %v4525 = vunpack.c.l.b16 %v4249
    %v4526 = vunpack.c.h.b16 %v4249
    %v4527 = vunpack.c.l.b16 %v4250
    %v4528 = vunpack.c.h.b16 %v4250
    %v4529 = vunpack.c.l.b16 %v4251
    %v4530 = vunpack.c.h.b16 %v4251
    %v4531 = vunpack.c.l.b16 %v4252
    %v4532 = vunpack.c.h.b16 %v4252
    %v4533 = vunpack.c.l.b16 %v4253
    %v4534 = vunpack.c.h.b16 %v4253
    %v4535 = vunpack.c.l.b16 %v4254
    %v4536 = vunpack.c.h.b16 %v4254
    %v4537 = vunpack.c.l.b16 %v4255
    %v4538 = vunpack.c.h.b16 %v4255
    %v4539 = vunpack.c.l.b16 %v4256
    %v4540 = vunpack.c.h.b16 %v4256
    %v4541 = vunpack.c.l.b16 %v4257
    %v4542 = vunpack.c.h.b16 %v4257
    %v4543 = vunpack.c.l.b16 %v4258
    %v4544 = vunpack.c.h.b16 %v4258
    %v4545 = vunpack.c.l.b16 %v4259
    %v4546 = vunpack.c.h.b16 %v4259
    %v4547 = vunpack.c.l.b16 %v4260
    %v4548 = vunpack.c.h.b16 %v4260
    %v4549 = vpack.c.b16 %v4363, %v4357
    %v4550 = vpack.c.b16 %v4364, %v4358
    %v4551 = vpack.c.b16 %v4365, %v4359
    %v4552 = vpack.c.b16 %v4366, %v4360
    %v4553 = vpack.c.b16 %v4367, %v4361
    %v4554 = vpack.c.b16 %v4368, %v4362
    %v4555 = vpack.c.b16 %v4375, %v4369
    %v4556 = vpack.c.b16 %v4376, %v4370
    %v4557 = vpack.c.b16 %v4377, %v4371
    %v4558 = vpack.c.b16 %v4378, %v4372
    %v4559 = vpack.c.b16 %v4379, %v4373
    %v4560 = vpack.c.b16 %v4380, %v4374
    %v4561 = vpack.c.b16 %v4387, %v4381
    %v4562 = vpack.c.b16 %v4388, %v4382
    %v4563 = vpack.c.b16 %v4389, %v4383
    %v4564 = vpack.c.b16 %v4390, %v4384
    %v4565 = vpack.c.b16 %v4391, %v4385
    %v4566 = vpack.c.b16 %v4392, %v4386
    %v4567 = vpack.c.b16 %v4399, %v4393
    %v4568 = vpack.c.b16 %v4400, %v4394
    %v4569 = vpack.c.b16 %v4401, %v4395
    %v4570 = vpack.c.b16 %v4402, %v4396
    %v4571 = vpack.c.b16 %v4403, %v4397
    %v4572 = vpack.c.b16 %v4404, %v4398
    %v4573 = vpack.c.b16 %v4411, %v4405
    %v4574 = vpack.c.b16 %v4412, %v4406
    %v4575 = vpack.c.b16 %v4413, %v4407
    %v4576 = vpack.c.b16 %v4414, %v4408
    %v4577 = vpack.c.b16 %v4415, %v4409
    %v4578 = vpack.c.b16 %v4416, %v4410
    %v4579 = vpack.c.b16 %v4423, %v4417
    %v4580 = vpack.c.b16 %v4424, %v4418
    %v4581 = vpack.c.b16 %v4425, %v4419
    %v4582 = vpack.c.b16 %v4426, %v4420
    %v4583 = vpack.c.b16 %v4427, %v4421
    %v4584 = vpack.c.b16 %v4428, %v4422
    %v4585 = vpack.c.b16 %v4435, %v4429
    %v4586 = vpack.c.b16 %v4436, %v4430
    %v4587 = vpack.c.b16 %v4437, %v4431
    %v4588 = vpack.c.b16 %v4438, %v4432
    %v4589 = vpack.c.b16 %v4439, %v4433
    %v4590 = vpack.c.b16 %v4440, %v4434
    %v4591 = vpack.c.b16 %v4447, %v4441
    %v4592 = vpack.c.b16 %v4448, %v4442
    %v4593 = vpack.c.b16 %v4449, %v4443
    %v4594 = vpack.c.b16 %v4450, %v4444
    %v4595 = vpack.c.b16 %v4451, %v4445
    %v4596 = vpack.c.b16 %v4452, %v4446
    %v4597 = vpack.c.b16 %v4459, %v4453
    %v4598 = vpack.c.b16 %v4460, %v4454
    %v4599 = vpack.c.b16 %v4461, %v4455
    %v4600 = vpack.c.b16 %v4462, %v4456
    %v4601 = vpack.c.b16 %v4463, %v4457
    %v4602 = vpack.c.b16 %v4464, %v4458
    %v4603 = vpack.c.b16 %v4471, %v4465
    %v4604 = vpack.c.b16 %v4472, %v4466
    %v4605 = vpack.c.b16 %v4473, %v4467
    %v4606 = vpack.c.b16 %v4474, %v4468
    %v4607 = vpack.c.b16 %v4475, %v4469
    %v4608 = vpack.c.b16 %v4476, %v4470
    %v4609 = vpack.c.b16 %v4483, %v4477
    %v4610 = vpack.c.b16 %v4484, %v4478
    %v4611 = vpack.c.b16 %v4485, %v4479
    %v4612 = vpack.c.b16 %v4486, %v4480
    %v4613 = vpack.c.b16 %v4487, %v4481
    %v4614 = vpack.c.b16 %v4488, %v4482
    %v4615 = vpack.c.b16 %v4495, %v4489
    %v4616 = vpack.c.b16 %v4496, %v4490
    %v4617 = vpack.c.b16 %v4497, %v4491
    %v4618 = vpack.c.b16 %v4498, %v4492
    %v4619 = vpack.c.b16 %v4499, %v4493
    %v4620 = vpack.c.b16 %v4500, %v4494
    %v4621 = vpack.c.b16 %v4507, %v4501
    %v4622 = vpack.c.b16 %v4508, %v4502
    %v4623 = vpack.c.b16 %v4509, %v4503
    %v4624 = vpack.c.b16 %v4510, %v4504
    %v4625 = vpack.c.b16 %v4511, %v4505
    %v4626 = vpack.c.b16 %v4512, %v4506
    %v4627 = vpack.c.b16 %v4519, %v4513
    %v4628 = vpack.c.b16 %v4520, %v4514
    %v4629 = vpack.c.b16 %v4521, %v4515
    %v4630 = vpack.c.b16 %v4522, %v4516
    %v4631 = vpack.c.b16 %v4523, %v4517
    %v4632 = vpack.c.b16 %v4524, %v4518
    %v4633 = vpack.c.b16 %v4531, %v4525
    %v4634 = vpack.c.b16 %v4532, %v4526
    %v4635 = vpack.c.b16 %v4533, %v4527
    %v4636 = vpack.c.b16 %v4534, %v4528
    %v4637 = vpack.c.b16 %v4535, %v4529
    %v4638 = vpack.c.b16 %v4536, %v4530
    %v4639 = vpack.c.b16 %v4543, %v4537
    %v4640 = vpack.c.b16 %v4544, %v4538
    %v4641 = vpack.c.b16 %v4545, %v4539
    %v4642 = vpack.c.b16 %v4546, %v4540
    %v4643 = vpack.c.b16 %v4547, %v4541
    %v4644 = vpack.c.b16 %v4548, %v4542
    %4741 = vmatpush.bf16.msra.mxu0 %v4591
    %4742 = vmatpush.bf16.msra.mxu0 %v4585
    %4743 = vmatpush.bf16.msra.mxu0 %v4579
    %4744 = vmatpush.bf16.msra.mxu0 %v4573
    %4745 = vmatpush.bf16.msra.mxu0 %v4567
    %4746 = vmatpush.bf16.msra.mxu0 %v4561
    %4747 = vmatpush.bf16.msra.mxu0 %v4555
    %4748 = vmatpush.bf16.msra.mxu0 %v4549
    %4749 = vmatmul.bf16.gmra.mxu0 %v4163
    %v4750 = vpop.f32.mrf.mxu0
    %v4751 = vadd.f32 0.0, %v4750
    %v4752 = vpop.f32.mrf.mxu0
    %4753 = vdwg.mxu0
    %4754 = vmatpush.bf16.msra.mxu0 %v4639
    %4755 = vmatpush.bf16.msra.mxu0 %v4633
    %4756 = vmatpush.bf16.msra.mxu0 %v4627
    %4757 = vmatpush.bf16.msra.mxu0 %v4621
    %4758 = vmatpush.bf16.msra.mxu0 %v4615
    %4759 = vmatpush.bf16.msra.mxu0 %v4609
    %4760 = vmatpush.bf16.msra.mxu0 %v4603
    %4761 = vmatpush.bf16.msra.mxu0 %v4597
    %4762 = vmatmul.bf16.gmra.mxu0 %v4164
    %v4763 = vpop.f32.mrf.mxu0
    %v4764 = vadd.f32 %v4751, %v4763
    %v4765 = vpop.f32.mrf.mxu0
    %4766 = vdwg.mxu0
    %4767 = vmatpush.bf16.msra.mxu0 %v4592
    %4768 = vmatpush.bf16.msra.mxu0 %v4586
    %4769 = vmatpush.bf16.msra.mxu0 %v4580
    %4770 = vmatpush.bf16.msra.mxu0 %v4574
    %4771 = vmatpush.bf16.msra.mxu0 %v4568
    %4772 = vmatpush.bf16.msra.mxu0 %v4562
    %4773 = vmatpush.bf16.msra.mxu0 %v4556
    %4774 = vmatpush.bf16.msra.mxu0 %v4550
    %4775 = vmatmul.bf16.gmra.mxu0 %v4163
    %v4776 = vpop.f32.mrf.mxu0
    %v4777 = vadd.f32 0.0, %v4776
    %v4778 = vpop.f32.mrf.mxu0
    %4779 = vdwg.mxu0
    %4780 = vmatpush.bf16.msra.mxu0 %v4640
    %4781 = vmatpush.bf16.msra.mxu0 %v4634
    %4782 = vmatpush.bf16.msra.mxu0 %v4628
    %4783 = vmatpush.bf16.msra.mxu0 %v4622
    %4784 = vmatpush.bf16.msra.mxu0 %v4616
    %4785 = vmatpush.bf16.msra.mxu0 %v4610
    %4786 = vmatpush.bf16.msra.mxu0 %v4604
    %4787 = vmatpush.bf16.msra.mxu0 %v4598
    %4788 = vmatmul.bf16.gmra.mxu0 %v4164
    %v4789 = vpop.f32.mrf.mxu0
    %v4790 = vadd.f32 %v4777, %v4789
    %v4791 = vpop.f32.mrf.mxu0
    %4792 = vdwg.mxu0
    %4793 = vmatpush.bf16.msra.mxu0 %v4593
    %4794 = vmatpush.bf16.msra.mxu0 %v4587
    %4795 = vmatpush.bf16.msra.mxu0 %v4581
    %4796 = vmatpush.bf16.msra.mxu0 %v4575
    %4797 = vmatpush.bf16.msra.mxu0 %v4569
    %4798 = vmatpush.bf16.msra.mxu0 %v4563
    %4799 = vmatpush.bf16.msra.mxu0 %v4557
    %4800 = vmatpush.bf16.msra.mxu0 %v4551
    %4801 = vmatmul.bf16.gmra.mxu0 %v4163
    %v4802 = vpop.f32.mrf.mxu0
    %v4803 = vadd.f32 0.0, %v4802
    %v4804 = vpop.f32.mrf.mxu0
    %4805 = vdwg.mxu0
    %4806 = vmatpush.bf16.msra.mxu0 %v4641
    %4807 = vmatpush.bf16.msra.mxu0 %v4635
    %4808 = vmatpush.bf16.msra.mxu0 %v4629
    %4809 = vmatpush.bf16.msra.mxu0 %v4623
    %4810 = vmatpush.bf16.msra.mxu0 %v4617
    %4811 = vmatpush.bf16.msra.mxu0 %v4611
    %4812 = vmatpush.bf16.msra.mxu0 %v4605
    %4813 = vmatpush.bf16.msra.mxu0 %v4599
    %4814 = vmatmul.bf16.gmra.mxu0 %v4164
    %v4815 = vpop.f32.mrf.mxu0
    %v4816 = vadd.f32 %v4803, %v4815
    %v4817 = vpop.f32.mrf.mxu0
    %4818 = vdwg.mxu0
    %4819 = vmatpush.bf16.msra.mxu0 %v4594
    %4820 = vmatpush.bf16.msra.mxu0 %v4588
    %4821 = vmatpush.bf16.msra.mxu0 %v4582
    %4822 = vmatpush.bf16.msra.mxu0 %v4576
    %4823 = vmatpush.bf16.msra.mxu0 %v4570
    %4824 = vmatpush.bf16.msra.mxu0 %v4564
    %4825 = vmatpush.bf16.msra.mxu0 %v4558
    %4826 = vmatpush.bf16.msra.mxu0 %v4552
    %4827 = vmatmul.bf16.gmra.mxu0 %v4163
    %v4828 = vpop.f32.mrf.mxu0
    %v4829 = vadd.f32 0.0, %v4828
    %v4830 = vpop.f32.mrf.mxu0
    %4831 = vdwg.mxu0
    %4832 = vmatpush.bf16.msra.mxu0 %v4642
    %4833 = vmatpush.bf16.msra.mxu0 %v4636
    %4834 = vmatpush.bf16.msra.mxu0 %v4630
    %4835 = vmatpush.bf16.msra.mxu0 %v4624
    %4836 = vmatpush.bf16.msra.mxu0 %v4618
    %4837 = vmatpush.bf16.msra.mxu0 %v4612
    %4838 = vmatpush.bf16.msra.mxu0 %v4606
    %4839 = vmatpush.bf16.msra.mxu0 %v4600
    %4840 = vmatmul.bf16.gmra.mxu0 %v4164
    %v4841 = vpop.f32.mrf.mxu0
    %v4842 = vadd.f32 %v4829, %v4841
    %v4843 = vpop.f32.mrf.mxu0
    %4844 = vdwg.mxu0
    %4845 = vmatpush.bf16.msra.mxu0 %v4595
    %4846 = vmatpush.bf16.msra.mxu0 %v4589
    %4847 = vmatpush.bf16.msra.mxu0 %v4583
    %4848 = vmatpush.bf16.msra.mxu0 %v4577
    %4849 = vmatpush.bf16.msra.mxu0 %v4571
    %4850 = vmatpush.bf16.msra.mxu0 %v4565
    %4851 = vmatpush.bf16.msra.mxu0 %v4559
    %4852 = vmatpush.bf16.msra.mxu0 %v4553
    %4853 = vmatmul.bf16.gmra.mxu0 %v4163
    %v4854 = vpop.f32.mrf.mxu0
    %v4855 = vadd.f32 0.0, %v4854
    %v4856 = vpop.f32.mrf.mxu0
    %4857 = vdwg.mxu0
    %4858 = vmatpush.bf16.msra.mxu0 %v4643
    %4859 = vmatpush.bf16.msra.mxu0 %v4637
    %4860 = vmatpush.bf16.msra.mxu0 %v4631
    %4861 = vmatpush.bf16.msra.mxu0 %v4625
    %4862 = vmatpush.bf16.msra.mxu0 %v4619
    %4863 = vmatpush.bf16.msra.mxu0 %v4613
    %4864 = vmatpush.bf16.msra.mxu0 %v4607
    %4865 = vmatpush.bf16.msra.mxu0 %v4601
    %4866 = vmatmul.bf16.gmra.mxu0 %v4164
    %v4867 = vpop.f32.mrf.mxu0
    %v4868 = vadd.f32 %v4855, %v4867
    %v4869 = vpop.f32.mrf.mxu0
    %4870 = vdwg.mxu0
    %4871 = vmatpush.bf16.msra.mxu0 %v4596
    %4872 = vmatpush.bf16.msra.mxu0 %v4590
    %4873 = vmatpush.bf16.msra.mxu0 %v4584
    %4874 = vmatpush.bf16.msra.mxu0 %v4578
    %4875 = vmatpush.bf16.msra.mxu0 %v4572
    %4876 = vmatpush.bf16.msra.mxu0 %v4566
    %4877 = vmatpush.bf16.msra.mxu0 %v4560
    %4878 = vmatpush.bf16.msra.mxu0 %v4554
    %4879 = vmatmul.bf16.gmra.mxu0 %v4163
    %v4880 = vpop.f32.mrf.mxu0
    %v4881 = vadd.f32 0.0, %v4880
    %v4882 = vpop.f32.mrf.mxu0
    %4883 = vdwg.mxu0
    %4884 = vmatpush.bf16.msra.mxu0 %v4644
    %4885 = vmatpush.bf16.msra.mxu0 %v4638
    %4886 = vmatpush.bf16.msra.mxu0 %v4632
    %4887 = vmatpush.bf16.msra.mxu0 %v4626
    %4888 = vmatpush.bf16.msra.mxu0 %v4620
    %4889 = vmatpush.bf16.msra.mxu0 %v4614
    %4890 = vmatpush.bf16.msra.mxu0 %v4608
    %4891 = vmatpush.bf16.msra.mxu0 %v4602
    %4892 = vmatmul.bf16.gmra.mxu0 %v4164
    %v4893 = vpop.f32.mrf.mxu0
    %v4894 = vadd.f32 %v4881, %v4893
    %v4895 = vpop.f32.mrf.mxu0
    %4896 = vdwg.mxu0
    %v4897 = vadd.f32 %v4023, %v4764
    %v4898 = vadd.f32 %v4049, %v4790
    %v4899 = vxor.u32 %v4897, 2147483648
    %v4900 = vxor.u32 %v4898, 2147483648
    %v4901 = vmul.f32 %v4899, 1.442695
    %v4902 = vpow.pop %v4901
    %v4903 = vmul.f32 %v4900, 1.442695
    %v4904 = vpow.pop %v4903
    %v4905 = vadd.f32 %v4902, 1.0
    %v4906 = vadd.f32 %v4904, 1.0
    %v4907 = vrcp.pop %v4905
    %v4908 = vmul.f32 %v4905, %v4907
    %v4909 = vsub.f32 1.0, %v4908
    %v4910 = vmul.f32 %v4907, %v4909
    %v4911 = vadd.f32 %v4907, %v4910
    %vm4912 = vweird.f32 %v4905
    %vm4913 = vweird.f32 %v4907
    %vm4914 = vmor %vm4912, %vm4913
    %v4915 = vsel %vm4914, %v4907, %v4911
    %v4916 = vand.u32 2147483647, %v4905
    %vm4917 = vcmp.eq.f32.partialorder %v4916, 8.507059e+37
    %v4918 = vand.u32 %v4905, 2147483648
    %v4919 = vor.u32 1.1754944e-38, %v4918
    %v4920 = vsel %vm4917, %v4919, %v4915
    %v4921 = vmul.f32 1.0, %v4920
    %v4922 = vrcp.pop %v4906
    %v4923 = vmul.f32 %v4906, %v4922
    %v4924 = vsub.f32 1.0, %v4923
    %v4925 = vmul.f32 %v4922, %v4924
    %v4926 = vadd.f32 %v4922, %v4925
    %vm4927 = vweird.f32 %v4906
    %vm4928 = vweird.f32 %v4922
    %vm4929 = vmor %vm4927, %vm4928
    %v4930 = vsel %vm4929, %v4922, %v4926
    %v4931 = vand.u32 2147483647, %v4906
    %vm4932 = vcmp.eq.f32.partialorder %v4931, 8.507059e+37
    %v4933 = vand.u32 %v4906, 2147483648
    %v4934 = vor.u32 1.1754944e-38, %v4933
    %v4935 = vsel %vm4932, %v4934, %v4930
    %v4936 = vmul.f32 1.0, %v4935
    %v4937 = vadd.f32 %v4075, %v4816
    %v4938 = vadd.f32 %v4101, %v4842
    %v4939 = vxor.u32 %v4937, 2147483648
    %v4940 = vxor.u32 %v4938, 2147483648
    %v4941 = vmul.f32 %v4939, 1.442695
    %v4942 = vpow.pop %v4941
    %v4943 = vmul.f32 %v4940, 1.442695
    %v4944 = vpow.pop %v4943
    %v4945 = vadd.f32 %v4942, 1.0
    %v4946 = vadd.f32 %v4944, 1.0
    %v4947 = vrcp.pop %v4945
    %v4948 = vmul.f32 %v4945, %v4947
    %v4949 = vsub.f32 1.0, %v4948
    %v4950 = vmul.f32 %v4947, %v4949
    %v4951 = vadd.f32 %v4947, %v4950
    %vm4952 = vweird.f32 %v4945
    %vm4953 = vweird.f32 %v4947
    %vm4954 = vmor %vm4952, %vm4953
    %v4955 = vsel %vm4954, %v4947, %v4951
    %v4956 = vand.u32 2147483647, %v4945
    %vm4957 = vcmp.eq.f32.partialorder %v4956, 8.507059e+37
    %v4958 = vand.u32 %v4945, 2147483648
    %v4959 = vor.u32 1.1754944e-38, %v4958
    %v4960 = vsel %vm4957, %v4959, %v4955
    %v4961 = vmul.f32 1.0, %v4960
    %v4962 = vrcp.pop %v4946
    %v4963 = vmul.f32 %v4946, %v4962
    %v4964 = vsub.f32 1.0, %v4963
    %v4965 = vmul.f32 %v4962, %v4964
    %v4966 = vadd.f32 %v4962, %v4965
    %vm4967 = vweird.f32 %v4946
    %vm4968 = vweird.f32 %v4962
    %vm4969 = vmor %vm4967, %vm4968
    %v4970 = vsel %vm4969, %v4962, %v4966
    %v4971 = vand.u32 2147483647, %v4946
    %vm4972 = vcmp.eq.f32.partialorder %v4971, 8.507059e+37
    %v4973 = vand.u32 %v4946, 2147483648
    %v4974 = vor.u32 1.1754944e-38, %v4973
    %v4975 = vsel %vm4972, %v4974, %v4970
    %v4976 = vmul.f32 1.0, %v4975
    %v4977 = vmul.f32 %v4921, %v4868
    %v4978 = vmul.f32 %v4936, %v4894
    %v4979 = vadd.f32 %v4127, %v4977
    %v4980 = vadd.f32 %v4153, %v4978
    %v4981 = vtanh.pop %v4979
    %v4982 = vtanh.pop %v4980
    %v4983 = vsub.f32 1.0, %v4961
    %v4984 = vsub.f32 1.0, %v4976
    %v4985 = vmul.f32 %v4983, %v4981
    %v4986 = vmul.f32 %v4984, %v4982
    %4987 = vst [vmem:[#allocation1] ss:$4 sm:$0xff] %v4156
    %v4988 = vld.sshfl [vmem:[#allocation1] sm:$0xff pattern:$0x73625140]
    %v4989 = vld.sshfl [vmem:[#allocation1 + $0x8] sm:$0xff pattern:$0x73625140]
    %v4992 = vmul.f32 %v4961, %v4988
    %v4993 = vmul.f32 %v4976, %v4989
    %v4994 = vadd.f32 %v4985, %v4992
    %v4995 = vadd.f32 %v4986, %v4993
    %v4996 = vpack.c.bf16 %v4994, %v4994
    %v4997 = vpack.c.bf16 %v4995, %v4995
    %v4998 = vld [vmem:[%s12] sm:$0xff]
    %v4999 = vld [vmem:[%s12 + $0x8] sm:$0xff]
    %v5000 = vld [vmem:[%s12 + $0x10] sm:$0xff]
    %v5001 = vld [vmem:[%s12 + $0x18] sm:$0xff]
    %v5002 = vld [vmem:[%s12 + $0x20] sm:$0xff]
    %v5003 = vld [vmem:[%s12 + $0x28] sm:$0xff]
    %v5004 = vld [vmem:[%s12 + $0x30] sm:$0xff]
    %v5005 = vld [vmem:[%s12 + $0x38] sm:$0xff]
    %v5006 = vld [vmem:[%s12 + $0x40] sm:$0xff]
    %v5007 = vld [vmem:[%s12 + $0x48] sm:$0xff]
    %v5008 = vld [vmem:[%s12 + $0x50] sm:$0xff]
    %v5009 = vld [vmem:[%s12 + $0x58] sm:$0xff]
    %v5010 = vld [vmem:[%s12 + $0x60] sm:$0xff]
    %v5011 = vld [vmem:[%s12 + $0x68] sm:$0xff]
    %v5012 = vld [vmem:[%s12 + $0x70] sm:$0xff]
    %v5013 = vld [vmem:[%s12 + $0x78] sm:$0xff]
    %v5014 = vld [vmem:[%s12 + $0x80] sm:$0xff]
    %v5015 = vld [vmem:[%s12 + $0x88] sm:$0xff]
    %v5016 = vld [vmem:[%s12 + $0x90] sm:$0xff]
    %v5017 = vld [vmem:[%s12 + $0x98] sm:$0xff]
    %v5018 = vld [vmem:[%s12 + $0xa0] sm:$0xff]
    %v5019 = vld [vmem:[%s12 + $0xa8] sm:$0xff]
    %v5020 = vld [vmem:[%s12 + $0xb0] sm:$0xff]
    %v5021 = vld [vmem:[%s12 + $0xb8] sm:$0xff]
    %v5022 = vld [vmem:[%s12 + $0xc0] sm:$0xff]
    %v5023 = vld [vmem:[%s12 + $0xc8] sm:$0xff]
    %v5024 = vld [vmem:[%s12 + $0xd0] sm:$0xff]
    %v5025 = vld [vmem:[%s12 + $0xd8] sm:$0xff]
    %v5026 = vld [vmem:[%s12 + $0xe0] sm:$0xff]
    %v5027 = vld [vmem:[%s12 + $0xe8] sm:$0xff]
    %v5028 = vld [vmem:[%s12 + $0xf0] sm:$0xff]
    %v5029 = vld [vmem:[%s12 + $0xf8] sm:$0xff]
    %v5062 = vunpack.c.l.b16 %v4998
    %v5063 = vunpack.c.h.b16 %v4998
    %v5064 = vunpack.c.l.b16 %v4999
    %v5065 = vunpack.c.h.b16 %v4999
    %v5066 = vunpack.c.l.b16 %v5000
    %v5067 = vunpack.c.h.b16 %v5000
    %v5068 = vunpack.c.l.b16 %v5001
    %v5069 = vunpack.c.h.b16 %v5001
    %v5070 = vunpack.c.l.b16 %v5002
    %v5071 = vunpack.c.h.b16 %v5002
    %v5072 = vunpack.c.l.b16 %v5003
    %v5073 = vunpack.c.h.b16 %v5003
    %v5074 = vunpack.c.l.b16 %v5004
    %v5075 = vunpack.c.h.b16 %v5004
    %v5076 = vunpack.c.l.b16 %v5005
    %v5077 = vunpack.c.h.b16 %v5005
    %v5078 = vunpack.c.l.b16 %v5006
    %v5079 = vunpack.c.h.b16 %v5006
    %v5080 = vunpack.c.l.b16 %v5007
    %v5081 = vunpack.c.h.b16 %v5007
    %v5082 = vunpack.c.l.b16 %v5008
    %v5083 = vunpack.c.h.b16 %v5008
    %v5084 = vunpack.c.l.b16 %v5009
    %v5085 = vunpack.c.h.b16 %v5009
    %v5086 = vunpack.c.l.b16 %v5010
    %v5087 = vunpack.c.h.b16 %v5010
    %v5088 = vunpack.c.l.b16 %v5011
    %v5089 = vunpack.c.h.b16 %v5011
    %v5090 = vunpack.c.l.b16 %v5012
    %v5091 = vunpack.c.h.b16 %v5012
    %v5092 = vunpack.c.l.b16 %v5013
    %v5093 = vunpack.c.h.b16 %v5013
    %v5094 = vunpack.c.l.b16 %v5014
    %v5095 = vunpack.c.h.b16 %v5014
    %v5096 = vunpack.c.l.b16 %v5015
    %v5097 = vunpack.c.h.b16 %v5015
    %v5098 = vunpack.c.l.b16 %v5016
    %v5099 = vunpack.c.h.b16 %v5016
    %v5100 = vunpack.c.l.b16 %v5017
    %v5101 = vunpack.c.h.b16 %v5017
    %v5102 = vunpack.c.l.b16 %v5018
    %v5103 = vunpack.c.h.b16 %v5018
    %v5104 = vunpack.c.l.b16 %v5019
    %v5105 = vunpack.c.h.b16 %v5019
    %v5106 = vunpack.c.l.b16 %v5020
    %v5107 = vunpack.c.h.b16 %v5020
    %v5108 = vunpack.c.l.b16 %v5021
    %v5109 = vunpack.c.h.b16 %v5021
    %v5110 = vunpack.c.l.b16 %v5022
    %v5111 = vunpack.c.h.b16 %v5022
    %v5112 = vunpack.c.l.b16 %v5023
    %v5113 = vunpack.c.h.b16 %v5023
    %v5114 = vunpack.c.l.b16 %v5024
    %v5115 = vunpack.c.h.b16 %v5024
    %v5116 = vunpack.c.l.b16 %v5025
    %v5117 = vunpack.c.h.b16 %v5025
    %v5118 = vunpack.c.l.b16 %v5026
    %v5119 = vunpack.c.h.b16 %v5026
    %v5120 = vunpack.c.l.b16 %v5027
    %v5121 = vunpack.c.h.b16 %v5027
    %v5122 = vunpack.c.l.b16 %v5028
    %v5123 = vunpack.c.h.b16 %v5028
    %v5124 = vunpack.c.l.b16 %v5029
    %v5125 = vunpack.c.h.b16 %v5029
    %v5126 = vpack.c.b16 %v5064, %v5062
    %v5127 = vpack.c.b16 %v5065, %v5063
    %v5128 = vpack.c.b16 %v5068, %v5066
    %v5129 = vpack.c.b16 %v5069, %v5067
    %v5130 = vpack.c.b16 %v5072, %v5070
    %v5131 = vpack.c.b16 %v5073, %v5071
    %v5132 = vpack.c.b16 %v5076, %v5074
    %v5133 = vpack.c.b16 %v5077, %v5075
    %v5134 = vpack.c.b16 %v5080, %v5078
    %v5135 = vpack.c.b16 %v5081, %v5079
    %v5136 = vpack.c.b16 %v5084, %v5082
    %v5137 = vpack.c.b16 %v5085, %v5083
    %v5138 = vpack.c.b16 %v5088, %v5086
    %v5139 = vpack.c.b16 %v5089, %v5087
    %v5140 = vpack.c.b16 %v5092, %v5090
    %v5141 = vpack.c.b16 %v5093, %v5091
    %v5142 = vpack.c.b16 %v5096, %v5094
    %v5143 = vpack.c.b16 %v5097, %v5095
    %v5144 = vpack.c.b16 %v5100, %v5098
    %v5145 = vpack.c.b16 %v5101, %v5099
    %v5146 = vpack.c.b16 %v5104, %v5102
    %v5147 = vpack.c.b16 %v5105, %v5103
    %v5148 = vpack.c.b16 %v5108, %v5106
    %v5149 = vpack.c.b16 %v5109, %v5107
    %v5150 = vpack.c.b16 %v5112, %v5110
    %v5151 = vpack.c.b16 %v5113, %v5111
    %v5152 = vpack.c.b16 %v5116, %v5114
    %v5153 = vpack.c.b16 %v5117, %v5115
    %v5154 = vpack.c.b16 %v5120, %v5118
    %v5155 = vpack.c.b16 %v5121, %v5119
    %v5156 = vpack.c.b16 %v5124, %v5122
    %v5157 = vpack.c.b16 %v5125, %v5123
    %5190 = vmatpush.bf16.msra.mxu0 %v5140
    %5191 = vmatpush.bf16.msra.mxu0 %v5138
    %5192 = vmatpush.bf16.msra.mxu0 %v5136
    %5193 = vmatpush.bf16.msra.mxu0 %v5134
    %5194 = vmatpush.bf16.msra.mxu0 %v5132
    %5195 = vmatpush.bf16.msra.mxu0 %v5130
    %5196 = vmatpush.bf16.msra.mxu0 %v5128
    %5197 = vmatpush.bf16.msra.mxu0 %v5126
    %5198 = vmatmul.bf16.gmra.mxu0 %v4996
    %v5199 = vpop.f32.mrf.mxu0
    %v5200 = vadd.f32 0.0, %v5199
    %v5201 = vpop.f32.mrf.mxu0
    %5202 = vdwg.mxu0
    %5203 = vmatpush.bf16.msra.mxu0 %v5156
    %5204 = vmatpush.bf16.msra.mxu0 %v5154
    %5205 = vmatpush.bf16.msra.mxu0 %v5152
    %5206 = vmatpush.bf16.msra.mxu0 %v5150
    %5207 = vmatpush.bf16.msra.mxu0 %v5148
    %5208 = vmatpush.bf16.msra.mxu0 %v5146
    %5209 = vmatpush.bf16.msra.mxu0 %v5144
    %5210 = vmatpush.bf16.msra.mxu0 %v5142
    %5211 = vmatmul.bf16.gmra.mxu0 %v4997
    %v5212 = vpop.f32.mrf.mxu0
    %v5213 = vadd.f32 %v5200, %v5212
    %v5214 = vpop.f32.mrf.mxu0
    %5215 = vdwg.mxu0
    %5216 = vmatpush.bf16.msra.mxu0 %v5141
    %5217 = vmatpush.bf16.msra.mxu0 %v5139
    %5218 = vmatpush.bf16.msra.mxu0 %v5137
    %5219 = vmatpush.bf16.msra.mxu0 %v5135
    %5220 = vmatpush.bf16.msra.mxu0 %v5133
    %5221 = vmatpush.bf16.msra.mxu0 %v5131
    %5222 = vmatpush.bf16.msra.mxu0 %v5129
    %5223 = vmatpush.bf16.msra.mxu0 %v5127
    %5224 = vmatmul.bf16.gmra.mxu0 %v4996
    %v5225 = vpop.f32.mrf.mxu0
    %v5226 = vadd.f32 0.0, %v5225
    %v5227 = vpop.f32.mrf.mxu0
    %5228 = vdwg.mxu0
    %5229 = vmatpush.bf16.msra.mxu0 %v5157
    %5230 = vmatpush.bf16.msra.mxu0 %v5155
    %5231 = vmatpush.bf16.msra.mxu0 %v5153
    %5232 = vmatpush.bf16.msra.mxu0 %v5151
    %5233 = vmatpush.bf16.msra.mxu0 %v5149
    %5234 = vmatpush.bf16.msra.mxu0 %v5147
    %5235 = vmatpush.bf16.msra.mxu0 %v5145
    %5236 = vmatpush.bf16.msra.mxu0 %v5143
    %5237 = vmatmul.bf16.gmra.mxu0 %v4997
    %v5238 = vpop.f32.mrf.mxu0
    %v5239 = vadd.f32 %v5226, %v5238
    %v5240 = vpop.f32.mrf.mxu0
    %5241 = vdwg.mxu0
    %v5244 = vrot.slane %v5239, 6
    %v5245 = vsel %vm2406, %v5213, %v5244
    %5247 = vst [vmem:[#allocation11] sm:$0xf] %v5245
    %v5250 = vrot.slane %v4995, 6
    %v5251 = vsel %vm2406, %v4994, %v5250
    %5253 = vst [vmem:[#allocation12] sm:$0xf] %v5251
    // Predicated region
    $region70: #{net_syn_user_forward_steps.1} parent=1 // pred_check
      _
    $region71: #{net_syn_user_forward_steps.1} parent=1 // pred_check_branch
      %5255 = sbr.rel (0) target = $region73
    $region72: #{net_syn_user_forward_steps.1} parent=1 // pred_region
      %5257 = vsyncadd [#allocation5], 0
      %s5259 = sshll.u32 [#allocation11], 4
      %s5260 = int_to_ptr.vmem [resolvable:$true] %s5259
      %s5261 = sshll.u32 %s13, 4
      %s5262 = int_to_ptr.hbm [resolvable:$true] %s5261
      %5264 = dma.vmem_to_hbm [thread:$0]  %s5260, 64, %s5262, [#allocation5]
    $region73: #{net_syn_user_forward_steps.1} parent=1 // pred_fallthru
      _
    // Predicated region
    $region74: #{net_syn_user_forward_steps.1} parent=1 // pred_check
      _
    $region75: #{net_syn_user_forward_steps.1} parent=1 // pred_check_branch
      %5266 = sbr.rel (0) target = $region77
    $region76: #{net_syn_user_forward_steps.1} parent=1 // pred_region
      %5268 = vsyncadd [#allocation13], 0
      %s5270 = sshll.u32 [#allocation12], 4
      %s5271 = int_to_ptr.vmem [resolvable:$true] %s5270
      %s5272 = sshll.u32 %s14, 4
      %s5273 = int_to_ptr.hbm [resolvable:$true] %s5272
      %5275 = dma.vmem_to_hbm [thread:$0]  %s5271, 64, %s5273, [#allocation13]
    $region77: #{net_syn_user_forward_steps.1} parent=1 // pred_fallthru
      _
    // Predicated region
    $region78: #{net_syn_user_forward_steps.1} parent=1 // pred_check
      _
    $region79: #{net_syn_user_forward_steps.1} parent=1 // pred_check_branch
      %5277 = sbr.rel (0) target = $region81
    $region80: #{net_syn_user_forward_steps.1} parent=1 // pred_region
      %5279 = dma.done [#allocation5], 64
    $region81: #{net_syn_user_forward_steps.1} parent=1 // pred_fallthru
      _
    // Predicated region
    $region82: #{net_syn_user_forward_steps.1} parent=1 // pred_check
      _
    $region83: #{net_syn_user_forward_steps.1} parent=1 // pred_check_branch
      %5281 = sbr.rel (0) target = $region85
    $region84: #{net_syn_user_forward_steps.1} parent=1 // pred_region
      %5283 = dma.done [#allocation13], 64
    $region85: #{net_syn_user_forward_steps.1} parent=1 // pred_fallthru
      _
    %5284 = vsyncpa [#allocation4], 1
    %5285 = vsyncpa [#allocation7], 1
    %5286 = vsyncpa [#allocation10], 1
    %5287 = vsyncpa [#allocation5], 1
    %5288 = vsyncpa [#allocation13], 1

</llo_original>
